<compile_context>
chip_gen: v7x
topology: tpu7x:2x2x1
jax: 0.10.0
libtpu: 0.0.40
codegen_flags: <defaults>
</compile_context>

<pallas_src>
import math
import functools

import jax
import jax.numpy as jnp
from jax import lax
from jax.experimental import pallas as pl
from jax.experimental.pallas import tpu as pltpu


# ----------------------------- in-kernel helpers --------------------------- #

_DN_MM = (((1,), (0,)), ((), ()))   # standard 2-D matmul: (m, k) @ (k, n)
_DN_TN = (((0,), (0,)), ((), ()))   # transposed-LHS contraction: contract rows


def _dot(a, b, dn):
    return lax.dot_general(a, b, dimension_numbers=dn,
                           preferred_element_type=jnp.float32)


def _matpow_2d(k, n):
    """k^n for a square 2-D tile; n is a static python int >= 1.
    Exponentiation by squaring, unrolled at trace time -> ~log2(n) MXU ops,
    all intermediates stay in VMEM/vregs."""
    result, base, e = None, k, n
    while e > 0:
        if e & 1:
            result = base if result is None else _dot(result, base, _DN_MM)
        e >>= 1
        if e:
            base = _dot(base, base, _DN_MM)
    return result


def _gauss_jordan_solve(m, e_dim):
    """Batched Gauss-Jordan on augmented systems m: (nb, E, 2E) -> A^-1 B as
    (nb, E, E).  xtx is SPD for full-rank x, so no pivoting; a singular system
    produces inf/NaN which feeds the same NaN->identity fallback torch uses."""
    nb = m.shape[0]
    rows = lax.broadcasted_iota(jnp.int32, (nb, e_dim, 2 * e_dim), 1)
    for i in range(e_dim):                       # static unroll, E is tiny
        pivot = m[:, i:i + 1, i:i + 1]           # (nb, 1, 1)
        row_i = m[:, i:i + 1, :] / pivot         # (nb, 1, 2E)  normalized pivot row
        col_i = m[:, :, i:i + 1]                 # (nb, E, 1)
        is_i = rows == i
        m = m - jnp.where(is_i, 0.0, col_i * row_i)   # eliminate rows != i
        m = jnp.where(is_i, row_i, m)                 # write normalized row i
    return m[:, :, e_dim:]


# ------------------------------ Pallas kernels ----------------------------- #

def _make_operator_kernel(e_dim, b_blk):
    """Per grid step: z block (1, L, P) with P = b_blk*E batches lane-packed.
    Both Gram matrices come from full-width MXU dots on the packed tile (the
    per-batch Grams are the diagonal blocks); the normal equations are then
    solved in-kernel with a batched, unrolled Gauss-Jordan (VPU)."""
    def kernel(z_ref, k_ref):
        z = z_ref[0].astype(jnp.float32)                   # (L, P)
        x = z[:-1, :]
        y = z[1:, :]
        gxx = _dot(x, x, _DN_TN)                           # (P, P): x^T x
        gxy = _dot(x, y, _DN_TN)                           # (P, P): x^T y
        blocks = []
        for bi in range(b_blk):                            # diag-block extraction
            sl = slice(bi * e_dim, (bi + 1) * e_dim)
            blocks.append(jnp.concatenate([gxx[sl, sl], gxy[sl, sl]], axis=-1))
        aug = jnp.stack(blocks, axis=0)                    # (b_blk, E, 2E)
        k_ref[0] = _gauss_jordan_solve(aug, e_dim).astype(k_ref.dtype)
    return kernel


def _make_apply_kernel(n_pow, input_len, pred_len, multi_step, n_chunks):
    """Per grid step: z (1, L, P) and block-diagonal K_bd (1, P, P) (already
    past the global NaN fallback).  Produces, with full-width MXU dots only:
      z_rec  = [z[0]; x @ K]   (built in vregs, ONE full-tile store)
      K_pow  = K^n_pow         (exponentiation by squaring, stays block-diag)
      z_pred = tail @ K_pow            (pred_len <= input_len)
             | [z K^n; z K^2n; ...]    (multi-step rollout, chunks unrolled)"""
    def kernel(z_ref, kbd_ref, zrec_ref, kpow_ref, zpred_ref):
        z = z_ref[0].astype(jnp.float32)                   # (L, P)
        kbd = kbd_ref[0]                                   # (P, P)

        rec = _dot(z[:-1, :], kbd, _DN_MM)                 # x @ K_bd -> (L-1, P)
        zrec_ref[0] = jnp.concatenate([z[:1, :], rec],
                                      axis=0).astype(zrec_ref.dtype)

        kpow = _matpow_2d(kbd, n_pow)                      # (P, P), block-diag
        kpow_ref[0] = kpow.astype(kpow_ref.dtype)

        if multi_step:
            temp = z
            chunks = []
            for _ in range(n_chunks):                      # static unroll
                temp = _dot(temp, kpow, _DN_MM)
                chunks.append(temp)
            zpred_ref[0] = jnp.concatenate(chunks, axis=0).astype(zpred_ref.dtype)
        else:
            tail = z[input_len - pred_len:, :]             # last pred_len rows
            zpred_ref[0] = _dot(tail, kpow, _DN_MM).astype(zpred_ref.dtype)
    return kernel


# --------------------------- sizing / device hints -------------------------- #

def _is_multicore_chip():
    # TODO(synk): no stable public API for TensorCores-per-chip; device-kind
    # string heuristic (v7x: 2 TCs/chip, v5e/v6e: 1 TC/chip).
    try:
        return "v7" in jax.devices()[0].device_kind.lower()
    except Exception:
        return False


def _vmem_capacity_bytes():
    try:
        return int(getattr(pltpu.get_tpu_info(), "vmem_capacity_bytes",
                           64 * 2**20))
    except Exception:
        return 64 * 2**20          # conservative default (v7x per-TC VMEM)


def _pick_batch_block(B, L, E, pred_rows, itemsize):
    """Largest divisor of B such that the double-buffered working set of the
    fused apply kernel stays within ~25% of this generation's VMEM.  On
    multi-TC chips (v7x) keep >= 2 grid steps so both TensorCores get a shard;
    on single-TC chips maximize the block to amortize per-step overhead."""
    vmem_cap = _vmem_capacity_bytes()
    budget = vmem_cap // 4
    p_cap = max(512, E)            # bound the (P, P) block-diagonal operator

    def working_set(b_blk):
        P = b_blk * E
        # in: z (L,P), K_bd (P,P); out: z_rec (L,P), K_pow (P,P), z_pred (R,P)
        blocks = 2 * L * P + 2 * P * P + pred_rows * P
        return 2 * itemsize * blocks          # x2: double buffering

    divisors = [d for d in range(1, B + 1) if B % d == 0]
    ok = [d for d in divisors
          if d * E <= p_cap and working_set(d) <= budget] or [1]
    if _is_multicore_chip() and B >= 2:
        two_step = [d for d in ok if B // d >= 2]
        if two_step:
            ok = two_step
    b_blk = max(ok)
    vmem_limit = int(min(vmem_cap * 3 // 4,
                         max(32 * 2**20, 4 * working_set(b_blk))))
    return b_blk, vmem_limit


def _params(vmem_limit_bytes):
    return pltpu.CompilerParams(dimension_semantics=("parallel",),
                                vmem_limit_bytes=int(vmem_limit_bytes))


# --------------------------- pack / unpack (XLA) ---------------------------- #

def _pack_lanes(z, b_blk):
    """(B, L, E) -> (G, L, b_blk*E) with batches packed along lanes."""
    B, L, E = z.shape
    G = B // b_blk
    return z.reshape(G, b_blk, L, E).transpose(0, 2, 1, 3).reshape(G, L, b_blk * E)


def _unpack_lanes(zp, b_blk):
    """(G, R, b_blk*E) -> (G*b_blk, R, E)."""
    G, R, P = zp.shape
    E = P // b_blk
    return zp.reshape(G, R, b_blk, E).transpose(0, 2, 1, 3).reshape(G * b_blk, R, E)


def _block_diag_embed(K, b_blk):
    """(B, E, E) -> (G, P, P) block-diagonal operator (tiny XLA glue)."""
    B, E, _ = K.shape
    G = B // b_blk
    eye_b = jnp.eye(b_blk, dtype=K.dtype)
    kbd = jnp.einsum('gbef,bc->gbecf', K.reshape(G, b_blk, E, E), eye_b)
    return kbd.reshape(G, b_blk * E, b_blk * E)


# ------------------------------ call wrappers ------------------------------ #

def _koopman_operator(z_packed, e_dim, b_blk, vmem_limit):
    G, L, P = z_packed.shape
    return pl.pallas_call(
        _make_operator_kernel(e_dim, b_blk),
        out_shape=jax.ShapeDtypeStruct((G, b_blk, e_dim, e_dim), jnp.float32),
        grid=(G,),
        in_specs=[pl.BlockSpec((1, L, P), lambda g: (g, 0, 0))],
        out_specs=pl.BlockSpec((1, b_blk, e_dim, e_dim),
                               lambda g: (g, 0, 0, 0)),
        compiler_params=_params(vmem_limit),
    )(z_packed)


def _apply_koopman(z_packed, k_bd, n_pow, pred_len, multi_step, n_chunks,
                   out_dtype, vmem_limit):
    G, L, P = z_packed.shape
    R = n_chunks * L if multi_step else pred_len
    return pl.pallas_call(
        _make_apply_kernel(n_pow, L, pred_len, multi_step, n_chunks),
        out_shape=(jax.ShapeDtypeStruct((G, L, P), out_dtype),
                   jax.ShapeDtypeStruct((G, P, P), jnp.float32),
                   jax.ShapeDtypeStruct((G, R, P), out_dtype)),
        grid=(G,),
        in_specs=[pl.BlockSpec((1, L, P), lambda g: (g, 0, 0)),
                  pl.BlockSpec((1, P, P), lambda g: (g, 0, 0))],
        out_specs=(pl.BlockSpec((1, L, P), lambda g: (g, 0, 0)),
                   pl.BlockSpec((1, P, P), lambda g: (g, 0, 0)),
                   pl.BlockSpec((1, R, P), lambda g: (g, 0, 0))),
        compiler_params=_params(vmem_limit),
    )(z_packed, k_bd)


# ------------------------------ forward (module) ---------------------------- #

@functools.partial(jax.jit, static_argnums=(1,))
def kp_layer_approx_forward(z, pred_len=1):
    """Pallas implementation of KPLayerApprox.forward.

    z: (B, input_len, E) float32.  Returns (z_rec, z_pred)."""
    B, input_len, E = z.shape
    assert input_len > 1, "Input length must be greater than 1"
    assert pred_len >= 1

    multi_step = pred_len > input_len
    n_chunks = math.ceil(pred_len / input_len) if multi_step else 1
    n_pow = min(pred_len, input_len)
    pred_rows = n_chunks * input_len if multi_step else pred_len

    b_blk, vmem_limit = _pick_batch_block(B, input_len, E, pred_rows,
                                          jnp.dtype(z.dtype).itemsize)
    z_packed = _pack_lanes(z, b_blk)                 # lane-dense minor dim

    # Pallas call 1: Grams + in-kernel normal-equation solve -> K.
    K = _koopman_operator(z_packed, E, b_blk, vmem_limit).reshape(B, E, E)

    # Global (cross-batch) NaN -> identity fallback, exactly as in torch.
    eye = jnp.broadcast_to(jnp.eye(E, dtype=K.dtype), (B, E, E))
    K = jnp.where(jnp.any(jnp.isnan(K)), eye, K)
    k_bd = _block_diag_embed(K, b_blk)               # (G, P, P) for full-width MXU

    # Pallas call 2: reconstruction + K^n + prediction / rollout, fused.
    z_rec_p, k_pow_bd, z_pred_p = _apply_koopman(
        z_packed, k_bd, n_pow, pred_len, multi_step, n_chunks,
        z.dtype, vmem_limit)

    z_rec = _unpack_lanes(z_rec_p, b_blk)
    z_pred = _unpack_lanes(z_pred_p, b_blk)[:, :pred_len, :]

    # K_step NaN -> identity fallback: with K_step == I the prediction is just
    # a slice / tiling of z, so select it in XLA instead of re-running the kernel.
    if multi_step:
        z_pred_id = jnp.tile(z, (1, n_chunks, 1))[:, :pred_len, :]
    else:
        z_pred_id = z[:, input_len - pred_len:, :]
    z_pred = jnp.where(jnp.any(jnp.isnan(k_pow_bd)), z_pred_id, z_pred)

    return z_rec, z_pred


# ------------------------------ pure-JAX reference -------------------------- #

def _reference_forward(z, pred_len):
    B, input_len, E = z.shape
    x, y = z[:, :-1, :], z[:, 1:, :]
    xtx = jnp.einsum('ble,blf->bef', x, x)
    xty = jnp.einsum('ble,blf->bef', x, y)
    K = jnp.linalg.solve(xtx, xty)
    eye = jnp.broadcast_to(jnp.eye(E, dtype=jnp.float32), (B, E, E))
    K = jnp.where(jnp.any(jnp.isnan(K)), eye, K)
    z_rec = jnp.concatenate([z[:, :1, :], jnp.einsum('ble,bef->blf', x, K)], axis=1)
    n_pow = min(pred_len, input_len)
    K_step = K
    for _ in range(n_pow - 1):
        K_step = jnp.einsum('bef,bfg->beg', K_step, K)
    K_step = jnp.where(jnp.any(jnp.isnan(K_step)), eye, K_step)
    if pred_len <= input_len:
        z_pred = jnp.einsum('ble,bef->blf', z[:, input_len - pred_len:, :], K_step)
    else:
        preds, temp = [], z
        for _ in range(math.ceil(pred_len / input_len)):
            temp = jnp.einsum('ble,bef->blf', temp, K_step)
            preds.append(temp)
        z_pred = jnp.concatenate(preds, axis=1)[:, :pred_len, :]
    return z_rec, z_pred


# ---------------------------------- main ----------------------------------- #

if __name__ == "__main__":
    key = jax.random.PRNGKey(0)
    B, input_len, E = 16, 16, 8          # b_blk*E lane-packs up to 128 lanes
    kq, kz, kn = jax.random.split(key, 3)

    # Stable latent dynamics -> well-conditioned lstsq and bounded K^n, so the
    # reference comparison below is numerically robust in f32.
    q, _ = jnp.linalg.qr(jax.random.normal(kq, (E, E), dtype=jnp.float32))
    a_true = 0.95 * q
    z0 = jax.random.normal(kz, (B, E), dtype=jnp.float32)
    steps = [z0]
    for _ in range(input_len - 1):
        steps.append(steps[-1] @ a_true)
    z = jnp.stack(steps, axis=1)
    z = (z + 0.02 * jax.random.normal(kn, (B, input_len, E),
                                      dtype=jnp.float32)).astype(jnp.float32)

    for pred_len in (4, 20):             # both branches: pred_len <= / > input_len
        z_rec, z_pred = kp_layer_approx_forward(z, pred_len)
        jax.block_until_ready((z_rec, z_pred))
        assert z_rec.shape == (B, input_len, E)
        assert z_pred.shape == (B, pred_len, E)
        assert bool(jnp.all(jnp.isfinite(z_rec)))
        assert bool(jnp.all(jnp.isfinite(z_pred)))

        r_rec, r_pred = _reference_forward(z, pred_len)
        assert bool(jnp.allclose(z_rec, r_rec, rtol=5e-2, atol=5e-2)), \
            f"z_rec mismatch (pred_len={pred_len})"
        assert bool(jnp.allclose(z_pred, r_pred, rtol=5e-2, atol=5e-2)), \
            f"z_pred mismatch (pred_len={pred_len})"

    print("KERNEL_OK")
</pallas_src>

<mosaic_0001>
module attributes {stable_mosaic.version = 11 : i64} {
  func.func @kernel(%arg0: i32, %arg1: memref<1x16x128xf32, #tpu.memory_space<vmem>>, %arg2: memref<1x16x8x8xf32, #tpu.memory_space<vmem>>) attributes {dimension_semantics = [#tpu.dimension_semantics<parallel>], iteration_bounds = array<i64: 1>, scalar_prefetch = 0 : i64, scratch_operands = 0 : i64, tpu.core_type = #tpu.core_type<tc>, window_params = [{transform_indices = @transform_0, window_bounds = array<i64: 1, 16, 128>}, {transform_indices = @transform_1, window_bounds = array<i64: 1, 16, 8, 8>}]} {
    %c0 = arith.constant 0 : index
    %c0_0 = arith.constant 0 : index
    %c0_1 = arith.constant 0 : index
    %0 = vector.load %arg1[%c0, %c0_0, %c0_1] : memref<1x16x128xf32, #tpu.memory_space<vmem>>, vector<1x16x128xf32>
    %1 = vector.shape_cast %0 : vector<1x16x128xf32> to vector<16x128xf32>
    %2 = vector.extract_strided_slice %1 {offsets = [0, 0], sizes = [15, 128], strides = [1, 1]} : vector<16x128xf32> to vector<15x128xf32>
    %3 = vector.extract_strided_slice %1 {offsets = [1, 0], sizes = [15, 128], strides = [1, 1]} : vector<16x128xf32> to vector<15x128xf32>
    %cst = arith.constant dense<0.000000e+00> : vector<128x128xf32>
    %4 = tpu.matmul %2, %2, %cst {dimension_numbers = #tpu.dot_dimension_numbers<[0], [0], [1], [1], [0, 1, 1, 1], [], []>} : vector<15x128xf32>, vector<15x128xf32>, vector<128x128xf32> -> vector<128x128xf32>
    %cst_2 = arith.constant dense<0.000000e+00> : vector<128x128xf32>
    %5 = tpu.matmul %2, %3, %cst_2 {dimension_numbers = #tpu.dot_dimension_numbers<[0], [0], [1], [1], [0, 1, 1, 1], [], []>} : vector<15x128xf32>, vector<15x128xf32>, vector<128x128xf32> -> vector<128x128xf32>
    %6 = vector.extract_strided_slice %4 {offsets = [0, 0], sizes = [8, 8], strides = [1, 1]} : vector<128x128xf32> to vector<8x8xf32>
    %7 = vector.extract_strided_slice %5 {offsets = [0, 0], sizes = [8, 8], strides = [1, 1]} : vector<128x128xf32> to vector<8x8xf32>
    %8 = tpu.concatenate %6, %7 in 1 : vector<8x8xf32>, vector<8x8xf32> -> vector<8x16xf32>
    %9 = vector.extract_strided_slice %4 {offsets = [8, 8], sizes = [8, 8], strides = [1, 1]} : vector<128x128xf32> to vector<8x8xf32>
    %10 = vector.extract_strided_slice %5 {offsets = [8, 8], sizes = [8, 8], strides = [1, 1]} : vector<128x128xf32> to vector<8x8xf32>
    %11 = tpu.concatenate %9, %10 in 1 : vector<8x8xf32>, vector<8x8xf32> -> vector<8x16xf32>
    %12 = vector.extract_strided_slice %4 {offsets = [16, 16], sizes = [8, 8], strides = [1, 1]} : vector<128x128xf32> to vector<8x8xf32>
    %13 = vector.extract_strided_slice %5 {offsets = [16, 16], sizes = [8, 8], strides = [1, 1]} : vector<128x128xf32> to vector<8x8xf32>
    %14 = tpu.concatenate %12, %13 in 1 : vector<8x8xf32>, vector<8x8xf32> -> vector<8x16xf32>
    %15 = vector.extract_strided_slice %4 {offsets = [24, 24], sizes = [8, 8], strides = [1, 1]} : vector<128x128xf32> to vector<8x8xf32>
    %16 = vector.extract_strided_slice %5 {offsets = [24, 24], sizes = [8, 8], strides = [1, 1]} : vector<128x128xf32> to vector<8x8xf32>
    %17 = tpu.concatenate %15, %16 in 1 : vector<8x8xf32>, vector<8x8xf32> -> vector<8x16xf32>
    %18 = vector.extract_strided_slice %4 {offsets = [32, 32], sizes = [8, 8], strides = [1, 1]} : vector<128x128xf32> to vector<8x8xf32>
    %19 = vector.extract_strided_slice %5 {offsets = [32, 32], sizes = [8, 8], strides = [1, 1]} : vector<128x128xf32> to vector<8x8xf32>
    %20 = tpu.concatenate %18, %19 in 1 : vector<8x8xf32>, vector<8x8xf32> -> vector<8x16xf32>
    %21 = vector.extract_strided_slice %4 {offsets = [40, 40], sizes = [8, 8], strides = [1, 1]} : vector<128x128xf32> to vector<8x8xf32>
    %22 = vector.extract_strided_slice %5 {offsets = [40, 40], sizes = [8, 8], strides = [1, 1]} : vector<128x128xf32> to vector<8x8xf32>
    %23 = tpu.concatenate %21, %22 in 1 : vector<8x8xf32>, vector<8x8xf32> -> vector<8x16xf32>
    %24 = vector.extract_strided_slice %4 {offsets = [48, 48], sizes = [8, 8], strides = [1, 1]} : vector<128x128xf32> to vector<8x8xf32>
    %25 = vector.extract_strided_slice %5 {offsets = [48, 48], sizes = [8, 8], strides = [1, 1]} : vector<128x128xf32> to vector<8x8xf32>
    %26 = tpu.concatenate %24, %25 in 1 : vector<8x8xf32>, vector<8x8xf32> -> vector<8x16xf32>
    %27 = vector.extract_strided_slice %4 {offsets = [56, 56], sizes = [8, 8], strides = [1, 1]} : vector<128x128xf32> to vector<8x8xf32>
    %28 = vector.extract_strided_slice %5 {offsets = [56, 56], sizes = [8, 8], strides = [1, 1]} : vector<128x128xf32> to vector<8x8xf32>
    %29 = tpu.concatenate %27, %28 in 1 : vector<8x8xf32>, vector<8x8xf32> -> vector<8x16xf32>
    %30 = vector.extract_strided_slice %4 {offsets = [64, 64], sizes = [8, 8], strides = [1, 1]} : vector<128x128xf32> to vector<8x8xf32>
    %31 = vector.extract_strided_slice %5 {offsets = [64, 64], sizes = [8, 8], strides = [1, 1]} : vector<128x128xf32> to vector<8x8xf32>
    %32 = tpu.concatenate %30, %31 in 1 : vector<8x8xf32>, vector<8x8xf32> -> vector<8x16xf32>
    %33 = vector.extract_strided_slice %4 {offsets = [72, 72], sizes = [8, 8], strides = [1, 1]} : vector<128x128xf32> to vector<8x8xf32>
    %34 = vector.extract_strided_slice %5 {offsets = [72, 72], sizes = [8, 8], strides = [1, 1]} : vector<128x128xf32> to vector<8x8xf32>
    %35 = tpu.concatenate %33, %34 in 1 : vector<8x8xf32>, vector<8x8xf32> -> vector<8x16xf32>
    %36 = vector.extract_strided_slice %4 {offsets = [80, 80], sizes = [8, 8], strides = [1, 1]} : vector<128x128xf32> to vector<8x8xf32>
    %37 = vector.extract_strided_slice %5 {offsets = [80, 80], sizes = [8, 8], strides = [1, 1]} : vector<128x128xf32> to vector<8x8xf32>
    %38 = tpu.concatenate %36, %37 in 1 : vector<8x8xf32>, vector<8x8xf32> -> vector<8x16xf32>
    %39 = vector.extract_strided_slice %4 {offsets = [88, 88], sizes = [8, 8], strides = [1, 1]} : vector<128x128xf32> to vector<8x8xf32>
    %40 = vector.extract_strided_slice %5 {offsets = [88, 88], sizes = [8, 8], strides = [1, 1]} : vector<128x128xf32> to vector<8x8xf32>
    %41 = tpu.concatenate %39, %40 in 1 : vector<8x8xf32>, vector<8x8xf32> -> vector<8x16xf32>
    %42 = vector.extract_strided_slice %4 {offsets = [96, 96], sizes = [8, 8], strides = [1, 1]} : vector<128x128xf32> to vector<8x8xf32>
    %43 = vector.extract_strided_slice %5 {offsets = [96, 96], sizes = [8, 8], strides = [1, 1]} : vector<128x128xf32> to vector<8x8xf32>
    %44 = tpu.concatenate %42, %43 in 1 : vector<8x8xf32>, vector<8x8xf32> -> vector<8x16xf32>
    %45 = vector.extract_strided_slice %4 {offsets = [104, 104], sizes = [8, 8], strides = [1, 1]} : vector<128x128xf32> to vector<8x8xf32>
    %46 = vector.extract_strided_slice %5 {offsets = [104, 104], sizes = [8, 8], strides = [1, 1]} : vector<128x128xf32> to vector<8x8xf32>
    %47 = tpu.concatenate %45, %46 in 1 : vector<8x8xf32>, vector<8x8xf32> -> vector<8x16xf32>
    %48 = vector.extract_strided_slice %4 {offsets = [112, 112], sizes = [8, 8], strides = [1, 1]} : vector<128x128xf32> to vector<8x8xf32>
    %49 = vector.extract_strided_slice %5 {offsets = [112, 112], sizes = [8, 8], strides = [1, 1]} : vector<128x128xf32> to vector<8x8xf32>
    %50 = tpu.concatenate %48, %49 in 1 : vector<8x8xf32>, vector<8x8xf32> -> vector<8x16xf32>
    %51 = vector.extract_strided_slice %4 {offsets = [120, 120], sizes = [8, 8], strides = [1, 1]} : vector<128x128xf32> to vector<8x8xf32>
    %52 = vector.extract_strided_slice %5 {offsets = [120, 120], sizes = [8, 8], strides = [1, 1]} : vector<128x128xf32> to vector<8x8xf32>
    %53 = tpu.concatenate %51, %52 in 1 : vector<8x8xf32>, vector<8x8xf32> -> vector<8x16xf32>
    %54 = vector.shape_cast %8 : vector<8x16xf32> to vector<1x8x16xf32>
    %55 = vector.shape_cast %11 : vector<8x16xf32> to vector<1x8x16xf32>
    %56 = vector.shape_cast %14 : vector<8x16xf32> to vector<1x8x16xf32>
    %57 = vector.shape_cast %17 : vector<8x16xf32> to vector<1x8x16xf32>
    %58 = vector.shape_cast %20 : vector<8x16xf32> to vector<1x8x16xf32>
    %59 = vector.shape_cast %23 : vector<8x16xf32> to vector<1x8x16xf32>
    %60 = vector.shape_cast %26 : vector<8x16xf32> to vector<1x8x16xf32>
    %61 = vector.shape_cast %29 : vector<8x16xf32> to vector<1x8x16xf32>
    %62 = vector.shape_cast %32 : vector<8x16xf32> to vector<1x8x16xf32>
    %63 = vector.shape_cast %35 : vector<8x16xf32> to vector<1x8x16xf32>
    %64 = vector.shape_cast %38 : vector<8x16xf32> to vector<1x8x16xf32>
    %65 = vector.shape_cast %41 : vector<8x16xf32> to vector<1x8x16xf32>
    %66 = vector.shape_cast %44 : vector<8x16xf32> to vector<1x8x16xf32>
    %67 = vector.shape_cast %47 : vector<8x16xf32> to vector<1x8x16xf32>
    %68 = vector.shape_cast %50 : vector<8x16xf32> to vector<1x8x16xf32>
    %69 = vector.shape_cast %53 : vector<8x16xf32> to vector<1x8x16xf32>
    %70 = tpu.concatenate %54, %55, %56, %57, %58, %59, %60, %61, %62, %63, %64, %65, %66, %67, %68, %69 in 0 : vector<1x8x16xf32>, vector<1x8x16xf32>, vector<1x8x16xf32>, vector<1x8x16xf32>, vector<1x8x16xf32>, vector<1x8x16xf32>, vector<1x8x16xf32>, vector<1x8x16xf32>, vector<1x8x16xf32>, vector<1x8x16xf32>, vector<1x8x16xf32>, vector<1x8x16xf32>, vector<1x8x16xf32>, vector<1x8x16xf32>, vector<1x8x16xf32>, vector<1x8x16xf32> -> vector<16x8x16xf32>
    %71 = tpu.iota {dimensions = array<i32: 1>} : vector<16x8x16xi32>
    %72 = vector.extract_strided_slice %70 {offsets = [0, 0, 0], sizes = [16, 1, 1], strides = [1, 1, 1]} : vector<16x8x16xf32> to vector<16x1x1xf32>
    %73 = vector.extract_strided_slice %70 {offsets = [0, 0, 0], sizes = [16, 1, 16], strides = [1, 1, 1]} : vector<16x8x16xf32> to vector<16x1x16xf32>
    %74 = vector.broadcast %72 : vector<16x1x1xf32> to vector<16x1x16xf32>
    %75 = arith.divf %73, %74 : vector<16x1x16xf32>
    %76 = vector.extract_strided_slice %70 {offsets = [0, 0, 0], sizes = [16, 8, 1], strides = [1, 1, 1]} : vector<16x8x16xf32> to vector<16x8x1xf32>
    %c0_i32 = arith.constant 0 : i32
    %77 = vector.broadcast %c0_i32 : i32 to vector<16x8x16xi32>
    %78 = arith.cmpi eq, %71, %77 : vector<16x8x16xi32>
    %79 = vector.broadcast %76 : vector<16x8x1xf32> to vector<16x8x16xf32>
    %80 = vector.broadcast %75 : vector<16x1x16xf32> to vector<16x8x16xf32>
    %81 = arith.mulf %79, %80 : vector<16x8x16xf32>
    %cst_3 = arith.constant 0.000000e+00 : f32
    %82 = vector.broadcast %cst_3 : f32 to vector<16x8x16xf32>
    %83 = arith.select %78, %82, %81 : vector<16x8x16xi1>, vector<16x8x16xf32>
    %84 = arith.subf %70, %83 : vector<16x8x16xf32>
    %85 = vector.shape_cast %75 : vector<16x1x16xf32> to vector<16x1x16xf32>
    %86 = vector.broadcast %85 : vector<16x1x16xf32> to vector<16x8x16xf32>
    %87 = arith.select %78, %86, %84 : vector<16x8x16xi1>, vector<16x8x16xf32>
    %88 = vector.extract_strided_slice %87 {offsets = [0, 1, 1], sizes = [16, 1, 1], strides = [1, 1, 1]} : vector<16x8x16xf32> to vector<16x1x1xf32>
    %89 = vector.extract_strided_slice %87 {offsets = [0, 1, 0], sizes = [16, 1, 16], strides = [1, 1, 1]} : vector<16x8x16xf32> to vector<16x1x16xf32>
    %90 = vector.broadcast %88 : vector<16x1x1xf32> to vector<16x1x16xf32>
    %91 = arith.divf %89, %90 : vector<16x1x16xf32>
    %92 = vector.extract_strided_slice %87 {offsets = [0, 0, 1], sizes = [16, 8, 1], strides = [1, 1, 1]} : vector<16x8x16xf32> to vector<16x8x1xf32>
    %c1_i32 = arith.constant 1 : i32
    %93 = vector.broadcast %c1_i32 : i32 to vector<16x8x16xi32>
    %94 = arith.cmpi eq, %71, %93 : vector<16x8x16xi32>
    %95 = vector.broadcast %92 : vector<16x8x1xf32> to vector<16x8x16xf32>
    %96 = vector.broadcast %91 : vector<16x1x16xf32> to vector<16x8x16xf32>
    %97 = arith.mulf %95, %96 : vector<16x8x16xf32>
    %cst_4 = arith.constant 0.000000e+00 : f32
    %98 = vector.broadcast %cst_4 : f32 to vector<16x8x16xf32>
    %99 = arith.select %94, %98, %97 : vector<16x8x16xi1>, vector<16x8x16xf32>
    %100 = arith.subf %87, %99 : vector<16x8x16xf32>
    %101 = vector.shape_cast %91 : vector<16x1x16xf32> to vector<16x1x16xf32>
    %102 = vector.broadcast %101 : vector<16x1x16xf32> to vector<16x8x16xf32>
    %103 = arith.select %94, %102, %100 : vector<16x8x16xi1>, vector<16x8x16xf32>
    %104 = vector.extract_strided_slice %103 {offsets = [0, 2, 2], sizes = [16, 1, 1], strides = [1, 1, 1]} : vector<16x8x16xf32> to vector<16x1x1xf32>
    %105 = vector.extract_strided_slice %103 {offsets = [0, 2, 0], sizes = [16, 1, 16], strides = [1, 1, 1]} : vector<16x8x16xf32> to vector<16x1x16xf32>
    %106 = vector.broadcast %104 : vector<16x1x1xf32> to vector<16x1x16xf32>
    %107 = arith.divf %105, %106 : vector<16x1x16xf32>
    %108 = vector.extract_strided_slice %103 {offsets = [0, 0, 2], sizes = [16, 8, 1], strides = [1, 1, 1]} : vector<16x8x16xf32> to vector<16x8x1xf32>
    %c2_i32 = arith.constant 2 : i32
    %109 = vector.broadcast %c2_i32 : i32 to vector<16x8x16xi32>
    %110 = arith.cmpi eq, %71, %109 : vector<16x8x16xi32>
    %111 = vector.broadcast %108 : vector<16x8x1xf32> to vector<16x8x16xf32>
    %112 = vector.broadcast %107 : vector<16x1x16xf32> to vector<16x8x16xf32>
    %113 = arith.mulf %111, %112 : vector<16x8x16xf32>
    %cst_5 = arith.constant 0.000000e+00 : f32
    %114 = vector.broadcast %cst_5 : f32 to vector<16x8x16xf32>
    %115 = arith.select %110, %114, %113 : vector<16x8x16xi1>, vector<16x8x16xf32>
    %116 = arith.subf %103, %115 : vector<16x8x16xf32>
    %117 = vector.shape_cast %107 : vector<16x1x16xf32> to vector<16x1x16xf32>
    %118 = vector.broadcast %117 : vector<16x1x16xf32> to vector<16x8x16xf32>
    %119 = arith.select %110, %118, %116 : vector<16x8x16xi1>, vector<16x8x16xf32>
    %120 = vector.extract_strided_slice %119 {offsets = [0, 3, 3], sizes = [16, 1, 1], strides = [1, 1, 1]} : vector<16x8x16xf32> to vector<16x1x1xf32>
    %121 = vector.extract_strided_slice %119 {offsets = [0, 3, 0], sizes = [16, 1, 16], strides = [1, 1, 1]} : vector<16x8x16xf32> to vector<16x1x16xf32>
    %122 = vector.broadcast %120 : vector<16x1x1xf32> to vector<16x1x16xf32>
    %123 = arith.divf %121, %122 : vector<16x1x16xf32>
    %124 = vector.extract_strided_slice %119 {offsets = [0, 0, 3], sizes = [16, 8, 1], strides = [1, 1, 1]} : vector<16x8x16xf32> to vector<16x8x1xf32>
    %c3_i32 = arith.constant 3 : i32
    %125 = vector.broadcast %c3_i32 : i32 to vector<16x8x16xi32>
    %126 = arith.cmpi eq, %71, %125 : vector<16x8x16xi32>
    %127 = vector.broadcast %124 : vector<16x8x1xf32> to vector<16x8x16xf32>
    %128 = vector.broadcast %123 : vector<16x1x16xf32> to vector<16x8x16xf32>
    %129 = arith.mulf %127, %128 : vector<16x8x16xf32>
    %cst_6 = arith.constant 0.000000e+00 : f32
    %130 = vector.broadcast %cst_6 : f32 to vector<16x8x16xf32>
    %131 = arith.select %126, %130, %129 : vector<16x8x16xi1>, vector<16x8x16xf32>
    %132 = arith.subf %119, %131 : vector<16x8x16xf32>
    %133 = vector.shape_cast %123 : vector<16x1x16xf32> to vector<16x1x16xf32>
    %134 = vector.broadcast %133 : vector<16x1x16xf32> to vector<16x8x16xf32>
    %135 = arith.select %126, %134, %132 : vector<16x8x16xi1>, vector<16x8x16xf32>
    %136 = vector.extract_strided_slice %135 {offsets = [0, 4, 4], sizes = [16, 1, 1], strides = [1, 1, 1]} : vector<16x8x16xf32> to vector<16x1x1xf32>
    %137 = vector.extract_strided_slice %135 {offsets = [0, 4, 0], sizes = [16, 1, 16], strides = [1, 1, 1]} : vector<16x8x16xf32> to vector<16x1x16xf32>
    %138 = vector.broadcast %136 : vector<16x1x1xf32> to vector<16x1x16xf32>
    %139 = arith.divf %137, %138 : vector<16x1x16xf32>
    %140 = vector.extract_strided_slice %135 {offsets = [0, 0, 4], sizes = [16, 8, 1], strides = [1, 1, 1]} : vector<16x8x16xf32> to vector<16x8x1xf32>
    %c4_i32 = arith.constant 4 : i32
    %141 = vector.broadcast %c4_i32 : i32 to vector<16x8x16xi32>
    %142 = arith.cmpi eq, %71, %141 : vector<16x8x16xi32>
    %143 = vector.broadcast %140 : vector<16x8x1xf32> to vector<16x8x16xf32>
    %144 = vector.broadcast %139 : vector<16x1x16xf32> to vector<16x8x16xf32>
    %145 = arith.mulf %143, %144 : vector<16x8x16xf32>
    %cst_7 = arith.constant 0.000000e+00 : f32
    %146 = vector.broadcast %cst_7 : f32 to vector<16x8x16xf32>
    %147 = arith.select %142, %146, %145 : vector<16x8x16xi1>, vector<16x8x16xf32>
    %148 = arith.subf %135, %147 : vector<16x8x16xf32>
    %149 = vector.shape_cast %139 : vector<16x1x16xf32> to vector<16x1x16xf32>
    %150 = vector.broadcast %149 : vector<16x1x16xf32> to vector<16x8x16xf32>
    %151 = arith.select %142, %150, %148 : vector<16x8x16xi1>, vector<16x8x16xf32>
    %152 = vector.extract_strided_slice %151 {offsets = [0, 5, 5], sizes = [16, 1, 1], strides = [1, 1, 1]} : vector<16x8x16xf32> to vector<16x1x1xf32>
    %153 = vector.extract_strided_slice %151 {offsets = [0, 5, 0], sizes = [16, 1, 16], strides = [1, 1, 1]} : vector<16x8x16xf32> to vector<16x1x16xf32>
    %154 = vector.broadcast %152 : vector<16x1x1xf32> to vector<16x1x16xf32>
    %155 = arith.divf %153, %154 : vector<16x1x16xf32>
    %156 = vector.extract_strided_slice %151 {offsets = [0, 0, 5], sizes = [16, 8, 1], strides = [1, 1, 1]} : vector<16x8x16xf32> to vector<16x8x1xf32>
    %c5_i32 = arith.constant 5 : i32
    %157 = vector.broadcast %c5_i32 : i32 to vector<16x8x16xi32>
    %158 = arith.cmpi eq, %71, %157 : vector<16x8x16xi32>
    %159 = vector.broadcast %156 : vector<16x8x1xf32> to vector<16x8x16xf32>
    %160 = vector.broadcast %155 : vector<16x1x16xf32> to vector<16x8x16xf32>
    %161 = arith.mulf %159, %160 : vector<16x8x16xf32>
    %cst_8 = arith.constant 0.000000e+00 : f32
    %162 = vector.broadcast %cst_8 : f32 to vector<16x8x16xf32>
    %163 = arith.select %158, %162, %161 : vector<16x8x16xi1>, vector<16x8x16xf32>
    %164 = arith.subf %151, %163 : vector<16x8x16xf32>
    %165 = vector.shape_cast %155 : vector<16x1x16xf32> to vector<16x1x16xf32>
    %166 = vector.broadcast %165 : vector<16x1x16xf32> to vector<16x8x16xf32>
    %167 = arith.select %158, %166, %164 : vector<16x8x16xi1>, vector<16x8x16xf32>
    %168 = vector.extract_strided_slice %167 {offsets = [0, 6, 6], sizes = [16, 1, 1], strides = [1, 1, 1]} : vector<16x8x16xf32> to vector<16x1x1xf32>
    %169 = vector.extract_strided_slice %167 {offsets = [0, 6, 0], sizes = [16, 1, 16], strides = [1, 1, 1]} : vector<16x8x16xf32> to vector<16x1x16xf32>
    %170 = vector.broadcast %168 : vector<16x1x1xf32> to vector<16x1x16xf32>
    %171 = arith.divf %169, %170 : vector<16x1x16xf32>
    %172 = vector.extract_strided_slice %167 {offsets = [0, 0, 6], sizes = [16, 8, 1], strides = [1, 1, 1]} : vector<16x8x16xf32> to vector<16x8x1xf32>
    %c6_i32 = arith.constant 6 : i32
    %173 = vector.broadcast %c6_i32 : i32 to vector<16x8x16xi32>
    %174 = arith.cmpi eq, %71, %173 : vector<16x8x16xi32>
    %175 = vector.broadcast %172 : vector<16x8x1xf32> to vector<16x8x16xf32>
    %176 = vector.broadcast %171 : vector<16x1x16xf32> to vector<16x8x16xf32>
    %177 = arith.mulf %175, %176 : vector<16x8x16xf32>
    %cst_9 = arith.constant 0.000000e+00 : f32
    %178 = vector.broadcast %cst_9 : f32 to vector<16x8x16xf32>
    %179 = arith.select %174, %178, %177 : vector<16x8x16xi1>, vector<16x8x16xf32>
    %180 = arith.subf %167, %179 : vector<16x8x16xf32>
    %181 = vector.shape_cast %171 : vector<16x1x16xf32> to vector<16x1x16xf32>
    %182 = vector.broadcast %181 : vector<16x1x16xf32> to vector<16x8x16xf32>
    %183 = arith.select %174, %182, %180 : vector<16x8x16xi1>, vector<16x8x16xf32>
    %184 = vector.extract_strided_slice %183 {offsets = [0, 7, 7], sizes = [16, 1, 1], strides = [1, 1, 1]} : vector<16x8x16xf32> to vector<16x1x1xf32>
    %185 = vector.extract_strided_slice %183 {offsets = [0, 7, 0], sizes = [16, 1, 16], strides = [1, 1, 1]} : vector<16x8x16xf32> to vector<16x1x16xf32>
    %186 = vector.broadcast %184 : vector<16x1x1xf32> to vector<16x1x16xf32>
    %187 = arith.divf %185, %186 : vector<16x1x16xf32>
    %188 = vector.extract_strided_slice %183 {offsets = [0, 0, 7], sizes = [16, 8, 1], strides = [1, 1, 1]} : vector<16x8x16xf32> to vector<16x8x1xf32>
    %c7_i32 = arith.constant 7 : i32
    %189 = vector.broadcast %c7_i32 : i32 to vector<16x8x16xi32>
    %190 = arith.cmpi eq, %71, %189 : vector<16x8x16xi32>
    %191 = vector.broadcast %188 : vector<16x8x1xf32> to vector<16x8x16xf32>
    %192 = vector.broadcast %187 : vector<16x1x16xf32> to vector<16x8x16xf32>
    %193 = arith.mulf %191, %192 : vector<16x8x16xf32>
    %cst_10 = arith.constant 0.000000e+00 : f32
    %194 = vector.broadcast %cst_10 : f32 to vector<16x8x16xf32>
    %195 = arith.select %190, %194, %193 : vector<16x8x16xi1>, vector<16x8x16xf32>
    %196 = arith.subf %183, %195 : vector<16x8x16xf32>
    %197 = vector.shape_cast %187 : vector<16x1x16xf32> to vector<16x1x16xf32>
    %198 = vector.broadcast %197 : vector<16x1x16xf32> to vector<16x8x16xf32>
    %199 = arith.select %190, %198, %196 : vector<16x8x16xi1>, vector<16x8x16xf32>
    %200 = vector.extract_strided_slice %199 {offsets = [0, 0, 8], sizes = [16, 8, 8], strides = [1, 1, 1]} : vector<16x8x16xf32> to vector<16x8x8xf32>
    %c0_11 = arith.constant 0 : index
    %c0_12 = arith.constant 0 : index
    %c0_13 = arith.constant 0 : index
    %c0_14 = arith.constant 0 : index
    %201 = vector.load %arg2[%c0_11, %c0_12, %c0_13, %c0_14] : memref<1x16x8x8xf32, #tpu.memory_space<vmem>>, vector<1x16x8x8xf32>
    %202 = vector.shape_cast %201 : vector<1x16x8x8xf32> to vector<16x8x8xf32>
    %203 = vector.shape_cast %200 : vector<16x8x8xf32> to vector<1x16x8x8xf32>
    tpu.vector_store %arg2[%c0_11, %c0_12, %c0_13, %c0_14], %203 {strides = array<i32>} : memref<1x16x8x8xf32, #tpu.memory_space<vmem>>, vector<1x16x8x8xf32>,
    return
  }
  func.func @transform_0(%arg0: i32) -> (i32, i32, i32) {
    %c0_i32 = arith.constant 0 : i32
    %c0_i32_0 = arith.constant 0 : i32
    %c0_i32_1 = arith.constant 0 : i32
    return %arg0, %c0_i32, %c0_i32_0 : i32, i32, i32
  }
  func.func @transform_1(%arg0: i32) -> (i32, i32, i32, i32) {
    %c0_i32 = arith.constant 0 : i32
    %c0_i32_0 = arith.constant 0 : i32
    %c0_i32_1 = arith.constant 0 : i32
    %c0_i32_2 = arith.constant 0 : i32
    return %arg0, %c0_i32, %c0_i32_0, %c0_i32_1 : i32, i32, i32, i32
  }
}

module attributes {stable_mosaic.version = 11 : i64} {
  func.func @kernel(%arg0: i32, %arg1: memref<1x16x128xf32, #tpu.memory_space<vmem>>, %arg2: memref<1x128x128xf32, #tpu.memory_space<vmem>>, %arg3: memref<1x16x128xf32, #tpu.memory_space<vmem>>, %arg4: memref<1x128x128xf32, #tpu.memory_space<vmem>>, %arg5: memref<1x4x128xf32, #tpu.memory_space<vmem>>) attributes {dimension_semantics = [#tpu.dimension_semantics<parallel>], iteration_bounds = array<i64: 1>, scalar_prefetch = 0 : i64, scratch_operands = 0 : i64, tpu.core_type = #tpu.core_type<tc>, window_params = [{transform_indices = @transform_0, window_bounds = array<i64: 1, 16, 128>}, {transform_indices = @transform_1, window_bounds = array<i64: 1, 128, 128>}, {transform_indices = @transform_2, window_bounds = array<i64: 1, 16, 128>}, {transform_indices = @transform_3, window_bounds = array<i64: 1, 128, 128>}, {transform_indices = @transform_4, window_bounds = array<i64: 1, 4, 128>}]} {
    %c0 = arith.constant 0 : index
    %c0_0 = arith.constant 0 : index
    %c0_1 = arith.constant 0 : index
    %0 = vector.load %arg1[%c0, %c0_0, %c0_1] : memref<1x16x128xf32, #tpu.memory_space<vmem>>, vector<1x16x128xf32>
    %1 = vector.shape_cast %0 : vector<1x16x128xf32> to vector<16x128xf32>
    %c0_2 = arith.constant 0 : index
    %c0_3 = arith.constant 0 : index
    %c0_4 = arith.constant 0 : index
    %2 = vector.load %arg2[%c0_2, %c0_3, %c0_4] : memref<1x128x128xf32, #tpu.memory_space<vmem>>, vector<1x128x128xf32>
    %3 = vector.shape_cast %2 : vector<1x128x128xf32> to vector<128x128xf32>
    %4 = vector.extract_strided_slice %1 {offsets = [0, 0], sizes = [15, 128], strides = [1, 1]} : vector<16x128xf32> to vector<15x128xf32>
    %cst = arith.constant dense<0.000000e+00> : vector<15x128xf32>
    %5 = tpu.matmul %4, %3, %cst {dimension_numbers = #tpu.dot_dimension_numbers<[1], [0], [0], [1], [0, 0, 1, 1], [], []>} : vector<15x128xf32>, vector<128x128xf32>, vector<15x128xf32> -> vector<15x128xf32>
    %6 = vector.extract_strided_slice %1 {offsets = [0, 0], sizes = [1, 128], strides = [1, 1]} : vector<16x128xf32> to vector<1x128xf32>
    %7 = tpu.concatenate %6, %5 in 0 : vector<1x128xf32>, vector<15x128xf32> -> vector<16x128xf32>
    %c0_5 = arith.constant 0 : index
    %c0_6 = arith.constant 0 : index
    %c0_7 = arith.constant 0 : index
    %8 = vector.load %arg3[%c0_5, %c0_6, %c0_7] : memref<1x16x128xf32, #tpu.memory_space<vmem>>, vector<1x16x128xf32>
    %9 = vector.shape_cast %8 : vector<1x16x128xf32> to vector<16x128xf32>
    %10 = vector.shape_cast %7 : vector<16x128xf32> to vector<1x16x128xf32>
    tpu.vector_store %arg3[%c0_5, %c0_6, %c0_7], %10 {strides = array<i32>} : memref<1x16x128xf32, #tpu.memory_space<vmem>>, vector<1x16x128xf32>,
    %cst_8 = arith.constant dense<0.000000e+00> : vector<128x128xf32>
    %11 = tpu.matmul %3, %3, %cst_8 {dimension_numbers = #tpu.dot_dimension_numbers<[1], [0], [0], [1], [0, 0, 1, 1], [], []>} : vector<128x128xf32>, vector<128x128xf32>, vector<128x128xf32> -> vector<128x128xf32>
    %cst_9 = arith.constant dense<0.000000e+00> : vector<128x128xf32>
    %12 = tpu.matmul %11, %11, %cst_9 {dimension_numbers = #tpu.dot_dimension_numbers<[1], [0], [0], [1], [0, 0, 1, 1], [], []>} : vector<128x128xf32>, vector<128x128xf32>, vector<128x128xf32> -> vector<128x128xf32>
    %c0_10 = arith.constant 0 : index
    %c0_11 = arith.constant 0 : index
    %c0_12 = arith.constant 0 : index
    %13 = vector.load %arg4[%c0_10, %c0_11, %c0_12] : memref<1x128x128xf32, #tpu.memory_space<vmem>>, vector<1x128x128xf32>
    %14 = vector.shape_cast %13 : vector<1x128x128xf32> to vector<128x128xf32>
    %15 = vector.shape_cast %12 : vector<128x128xf32> to vector<1x128x128xf32>
    tpu.vector_store %arg4[%c0_10, %c0_11, %c0_12], %15 {strides = array<i32>} : memref<1x128x128xf32, #tpu.memory_space<vmem>>, vector<1x128x128xf32>,
    %16 = vector.extract_strided_slice %1 {offsets = [12, 0], sizes = [4, 128], strides = [1, 1]} : vector<16x128xf32> to vector<4x128xf32>
    %cst_13 = arith.constant dense<0.000000e+00> : vector<4x128xf32>
    %17 = tpu.matmul %16, %12, %cst_13 {dimension_numbers = #tpu.dot_dimension_numbers<[1], [0], [0], [1], [0, 0, 1, 1], [], []>} : vector<4x128xf32>, vector<128x128xf32>, vector<4x128xf32> -> vector<4x128xf32>
    %c0_14 = arith.constant 0 : index
    %c0_15 = arith.constant 0 : index
    %c0_16 = arith.constant 0 : index
    %18 = vector.load %arg5[%c0_14, %c0_15, %c0_16] : memref<1x4x128xf32, #tpu.memory_space<vmem>>, vector<1x4x128xf32>
    %19 = vector.shape_cast %18 : vector<1x4x128xf32> to vector<4x128xf32>
    %20 = vector.shape_cast %17 : vector<4x128xf32> to vector<1x4x128xf32>
    tpu.vector_store %arg5[%c0_14, %c0_15, %c0_16], %20 {strides = array<i32>} : memref<1x4x128xf32, #tpu.memory_space<vmem>>, vector<1x4x128xf32>,
    return
  }
  func.func @transform_0(%arg0: i32) -> (i32, i32, i32) {
    %c0_i32 = arith.constant 0 : i32
    %c0_i32_0 = arith.constant 0 : i32
    %c0_i32_1 = arith.constant 0 : i32
    return %arg0, %c0_i32, %c0_i32_0 : i32, i32, i32
  }
  func.func @transform_1(%arg0: i32) -> (i32, i32, i32) {
    %c0_i32 = arith.constant 0 : i32
    %c0_i32_0 = arith.constant 0 : i32
    %c0_i32_1 = arith.constant 0 : i32
    return %arg0, %c0_i32, %c0_i32_0 : i32, i32, i32
  }
  func.func @transform_2(%arg0: i32) -> (i32, i32, i32) {
    %c0_i32 = arith.constant 0 : i32
    %c0_i32_0 = arith.constant 0 : i32
    %c0_i32_1 = arith.constant 0 : i32
    return %arg0, %c0_i32, %c0_i32_0 : i32, i32, i32
  }
  func.func @transform_3(%arg0: i32) -> (i32, i32, i32) {
    %c0_i32 = arith.constant 0 : i32
    %c0_i32_0 = arith.constant 0 : i32
    %c0_i32_1 = arith.constant 0 : i32
    return %arg0, %c0_i32, %c0_i32_0 : i32, i32, i32
  }
  func.func @transform_4(%arg0: i32) -> (i32, i32, i32) {
    %c0_i32 = arith.constant 0 : i32
    %c0_i32_0 = arith.constant 0 : i32
    %c0_i32_1 = arith.constant 0 : i32
    return %arg0, %c0_i32, %c0_i32_0 : i32, i32, i32
  }
}

</mosaic_0001>

<llo_original>
// kernel: kp_layer_approx_forward.3
$region0: #{kp_layer_approx_forward.3}
  #allocation0 [shape = 'u32[]', space=smem, size = 0x4, offset = 0x4, fixed_abs, tag = 'smem constant byte address 0x4 - core index']
  #allocation1 [shape = 'u32[144,128]{1,0:T(1,128)}', space=vmem, size = 0x12000, scoped, tag = 'internal scratch']
  %s0 = inlined_call_operand.vmem [shape: f32[1,16,128], index: 0, kind: input, shape index: {}]
  %s1 = inlined_call_operand.vmem [shape: f32[1,128,128], index: 1, kind: input, shape index: {}]
  %s2 = inlined_call_operand.vmem [shape: f32[1,16,128], index: 2, kind: output, shape index: {0}]
  %s3 = inlined_call_operand.vmem [shape: f32[1,128,128], index: 3, kind: output, shape index: {1}]
  %s4 = inlined_call_operand.vmem [shape: f32[1,4,128], index: 4, kind: output, shape index: {2}]
  %5 = xla_tuple %s2, %s3, %s4
  %s6 = sld [smem:[#allocation0]]
  $region34: #{kp_layer_approx_forward.3} parent=0
    _
  %s8 = ssub.s32 1, %s6
  %s9 = scalar_select 0, %s8, %s6
  // Predicated region
  $region2: #{kp_layer_approx_forward.3} parent=0 // pred_check
    _
  $region3: #{kp_layer_approx_forward.3} parent=0 // pred_check_branch
    %11 = sbr.rel (0) target = $region5
  $region4: #{kp_layer_approx_forward.3} parent=0 // pred_region
    _
  $region5: #{kp_layer_approx_forward.3} parent=0 // pred_fallthru
    _
  // Predicated region
  $region6: #{kp_layer_approx_forward.3} parent=0 // pred_check
    _
  $region7: #{kp_layer_approx_forward.3} parent=0 // pred_check_branch
    %13 = sbr.rel (0) target = $region9
  $region8: #{kp_layer_approx_forward.3} parent=0 // pred_region
    _
  $region9: #{kp_layer_approx_forward.3} parent=0 // pred_fallthru
    _
  %v14 = vld [vmem:[%s0] sm:$0xff]
  %v15 = vld [vmem:[%s0 + $0x8] sm:$0xff]
  %v16 = vld [vmem:[%s1] sm:$0xff]
  %v17 = vld [vmem:[%s1 + $0x8] sm:$0xff]
  %v18 = vld [vmem:[%s1 + $0x10] sm:$0xff]
  %v19 = vld [vmem:[%s1 + $0x18] sm:$0xff]
  %v20 = vld [vmem:[%s1 + $0x20] sm:$0xff]
  %v21 = vld [vmem:[%s1 + $0x28] sm:$0xff]
  %v22 = vld [vmem:[%s1 + $0x30] sm:$0xff]
  %v23 = vld [vmem:[%s1 + $0x38] sm:$0xff]
  %v24 = vld [vmem:[%s1 + $0x40] sm:$0xff]
  %v25 = vld [vmem:[%s1 + $0x48] sm:$0xff]
  %v26 = vld [vmem:[%s1 + $0x50] sm:$0xff]
  %v27 = vld [vmem:[%s1 + $0x58] sm:$0xff]
  %v28 = vld [vmem:[%s1 + $0x60] sm:$0xff]
  %v29 = vld [vmem:[%s1 + $0x68] sm:$0xff]
  %v30 = vld [vmem:[%s1 + $0x70] sm:$0xff]
  %v31 = vld [vmem:[%s1 + $0x78] sm:$0xff]
  %32 = vmatprep.subr.mxu0 0.0
  %33 = vmatpush1.msra.mxu0 %v16
  %34 = vmatprep.subr.mxu0 0.0
  %35 = vmatpush1.msra.mxu0 %v17
  %36 = vmatprep.subr.mxu0 0.0
  %37 = vmatpush1.msra.mxu0 %v18
  %38 = vmatprep.subr.mxu0 0.0
  %39 = vmatpush1.msra.mxu0 %v19
  %40 = vmatprep.subr.mxu0 0.0
  %41 = vmatpush1.msra.mxu0 %v20
  %42 = vmatprep.subr.mxu0 0.0
  %43 = vmatpush1.msra.mxu0 %v21
  %44 = vmatprep.subr.mxu0 0.0
  %45 = vmatpush1.msra.mxu0 %v22
  %46 = vmatprep.subr.mxu0 0.0
  %47 = vmatpush1.msra.mxu0 %v23
  %48 = vmatprep.subr.mxu0 0.0
  %49 = vmatpush1.msra.mxu0 %v24
  %50 = vmatprep.subr.mxu0 0.0
  %51 = vmatpush1.msra.mxu0 %v25
  %52 = vmatprep.subr.mxu0 0.0
  %53 = vmatpush1.msra.mxu0 %v26
  %54 = vmatprep.subr.mxu0 0.0
  %55 = vmatpush1.msra.mxu0 %v27
  %56 = vmatprep.subr.mxu0 0.0
  %57 = vmatpush1.msra.mxu0 %v28
  %58 = vmatprep.subr.mxu0 0.0
  %59 = vmatpush1.msra.mxu0 %v29
  %60 = vmatprep.subr.mxu0 0.0
  %61 = vmatpush1.msra.mxu0 %v30
  %62 = vmatprep.subr.mxu0 0.0
  %63 = vmatpush1.msra.mxu0 %v31
  %64 = vmatprep.subr.mxu0 0.0
  %65 = vmatpush1.msra.mxu0 0.0
  %66 = vmatprep.subr.mxu0 0.0
  %67 = vmatpush1.msra.mxu0 0.0
  %68 = vmatprep.subr.mxu0 0.0
  %69 = vmatpush1.msra.mxu0 0.0
  %70 = vmatprep.subr.mxu0 0.0
  %71 = vmatpush1.msra.mxu0 0.0
  %72 = vmatprep.subr.mxu0 0.0
  %73 = vmatpush1.msra.mxu0 0.0
  %74 = vmatprep.subr.mxu0 0.0
  %75 = vmatpush1.msra.mxu0 0.0
  %76 = vmatprep.subr.mxu0 0.0
  %77 = vmatpush1.msra.mxu0 0.0
  %78 = vmatprep.subr.mxu0 0.0
  %79 = vmatpush1.msra.mxu0 0.0
  %80 = vmatprep.subr.mxu0 0.0
  %81 = vmatpush1.msra.mxu0 0.0
  %82 = vmatprep.subr.mxu0 0.0
  %83 = vmatpush1.msra.mxu0 0.0
  %84 = vmatprep.subr.mxu0 0.0
  %85 = vmatpush1.msra.mxu0 0.0
  %86 = vmatprep.subr.mxu0 0.0
  %87 = vmatpush1.msra.mxu0 0.0
  %88 = vmatprep.subr.mxu0 0.0
  %89 = vmatpush1.msra.mxu0 0.0
  %90 = vmatprep.subr.mxu0 0.0
  %91 = vmatpush1.msra.mxu0 0.0
  %92 = vmatprep.subr.mxu0 0.0
  %93 = vmatpush1.msra.mxu0 0.0
  %94 = vmatprep.subr.mxu0 0.0
  %95 = vmatpush1.msra.mxu0 0.0
  %96 = vmatprep.mubr.f32.mxu0 0.0
  %97 = vmatmul.mubr.f32.gmra.mrb[0].mxu0 %v14
  %v98 = vpop.f32.mrb[0].mxu0
  %v99 = vadd.f32 0.0, %v98
  %v100 = vpop.f32.mrb[0].mxu0
  %101 = vmatprep.mubr.f32.mxu0 0.0
  %102 = vmatmul.mubr.f32.gmra.mrb[0].mxu0 %v15
  %v103 = vpop.f32.mrb[0].mxu0
  %v104 = vadd.f32 0.0, %v103
  %v105 = vpop.f32.mrb[0].mxu0
  %106 = vdwg.mxu0
  %vm109 = vcmask 1040384
  %v110 = vrot.slane %v99, 7
  %v111 = vrot.slane %v104, 7
  %v112 = vsel %vm109, %v110, %v111
  %v115 = vsel %vm109, %v14, %v110
  %116 = vst [vmem:[%s2] sm:$0xff] %v115
  %117 = vst [vmem:[%s2 + $0x8] sm:$0xff] %v112
  %118 = vmatprep.subr.mxu0 0.0
  %119 = vmatpush1.msra.mxu0 %v16
  %120 = vmatprep.subr.mxu0 0.0
  %121 = vmatpush1.msra.mxu0 %v17
  %122 = vmatprep.subr.mxu0 0.0
  %123 = vmatpush1.msra.mxu0 %v18
  %124 = vmatprep.subr.mxu0 0.0
  %125 = vmatpush1.msra.mxu0 %v19
  %126 = vmatprep.subr.mxu0 0.0
  %127 = vmatpush1.msra.mxu0 %v20
  %128 = vmatprep.subr.mxu0 0.0
  %129 = vmatpush1.msra.mxu0 %v21
  %130 = vmatprep.subr.mxu0 0.0
  %131 = vmatpush1.msra.mxu0 %v22
  %132 = vmatprep.subr.mxu0 0.0
  %133 = vmatpush1.msra.mxu0 %v23
  %134 = vmatprep.subr.mxu0 0.0
  %135 = vmatpush1.msra.mxu0 %v24
  %136 = vmatprep.subr.mxu0 0.0
  %137 = vmatpush1.msra.mxu0 %v25
  %138 = vmatprep.subr.mxu0 0.0
  %139 = vmatpush1.msra.mxu0 %v26
  %140 = vmatprep.subr.mxu0 0.0
  %141 = vmatpush1.msra.mxu0 %v27
  %142 = vmatprep.subr.mxu0 0.0
  %143 = vmatpush1.msra.mxu0 %v28
  %144 = vmatprep.subr.mxu0 0.0
  %145 = vmatpush1.msra.mxu0 %v29
  %146 = vmatprep.subr.mxu0 0.0
  %147 = vmatpush1.msra.mxu0 %v30
  %148 = vmatprep.subr.mxu0 0.0
  %149 = vmatpush1.msra.mxu0 %v31
  %150 = vmatprep.subr.mxu0 0.0
  %151 = vmatpush1.msra.mxu0 0.0
  %152 = vmatprep.subr.mxu0 0.0
  %153 = vmatpush1.msra.mxu0 0.0
  %154 = vmatprep.subr.mxu0 0.0
  %155 = vmatpush1.msra.mxu0 0.0
  %156 = vmatprep.subr.mxu0 0.0
  %157 = vmatpush1.msra.mxu0 0.0
  %158 = vmatprep.subr.mxu0 0.0
  %159 = vmatpush1.msra.mxu0 0.0
  %160 = vmatprep.subr.mxu0 0.0
  %161 = vmatpush1.msra.mxu0 0.0
  %162 = vmatprep.subr.mxu0 0.0
  %163 = vmatpush1.msra.mxu0 0.0
  %164 = vmatprep.subr.mxu0 0.0
  %165 = vmatpush1.msra.mxu0 0.0
  %166 = vmatprep.subr.mxu0 0.0
  %167 = vmatpush1.msra.mxu0 0.0
  %168 = vmatprep.subr.mxu0 0.0
  %169 = vmatpush1.msra.mxu0 0.0
  %170 = vmatprep.subr.mxu0 0.0
  %171 = vmatpush1.msra.mxu0 0.0
  %172 = vmatprep.subr.mxu0 0.0
  %173 = vmatpush1.msra.mxu0 0.0
  %174 = vmatprep.subr.mxu0 0.0
  %175 = vmatpush1.msra.mxu0 0.0
  %176 = vmatprep.subr.mxu0 0.0
  %177 = vmatpush1.msra.mxu0 0.0
  %178 = vmatprep.subr.mxu0 0.0
  %179 = vmatpush1.msra.mxu0 0.0
  %180 = vmatprep.subr.mxu0 0.0
  %181 = vmatpush1.msra.mxu0 0.0
  %182 = vmatprep.mubr.f32.mxu0 0.0
  %183 = vmatmul.mubr.f32.gmra.mrb[0].mxu0 %v16
  %v184 = vpop.f32.mrb[0].mxu0
  %v185 = vadd.f32 0.0, %v184
  %v186 = vpop.f32.mrb[0].mxu0
  %187 = vmatprep.mubr.f32.mxu0 0.0
  %188 = vmatmul.mubr.f32.gmra.mrb[0].mxu0 %v17
  %v189 = vpop.f32.mrb[0].mxu0
  %v190 = vadd.f32 0.0, %v189
  %v191 = vpop.f32.mrb[0].mxu0
  %192 = vmatprep.mubr.f32.mxu0 0.0
  %193 = vmatmul.mubr.f32.gmra.mrb[0].mxu0 %v18
  %v194 = vpop.f32.mrb[0].mxu0
  %v195 = vadd.f32 0.0, %v194
  %v196 = vpop.f32.mrb[0].mxu0
  %197 = vmatprep.mubr.f32.mxu0 0.0
  %198 = vmatmul.mubr.f32.gmra.mrb[0].mxu0 %v19
  %v199 = vpop.f32.mrb[0].mxu0
  %v200 = vadd.f32 0.0, %v199
  %v201 = vpop.f32.mrb[0].mxu0
  %202 = vmatprep.mubr.f32.mxu0 0.0
  %203 = vmatmul.mubr.f32.gmra.mrb[0].mxu0 %v20
  %v204 = vpop.f32.mrb[0].mxu0
  %v205 = vadd.f32 0.0, %v204
  %v206 = vpop.f32.mrb[0].mxu0
  %207 = vmatprep.mubr.f32.mxu0 0.0
  %208 = vmatmul.mubr.f32.gmra.mrb[0].mxu0 %v21
  %v209 = vpop.f32.mrb[0].mxu0
  %v210 = vadd.f32 0.0, %v209
  %v211 = vpop.f32.mrb[0].mxu0
  %212 = vmatprep.mubr.f32.mxu0 0.0
  %213 = vmatmul.mubr.f32.gmra.mrb[0].mxu0 %v22
  %v214 = vpop.f32.mrb[0].mxu0
  %v215 = vadd.f32 0.0, %v214
  %v216 = vpop.f32.mrb[0].mxu0
  %217 = vmatprep.mubr.f32.mxu0 0.0
  %218 = vmatmul.mubr.f32.gmra.mrb[0].mxu0 %v23
  %v219 = vpop.f32.mrb[0].mxu0
  %v220 = vadd.f32 0.0, %v219
  %v221 = vpop.f32.mrb[0].mxu0
  %222 = vmatprep.mubr.f32.mxu0 0.0
  %223 = vmatmul.mubr.f32.gmra.mrb[0].mxu0 %v24
  %v224 = vpop.f32.mrb[0].mxu0
  %v225 = vadd.f32 0.0, %v224
  %v226 = vpop.f32.mrb[0].mxu0
  %227 = vmatprep.mubr.f32.mxu0 0.0
  %228 = vmatmul.mubr.f32.gmra.mrb[0].mxu0 %v25
  %v229 = vpop.f32.mrb[0].mxu0
  %v230 = vadd.f32 0.0, %v229
  %v231 = vpop.f32.mrb[0].mxu0
  %232 = vmatprep.mubr.f32.mxu0 0.0
  %233 = vmatmul.mubr.f32.gmra.mrb[0].mxu0 %v26
  %v234 = vpop.f32.mrb[0].mxu0
  %v235 = vadd.f32 0.0, %v234
  %v236 = vpop.f32.mrb[0].mxu0
  %237 = vmatprep.mubr.f32.mxu0 0.0
  %238 = vmatmul.mubr.f32.gmra.mrb[0].mxu0 %v27
  %v239 = vpop.f32.mrb[0].mxu0
  %v240 = vadd.f32 0.0, %v239
  %v241 = vpop.f32.mrb[0].mxu0
  %242 = vmatprep.mubr.f32.mxu0 0.0
  %243 = vmatmul.mubr.f32.gmra.mrb[0].mxu0 %v28
  %v244 = vpop.f32.mrb[0].mxu0
  %v245 = vadd.f32 0.0, %v244
  %v246 = vpop.f32.mrb[0].mxu0
  %247 = vmatprep.mubr.f32.mxu0 0.0
  %248 = vmatmul.mubr.f32.gmra.mrb[0].mxu0 %v29
  %v249 = vpop.f32.mrb[0].mxu0
  %v250 = vadd.f32 0.0, %v249
  %v251 = vpop.f32.mrb[0].mxu0
  %252 = vmatprep.mubr.f32.mxu0 0.0
  %253 = vmatmul.mubr.f32.gmra.mrb[0].mxu0 %v30
  %v254 = vpop.f32.mrb[0].mxu0
  %v255 = vadd.f32 0.0, %v254
  %v256 = vpop.f32.mrb[0].mxu0
  %257 = vmatprep.mubr.f32.mxu0 0.0
  %258 = vmatmul.mubr.f32.gmra.mrb[0].mxu0 %v31
  %v259 = vpop.f32.mrb[0].mxu0
  %v260 = vadd.f32 0.0, %v259
  %v261 = vpop.f32.mrb[0].mxu0
  %262 = vdwg.mxu0
  %263 = vmatprep.subr.mxu0 0.0
  %264 = vmatpush1.msra.mxu0 %v185
  %265 = vmatprep.subr.mxu0 0.0
  %266 = vmatpush1.msra.mxu0 %v190
  %267 = vmatprep.subr.mxu0 0.0
  %268 = vmatpush1.msra.mxu0 %v195
  %269 = vmatprep.subr.mxu0 0.0
  %270 = vmatpush1.msra.mxu0 %v200
  %271 = vmatprep.subr.mxu0 0.0
  %272 = vmatpush1.msra.mxu0 %v205
  %273 = vmatprep.subr.mxu0 0.0
  %274 = vmatpush1.msra.mxu0 %v210
  %275 = vmatprep.subr.mxu0 0.0
  %276 = vmatpush1.msra.mxu0 %v215
  %277 = vmatprep.subr.mxu0 0.0
  %278 = vmatpush1.msra.mxu0 %v220
  %279 = vmatprep.subr.mxu0 0.0
  %280 = vmatpush1.msra.mxu0 %v225
  %281 = vmatprep.subr.mxu0 0.0
  %282 = vmatpush1.msra.mxu0 %v230
  %283 = vmatprep.subr.mxu0 0.0
  %284 = vmatpush1.msra.mxu0 %v235
  %285 = vmatprep.subr.mxu0 0.0
  %286 = vmatpush1.msra.mxu0 %v240
  %287 = vmatprep.subr.mxu0 0.0
  %288 = vmatpush1.msra.mxu0 %v245
  %289 = vmatprep.subr.mxu0 0.0
  %290 = vmatpush1.msra.mxu0 %v250
  %291 = vmatprep.subr.mxu0 0.0
  %292 = vmatpush1.msra.mxu0 %v255
  %293 = vmatprep.subr.mxu0 0.0
  %294 = vmatpush1.msra.mxu0 %v260
  %295 = vmatprep.subr.mxu0 0.0
  %296 = vmatpush1.msra.mxu0 0.0
  %297 = vmatprep.subr.mxu0 0.0
  %298 = vmatpush1.msra.mxu0 0.0
  %299 = vmatprep.subr.mxu0 0.0
  %300 = vmatpush1.msra.mxu0 0.0
  %301 = vmatprep.subr.mxu0 0.0
  %302 = vmatpush1.msra.mxu0 0.0
  %303 = vmatprep.subr.mxu0 0.0
  %304 = vmatpush1.msra.mxu0 0.0
  %305 = vmatprep.subr.mxu0 0.0
  %306 = vmatpush1.msra.mxu0 0.0
  %307 = vmatprep.subr.mxu0 0.0
  %308 = vmatpush1.msra.mxu0 0.0
  %309 = vmatprep.subr.mxu0 0.0
  %310 = vmatpush1.msra.mxu0 0.0
  %311 = vmatprep.subr.mxu0 0.0
  %312 = vmatpush1.msra.mxu0 0.0
  %313 = vmatprep.subr.mxu0 0.0
  %314 = vmatpush1.msra.mxu0 0.0
  %315 = vmatprep.subr.mxu0 0.0
  %316 = vmatpush1.msra.mxu0 0.0
  %317 = vmatprep.subr.mxu0 0.0
  %318 = vmatpush1.msra.mxu0 0.0
  %319 = vmatprep.subr.mxu0 0.0
  %320 = vmatpush1.msra.mxu0 0.0
  %321 = vmatprep.subr.mxu0 0.0
  %322 = vmatpush1.msra.mxu0 0.0
  %323 = vmatprep.subr.mxu0 0.0
  %324 = vmatpush1.msra.mxu0 0.0
  %325 = vmatprep.subr.mxu0 0.0
  %326 = vmatpush1.msra.mxu0 0.0
  %327 = vmatprep.mubr.f32.mxu0 0.0
  %328 = vmatmul.mubr.f32.gmra.mrb[0].mxu0 %v185
  %v329 = vpop.f32.mrb[0].mxu0
  %v330 = vadd.f32 0.0, %v329
  %v331 = vpop.f32.mrb[0].mxu0
  %332 = vmatprep.mubr.f32.mxu0 0.0
  %333 = vmatmul.mubr.f32.gmra.mrb[0].mxu0 %v190
  %v334 = vpop.f32.mrb[0].mxu0
  %v335 = vadd.f32 0.0, %v334
  %v336 = vpop.f32.mrb[0].mxu0
  %337 = vmatprep.mubr.f32.mxu0 0.0
  %338 = vmatmul.mubr.f32.gmra.mrb[0].mxu0 %v195
  %v339 = vpop.f32.mrb[0].mxu0
  %v340 = vadd.f32 0.0, %v339
  %v341 = vpop.f32.mrb[0].mxu0
  %342 = vmatprep.mubr.f32.mxu0 0.0
  %343 = vmatmul.mubr.f32.gmra.mrb[0].mxu0 %v200
  %v344 = vpop.f32.mrb[0].mxu0
  %v345 = vadd.f32 0.0, %v344
  %v346 = vpop.f32.mrb[0].mxu0
  %347 = vmatprep.mubr.f32.mxu0 0.0
  %348 = vmatmul.mubr.f32.gmra.mrb[0].mxu0 %v205
  %v349 = vpop.f32.mrb[0].mxu0
  %v350 = vadd.f32 0.0, %v349
  %v351 = vpop.f32.mrb[0].mxu0
  %352 = vmatprep.mubr.f32.mxu0 0.0
  %353 = vmatmul.mubr.f32.gmra.mrb[0].mxu0 %v210
  %v354 = vpop.f32.mrb[0].mxu0
  %v355 = vadd.f32 0.0, %v354
  %v356 = vpop.f32.mrb[0].mxu0
  %357 = vmatprep.mubr.f32.mxu0 0.0
  %358 = vmatmul.mubr.f32.gmra.mrb[0].mxu0 %v215
  %v359 = vpop.f32.mrb[0].mxu0
  %v360 = vadd.f32 0.0, %v359
  %v361 = vpop.f32.mrb[0].mxu0
  %362 = vmatprep.mubr.f32.mxu0 0.0
  %363 = vmatmul.mubr.f32.gmra.mrb[0].mxu0 %v220
  %v364 = vpop.f32.mrb[0].mxu0
  %v365 = vadd.f32 0.0, %v364
  %v366 = vpop.f32.mrb[0].mxu0
  %367 = vmatprep.mubr.f32.mxu0 0.0
  %368 = vmatmul.mubr.f32.gmra.mrb[0].mxu0 %v225
  %v369 = vpop.f32.mrb[0].mxu0
  %v370 = vadd.f32 0.0, %v369
  %v371 = vpop.f32.mrb[0].mxu0
  %372 = vmatprep.mubr.f32.mxu0 0.0
  %373 = vmatmul.mubr.f32.gmra.mrb[0].mxu0 %v230
  %v374 = vpop.f32.mrb[0].mxu0
  %v375 = vadd.f32 0.0, %v374
  %v376 = vpop.f32.mrb[0].mxu0
  %377 = vmatprep.mubr.f32.mxu0 0.0
  %378 = vmatmul.mubr.f32.gmra.mrb[0].mxu0 %v235
  %v379 = vpop.f32.mrb[0].mxu0
  %v380 = vadd.f32 0.0, %v379
  %v381 = vpop.f32.mrb[0].mxu0
  %382 = vmatprep.mubr.f32.mxu0 0.0
  %383 = vmatmul.mubr.f32.gmra.mrb[0].mxu0 %v240
  %v384 = vpop.f32.mrb[0].mxu0
  %v385 = vadd.f32 0.0, %v384
  %v386 = vpop.f32.mrb[0].mxu0
  %387 = vmatprep.mubr.f32.mxu0 0.0
  %388 = vmatmul.mubr.f32.gmra.mrb[0].mxu0 %v245
  %v389 = vpop.f32.mrb[0].mxu0
  %v390 = vadd.f32 0.0, %v389
  %v391 = vpop.f32.mrb[0].mxu0
  %392 = vmatprep.mubr.f32.mxu0 0.0
  %393 = vmatmul.mubr.f32.gmra.mrb[0].mxu0 %v250
  %v394 = vpop.f32.mrb[0].mxu0
  %v395 = vadd.f32 0.0, %v394
  %v396 = vpop.f32.mrb[0].mxu0
  %397 = vmatprep.mubr.f32.mxu0 0.0
  %398 = vmatmul.mubr.f32.gmra.mrb[0].mxu0 %v255
  %v399 = vpop.f32.mrb[0].mxu0
  %v400 = vadd.f32 0.0, %v399
  %v401 = vpop.f32.mrb[0].mxu0
  %402 = vmatprep.mubr.f32.mxu0 0.0
  %403 = vmatmul.mubr.f32.gmra.mrb[0].mxu0 %v260
  %v404 = vpop.f32.mrb[0].mxu0
  %v405 = vadd.f32 0.0, %v404
  %v406 = vpop.f32.mrb[0].mxu0
  %407 = vdwg.mxu0
  %408 = vst [vmem:[%s3] sm:$0xff] %v330
  %409 = vst [vmem:[%s3 + $0x8] sm:$0xff] %v335
  %410 = vst [vmem:[%s3 + $0x10] sm:$0xff] %v340
  %411 = vst [vmem:[%s3 + $0x18] sm:$0xff] %v345
  %412 = vst [vmem:[%s3 + $0x20] sm:$0xff] %v350
  %413 = vst [vmem:[%s3 + $0x28] sm:$0xff] %v355
  %414 = vst [vmem:[%s3 + $0x30] sm:$0xff] %v360
  %415 = vst [vmem:[%s3 + $0x38] sm:$0xff] %v365
  %416 = vst [vmem:[%s3 + $0x40] sm:$0xff] %v370
  %417 = vst [vmem:[%s3 + $0x48] sm:$0xff] %v375
  %418 = vst [vmem:[%s3 + $0x50] sm:$0xff] %v380
  %419 = vst [vmem:[%s3 + $0x58] sm:$0xff] %v385
  %420 = vst [vmem:[%s3 + $0x60] sm:$0xff] %v390
  %421 = vst [vmem:[%s3 + $0x68] sm:$0xff] %v395
  %422 = vst [vmem:[%s3 + $0x70] sm:$0xff] %v400
  %423 = vst [vmem:[%s3 + $0x78] sm:$0xff] %v405
  %v425 = vrot.slane %v15, 4
  %427 = vmatprep.subr.mxu0 0.0
  %428 = vmatpush1.msra.mxu0 %v330
  %429 = vmatprep.subr.mxu0 0.0
  %430 = vmatpush1.msra.mxu0 %v335
  %431 = vmatprep.subr.mxu0 0.0
  %432 = vmatpush1.msra.mxu0 %v340
  %433 = vmatprep.subr.mxu0 0.0
  %434 = vmatpush1.msra.mxu0 %v345
  %435 = vmatprep.subr.mxu0 0.0
  %436 = vmatpush1.msra.mxu0 %v350
  %437 = vmatprep.subr.mxu0 0.0
  %438 = vmatpush1.msra.mxu0 %v355
  %439 = vmatprep.subr.mxu0 0.0
  %440 = vmatpush1.msra.mxu0 %v360
  %441 = vmatprep.subr.mxu0 0.0
  %442 = vmatpush1.msra.mxu0 %v365
  %443 = vmatprep.subr.mxu0 0.0
  %444 = vmatpush1.msra.mxu0 %v370
  %445 = vmatprep.subr.mxu0 0.0
  %446 = vmatpush1.msra.mxu0 %v375
  %447 = vmatprep.subr.mxu0 0.0
  %448 = vmatpush1.msra.mxu0 %v380
  %449 = vmatprep.subr.mxu0 0.0
  %450 = vmatpush1.msra.mxu0 %v385
  %451 = vmatprep.subr.mxu0 0.0
  %452 = vmatpush1.msra.mxu0 %v390
  %453 = vmatprep.subr.mxu0 0.0
  %454 = vmatpush1.msra.mxu0 %v395
  %455 = vmatprep.subr.mxu0 0.0
  %456 = vmatpush1.msra.mxu0 %v400
  %457 = vmatprep.subr.mxu0 0.0
  %458 = vmatpush1.msra.mxu0 %v405
  %459 = vmatprep.subr.mxu0 0.0
  %460 = vmatpush1.msra.mxu0 0.0
  %461 = vmatprep.subr.mxu0 0.0
  %462 = vmatpush1.msra.mxu0 0.0
  %463 = vmatprep.subr.mxu0 0.0
  %464 = vmatpush1.msra.mxu0 0.0
  %465 = vmatprep.subr.mxu0 0.0
  %466 = vmatpush1.msra.mxu0 0.0
  %467 = vmatprep.subr.mxu0 0.0
  %468 = vmatpush1.msra.mxu0 0.0
  %469 = vmatprep.subr.mxu0 0.0
  %470 = vmatpush1.msra.mxu0 0.0
  %471 = vmatprep.subr.mxu0 0.0
  %472 = vmatpush1.msra.mxu0 0.0
  %473 = vmatprep.subr.mxu0 0.0
  %474 = vmatpush1.msra.mxu0 0.0
  %475 = vmatprep.subr.mxu0 0.0
  %476 = vmatpush1.msra.mxu0 0.0
  %477 = vmatprep.subr.mxu0 0.0
  %478 = vmatpush1.msra.mxu0 0.0
  %479 = vmatprep.subr.mxu0 0.0
  %480 = vmatpush1.msra.mxu0 0.0
  %481 = vmatprep.subr.mxu0 0.0
  %482 = vmatpush1.msra.mxu0 0.0
  %483 = vmatprep.subr.mxu0 0.0
  %484 = vmatpush1.msra.mxu0 0.0
  %485 = vmatprep.subr.mxu0 0.0
  %486 = vmatpush1.msra.mxu0 0.0
  %487 = vmatprep.subr.mxu0 0.0
  %488 = vmatpush1.msra.mxu0 0.0
  %489 = vmatprep.subr.mxu0 0.0
  %490 = vmatpush1.msra.mxu0 0.0
  %491 = vmatprep.mubr.f32.mxu0 0.0
  %492 = vmatmul.mubr.f32.gmra.mrb[0].mxu0 %v425
  %v493 = vpop.f32.mrb[0].mxu0
  %v494 = vadd.f32 0.0, %v493
  %v495 = vpop.f32.mrb[0].mxu0
  %496 = vdwg.mxu0
  %497 = vst [vmem:[%s4] sm:$0xf] %v494
  // Predicated region
  $region10: #{kp_layer_approx_forward.3} parent=0 // pred_check
    _
  $region11: #{kp_layer_approx_forward.3} parent=0 // pred_check_branch
    %499 = sbr.rel (0) target = $region13
  $region12: #{kp_layer_approx_forward.3} parent=0 // pred_region
    _
  $region13: #{kp_layer_approx_forward.3} parent=0 // pred_fallthru
    _
  // Predicated region
  $region14: #{kp_layer_approx_forward.3} parent=0 // pred_check
    _
  $region15: #{kp_layer_approx_forward.3} parent=0 // pred_check_branch
    %501 = sbr.rel (0) target = $region17
  $region16: #{kp_layer_approx_forward.3} parent=0 // pred_region
    _
  $region17: #{kp_layer_approx_forward.3} parent=0 // pred_fallthru
    _
  // Predicated region
  $region18: #{kp_layer_approx_forward.3} parent=0 // pred_check
    _
  $region19: #{kp_layer_approx_forward.3} parent=0 // pred_check_branch
    %503 = sbr.rel (0) target = $region21
  $region20: #{kp_layer_approx_forward.3} parent=0 // pred_region
    _
  $region21: #{kp_layer_approx_forward.3} parent=0 // pred_fallthru
    _
  // Predicated region
  $region22: #{kp_layer_approx_forward.3} parent=0 // pred_check
    _
  $region23: #{kp_layer_approx_forward.3} parent=0 // pred_check_branch
    %505 = sbr.rel (0) target = $region25
  $region24: #{kp_layer_approx_forward.3} parent=0 // pred_region
    _
  $region25: #{kp_layer_approx_forward.3} parent=0 // pred_fallthru
    _
  // Predicated region
  $region26: #{kp_layer_approx_forward.3} parent=0 // pred_check
    _
  $region27: #{kp_layer_approx_forward.3} parent=0 // pred_check_branch
    %507 = sbr.rel (0) target = $region29
  $region28: #{kp_layer_approx_forward.3} parent=0 // pred_region
    _
  $region29: #{kp_layer_approx_forward.3} parent=0 // pred_fallthru
    _
  // Predicated region
  $region30: #{kp_layer_approx_forward.3} parent=0 // pred_check
    _
  $region31: #{kp_layer_approx_forward.3} parent=0 // pred_check_branch
    %509 = sbr.rel (0) target = $region33
  $region32: #{kp_layer_approx_forward.3} parent=0 // pred_region
    _
  $region33: #{kp_layer_approx_forward.3} parent=0 // pred_fallthru
    _

// kernel: kp_layer_approx_forward.2
$region0: #{kp_layer_approx_forward.2}
  #allocation0 [shape = 'u32[]', space=smem, size = 0x4, offset = 0x4, fixed_abs, tag = 'smem constant byte address 0x4 - core index']
  #allocation1 [shape = 'u32[144,128]{1,0:T(1,128)}', space=vmem, size = 0x12000, scoped, tag = 'internal scratch']
  %s0 = inlined_call_operand.vmem [shape: f32[1,16,128], index: 0, kind: input, shape index: {}]
  %s1 = inlined_call_operand.vmem [shape: f32[1,16,8,8], index: 1, kind: output, shape index: {}]
  %s2 = sld [smem:[#allocation0]]
  $region14: #{kp_layer_approx_forward.2} parent=0
    _
  %s4 = ssub.s32 1, %s2
  %s5 = scalar_select 0, %s4, %s2
  // Predicated region
  $region2: #{kp_layer_approx_forward.2} parent=0 // pred_check
    _
  $region3: #{kp_layer_approx_forward.2} parent=0 // pred_check_branch
    %7 = sbr.rel (0) target = $region5
  $region4: #{kp_layer_approx_forward.2} parent=0 // pred_region
    _
  $region5: #{kp_layer_approx_forward.2} parent=0 // pred_fallthru
    _
  %v8 = vld [vmem:[%s0] sm:$0xff]
  %v9 = vld [vmem:[%s0 + $0x8] sm:$0xff]
  %10 = vxpose.xlu0.b32.start [1/16] %v8, 128
  %11 = vxpose.xlu0.b32.cont [2/16] %v9, 128
  %12 = vxpose.xlu0.b32.cont [3/16] 0.0, 128
  %13 = vxpose.xlu0.b32.cont [4/16] 0.0, 128
  %14 = vxpose.xlu0.b32.cont [5/16] 0.0, 128
  %15 = vxpose.xlu0.b32.cont [6/16] 0.0, 128
  %16 = vxpose.xlu0.b32.cont [7/16] 0.0, 128
  %17 = vxpose.xlu0.b32.cont [8/16] 0.0, 128
  %18 = vxpose.xlu0.b32.cont [9/16] 0.0, 128
  %19 = vxpose.xlu0.b32.cont [10/16] 0.0, 128
  %20 = vxpose.xlu0.b32.cont [11/16] 0.0, 128
  %21 = vxpose.xlu0.b32.cont [12/16] 0.0, 128
  %22 = vxpose.xlu0.b32.cont [13/16] 0.0, 128
  %23 = vxpose.xlu0.b32.cont [14/16] 0.0, 128
  %24 = vxpose.xlu0.b32.cont [15/16] 0.0, 128
  %25 = vxpose.xlu0.b32.end [16/16] 0.0, 128
  %v26 = vpop.trf.xlu0
  %v27 = vpop.trf.xlu0
  %v28 = vpop.trf.xlu0
  %v29 = vpop.trf.xlu0
  %v30 = vpop.trf.xlu0
  %v31 = vpop.trf.xlu0
  %v32 = vpop.trf.xlu0
  %v33 = vpop.trf.xlu0
  %v34 = vpop.trf.xlu0
  %v35 = vpop.trf.xlu0
  %v36 = vpop.trf.xlu0
  %v37 = vpop.trf.xlu0
  %v38 = vpop.trf.xlu0
  %v39 = vpop.trf.xlu0
  %v40 = vpop.trf.xlu0
  %v41 = vpop.trf.xlu0
  %vm42 = vcmask 121856
  %v44 = vsel %vm42, %v26, 0
  %v47 = vsel %vm42, %v27, 0
  %v50 = vsel %vm42, %v28, 0
  %v53 = vsel %vm42, %v29, 0
  %v56 = vsel %vm42, %v30, 0
  %v59 = vsel %vm42, %v31, 0
  %v62 = vsel %vm42, %v32, 0
  %v65 = vsel %vm42, %v33, 0
  %v68 = vsel %vm42, %v34, 0
  %v71 = vsel %vm42, %v35, 0
  %v74 = vsel %vm42, %v36, 0
  %v77 = vsel %vm42, %v37, 0
  %v80 = vsel %vm42, %v38, 0
  %v83 = vsel %vm42, %v39, 0
  %v86 = vsel %vm42, %v40, 0
  %v89 = vsel %vm42, %v41, 0
  %vm91 = vcmask 1046528
  %v93 = vsel %vm91, %v9, 0
  %95 = vmatprep.subr.mxu0 0.0
  %96 = vmatpush1.msra.mxu0 %v8
  %97 = vmatprep.subr.mxu0 0.0
  %98 = vmatpush1.msra.mxu0 %v93
  %99 = vmatprep.subr.mxu0 0.0
  %100 = vmatpush1.msra.mxu0 0.0
  %101 = vmatprep.subr.mxu0 0.0
  %102 = vmatpush1.msra.mxu0 0.0
  %103 = vmatprep.subr.mxu0 0.0
  %104 = vmatpush1.msra.mxu0 0.0
  %105 = vmatprep.subr.mxu0 0.0
  %106 = vmatpush1.msra.mxu0 0.0
  %107 = vmatprep.subr.mxu0 0.0
  %108 = vmatpush1.msra.mxu0 0.0
  %109 = vmatprep.subr.mxu0 0.0
  %110 = vmatpush1.msra.mxu0 0.0
  %111 = vmatprep.subr.mxu0 0.0
  %112 = vmatpush1.msra.mxu0 0.0
  %113 = vmatprep.subr.mxu0 0.0
  %114 = vmatpush1.msra.mxu0 0.0
  %115 = vmatprep.subr.mxu0 0.0
  %116 = vmatpush1.msra.mxu0 0.0
  %117 = vmatprep.subr.mxu0 0.0
  %118 = vmatpush1.msra.mxu0 0.0
  %119 = vmatprep.subr.mxu0 0.0
  %120 = vmatpush1.msra.mxu0 0.0
  %121 = vmatprep.subr.mxu0 0.0
  %122 = vmatpush1.msra.mxu0 0.0
  %123 = vmatprep.subr.mxu0 0.0
  %124 = vmatpush1.msra.mxu0 0.0
  %125 = vmatprep.subr.mxu0 0.0
  %126 = vmatpush1.msra.mxu0 0.0
  %127 = vmatprep.subr.mxu0 0.0
  %128 = vmatpush1.msra.mxu0 0.0
  %129 = vmatprep.subr.mxu0 0.0
  %130 = vmatpush1.msra.mxu0 0.0
  %131 = vmatprep.subr.mxu0 0.0
  %132 = vmatpush1.msra.mxu0 0.0
  %133 = vmatprep.subr.mxu0 0.0
  %134 = vmatpush1.msra.mxu0 0.0
  %135 = vmatprep.subr.mxu0 0.0
  %136 = vmatpush1.msra.mxu0 0.0
  %137 = vmatprep.subr.mxu0 0.0
  %138 = vmatpush1.msra.mxu0 0.0
  %139 = vmatprep.subr.mxu0 0.0
  %140 = vmatpush1.msra.mxu0 0.0
  %141 = vmatprep.subr.mxu0 0.0
  %142 = vmatpush1.msra.mxu0 0.0
  %143 = vmatprep.subr.mxu0 0.0
  %144 = vmatpush1.msra.mxu0 0.0
  %145 = vmatprep.subr.mxu0 0.0
  %146 = vmatpush1.msra.mxu0 0.0
  %147 = vmatprep.subr.mxu0 0.0
  %148 = vmatpush1.msra.mxu0 0.0
  %149 = vmatprep.subr.mxu0 0.0
  %150 = vmatpush1.msra.mxu0 0.0
  %151 = vmatprep.subr.mxu0 0.0
  %152 = vmatpush1.msra.mxu0 0.0
  %153 = vmatprep.subr.mxu0 0.0
  %154 = vmatpush1.msra.mxu0 0.0
  %155 = vmatprep.subr.mxu0 0.0
  %156 = vmatpush1.msra.mxu0 0.0
  %157 = vmatprep.subr.mxu0 0.0
  %158 = vmatpush1.msra.mxu0 0.0
  %159 = vmatprep.mubr.f32.mxu0 0.0
  %160 = vmatmul.mubr.f32.gmra.mrb[0].mxu0 %v44
  %v161 = vpop.f32.mrb[0].mxu0
  %v162 = vadd.f32 0.0, %v161
  %v163 = vpop.f32.mrb[0].mxu0
  %164 = vmatprep.mubr.f32.mxu0 0.0
  %165 = vmatmul.mubr.f32.gmra.mrb[0].mxu0 %v47
  %v166 = vpop.f32.mrb[0].mxu0
  %v167 = vadd.f32 0.0, %v166
  %v168 = vpop.f32.mrb[0].mxu0
  %169 = vmatprep.mubr.f32.mxu0 0.0
  %170 = vmatmul.mubr.f32.gmra.mrb[0].mxu0 %v50
  %v171 = vpop.f32.mrb[0].mxu0
  %v172 = vadd.f32 0.0, %v171
  %v173 = vpop.f32.mrb[0].mxu0
  %174 = vmatprep.mubr.f32.mxu0 0.0
  %175 = vmatmul.mubr.f32.gmra.mrb[0].mxu0 %v53
  %v176 = vpop.f32.mrb[0].mxu0
  %v177 = vadd.f32 0.0, %v176
  %v178 = vpop.f32.mrb[0].mxu0
  %179 = vmatprep.mubr.f32.mxu0 0.0
  %180 = vmatmul.mubr.f32.gmra.mrb[0].mxu0 %v56
  %v181 = vpop.f32.mrb[0].mxu0
  %v182 = vadd.f32 0.0, %v181
  %v183 = vpop.f32.mrb[0].mxu0
  %184 = vmatprep.mubr.f32.mxu0 0.0
  %185 = vmatmul.mubr.f32.gmra.mrb[0].mxu0 %v59
  %v186 = vpop.f32.mrb[0].mxu0
  %v187 = vadd.f32 0.0, %v186
  %v188 = vpop.f32.mrb[0].mxu0
  %189 = vmatprep.mubr.f32.mxu0 0.0
  %190 = vmatmul.mubr.f32.gmra.mrb[0].mxu0 %v62
  %v191 = vpop.f32.mrb[0].mxu0
  %v192 = vadd.f32 0.0, %v191
  %v193 = vpop.f32.mrb[0].mxu0
  %194 = vmatprep.mubr.f32.mxu0 0.0
  %195 = vmatmul.mubr.f32.gmra.mrb[0].mxu0 %v65
  %v196 = vpop.f32.mrb[0].mxu0
  %v197 = vadd.f32 0.0, %v196
  %v198 = vpop.f32.mrb[0].mxu0
  %199 = vmatprep.mubr.f32.mxu0 0.0
  %200 = vmatmul.mubr.f32.gmra.mrb[0].mxu0 %v68
  %v201 = vpop.f32.mrb[0].mxu0
  %v202 = vadd.f32 0.0, %v201
  %v203 = vpop.f32.mrb[0].mxu0
  %204 = vmatprep.mubr.f32.mxu0 0.0
  %205 = vmatmul.mubr.f32.gmra.mrb[0].mxu0 %v71
  %v206 = vpop.f32.mrb[0].mxu0
  %v207 = vadd.f32 0.0, %v206
  %v208 = vpop.f32.mrb[0].mxu0
  %209 = vmatprep.mubr.f32.mxu0 0.0
  %210 = vmatmul.mubr.f32.gmra.mrb[0].mxu0 %v74
  %v211 = vpop.f32.mrb[0].mxu0
  %v212 = vadd.f32 0.0, %v211
  %v213 = vpop.f32.mrb[0].mxu0
  %214 = vmatprep.mubr.f32.mxu0 0.0
  %215 = vmatmul.mubr.f32.gmra.mrb[0].mxu0 %v77
  %v216 = vpop.f32.mrb[0].mxu0
  %v217 = vadd.f32 0.0, %v216
  %v218 = vpop.f32.mrb[0].mxu0
  %219 = vmatprep.mubr.f32.mxu0 0.0
  %220 = vmatmul.mubr.f32.gmra.mrb[0].mxu0 %v80
  %v221 = vpop.f32.mrb[0].mxu0
  %v222 = vadd.f32 0.0, %v221
  %v223 = vpop.f32.mrb[0].mxu0
  %224 = vmatprep.mubr.f32.mxu0 0.0
  %225 = vmatmul.mubr.f32.gmra.mrb[0].mxu0 %v83
  %v226 = vpop.f32.mrb[0].mxu0
  %v227 = vadd.f32 0.0, %v226
  %v228 = vpop.f32.mrb[0].mxu0
  %229 = vmatprep.mubr.f32.mxu0 0.0
  %230 = vmatmul.mubr.f32.gmra.mrb[0].mxu0 %v86
  %v231 = vpop.f32.mrb[0].mxu0
  %v232 = vadd.f32 0.0, %v231
  %v233 = vpop.f32.mrb[0].mxu0
  %234 = vmatprep.mubr.f32.mxu0 0.0
  %235 = vmatmul.mubr.f32.gmra.mrb[0].mxu0 %v89
  %v236 = vpop.f32.mrb[0].mxu0
  %v237 = vadd.f32 0.0, %v236
  %v238 = vpop.f32.mrb[0].mxu0
  %239 = vdwg.mxu0
  %v241 = vrot.slane %v8, 1
  %v242 = vrot.slane %v9, 1
  %v243 = vsel %vm91, %v241, %v242
  %v245 = vsel %vm91, %v242, 0
  %247 = vmatprep.subr.mxu0 0.0
  %248 = vmatpush1.msra.mxu0 %v243
  %249 = vmatprep.subr.mxu0 0.0
  %250 = vmatpush1.msra.mxu0 %v245
  %251 = vmatprep.subr.mxu0 0.0
  %252 = vmatpush1.msra.mxu0 0.0
  %253 = vmatprep.subr.mxu0 0.0
  %254 = vmatpush1.msra.mxu0 0.0
  %255 = vmatprep.subr.mxu0 0.0
  %256 = vmatpush1.msra.mxu0 0.0
  %257 = vmatprep.subr.mxu0 0.0
  %258 = vmatpush1.msra.mxu0 0.0
  %259 = vmatprep.subr.mxu0 0.0
  %260 = vmatpush1.msra.mxu0 0.0
  %261 = vmatprep.subr.mxu0 0.0
  %262 = vmatpush1.msra.mxu0 0.0
  %263 = vmatprep.subr.mxu0 0.0
  %264 = vmatpush1.msra.mxu0 0.0
  %265 = vmatprep.subr.mxu0 0.0
  %266 = vmatpush1.msra.mxu0 0.0
  %267 = vmatprep.subr.mxu0 0.0
  %268 = vmatpush1.msra.mxu0 0.0
  %269 = vmatprep.subr.mxu0 0.0
  %270 = vmatpush1.msra.mxu0 0.0
  %271 = vmatprep.subr.mxu0 0.0
  %272 = vmatpush1.msra.mxu0 0.0
  %273 = vmatprep.subr.mxu0 0.0
  %274 = vmatpush1.msra.mxu0 0.0
  %275 = vmatprep.subr.mxu0 0.0
  %276 = vmatpush1.msra.mxu0 0.0
  %277 = vmatprep.subr.mxu0 0.0
  %278 = vmatpush1.msra.mxu0 0.0
  %279 = vmatprep.subr.mxu0 0.0
  %280 = vmatpush1.msra.mxu0 0.0
  %281 = vmatprep.subr.mxu0 0.0
  %282 = vmatpush1.msra.mxu0 0.0
  %283 = vmatprep.subr.mxu0 0.0
  %284 = vmatpush1.msra.mxu0 0.0
  %285 = vmatprep.subr.mxu0 0.0
  %286 = vmatpush1.msra.mxu0 0.0
  %287 = vmatprep.subr.mxu0 0.0
  %288 = vmatpush1.msra.mxu0 0.0
  %289 = vmatprep.subr.mxu0 0.0
  %290 = vmatpush1.msra.mxu0 0.0
  %291 = vmatprep.subr.mxu0 0.0
  %292 = vmatpush1.msra.mxu0 0.0
  %293 = vmatprep.subr.mxu0 0.0
  %294 = vmatpush1.msra.mxu0 0.0
  %295 = vmatprep.subr.mxu0 0.0
  %296 = vmatpush1.msra.mxu0 0.0
  %297 = vmatprep.subr.mxu0 0.0
  %298 = vmatpush1.msra.mxu0 0.0
  %299 = vmatprep.subr.mxu0 0.0
  %300 = vmatpush1.msra.mxu0 0.0
  %301 = vmatprep.subr.mxu0 0.0
  %302 = vmatpush1.msra.mxu0 0.0
  %303 = vmatprep.subr.mxu0 0.0
  %304 = vmatpush1.msra.mxu0 0.0
  %305 = vmatprep.subr.mxu0 0.0
  %306 = vmatpush1.msra.mxu0 0.0
  %307 = vmatprep.subr.mxu0 0.0
  %308 = vmatpush1.msra.mxu0 0.0
  %309 = vmatprep.subr.mxu0 0.0
  %310 = vmatpush1.msra.mxu0 0.0
  %311 = vmatprep.mubr.f32.mxu0 0.0
  %312 = vmatmul.mubr.f32.gmra.mrb[0].mxu0 %v44
  %v313 = vpop.f32.mrb[0].mxu0
  %v314 = vadd.f32 0.0, %v313
  %v315 = vpop.f32.mrb[0].mxu0
  %316 = vmatprep.mubr.f32.mxu0 0.0
  %317 = vmatmul.mubr.f32.gmra.mrb[0].mxu0 %v47
  %v318 = vpop.f32.mrb[0].mxu0
  %v319 = vadd.f32 0.0, %v318
  %v320 = vpop.f32.mrb[0].mxu0
  %321 = vmatprep.mubr.f32.mxu0 0.0
  %322 = vmatmul.mubr.f32.gmra.mrb[0].mxu0 %v50
  %v323 = vpop.f32.mrb[0].mxu0
  %v324 = vadd.f32 0.0, %v323
  %v325 = vpop.f32.mrb[0].mxu0
  %326 = vmatprep.mubr.f32.mxu0 0.0
  %327 = vmatmul.mubr.f32.gmra.mrb[0].mxu0 %v53
  %v328 = vpop.f32.mrb[0].mxu0
  %v329 = vadd.f32 0.0, %v328
  %v330 = vpop.f32.mrb[0].mxu0
  %331 = vmatprep.mubr.f32.mxu0 0.0
  %332 = vmatmul.mubr.f32.gmra.mrb[0].mxu0 %v56
  %v333 = vpop.f32.mrb[0].mxu0
  %v334 = vadd.f32 0.0, %v333
  %v335 = vpop.f32.mrb[0].mxu0
  %336 = vmatprep.mubr.f32.mxu0 0.0
  %337 = vmatmul.mubr.f32.gmra.mrb[0].mxu0 %v59
  %v338 = vpop.f32.mrb[0].mxu0
  %v339 = vadd.f32 0.0, %v338
  %v340 = vpop.f32.mrb[0].mxu0
  %341 = vmatprep.mubr.f32.mxu0 0.0
  %342 = vmatmul.mubr.f32.gmra.mrb[0].mxu0 %v62
  %v343 = vpop.f32.mrb[0].mxu0
  %v344 = vadd.f32 0.0, %v343
  %v345 = vpop.f32.mrb[0].mxu0
  %346 = vmatprep.mubr.f32.mxu0 0.0
  %347 = vmatmul.mubr.f32.gmra.mrb[0].mxu0 %v65
  %v348 = vpop.f32.mrb[0].mxu0
  %v349 = vadd.f32 0.0, %v348
  %v350 = vpop.f32.mrb[0].mxu0
  %351 = vmatprep.mubr.f32.mxu0 0.0
  %352 = vmatmul.mubr.f32.gmra.mrb[0].mxu0 %v68
  %v353 = vpop.f32.mrb[0].mxu0
  %v354 = vadd.f32 0.0, %v353
  %v355 = vpop.f32.mrb[0].mxu0
  %356 = vmatprep.mubr.f32.mxu0 0.0
  %357 = vmatmul.mubr.f32.gmra.mrb[0].mxu0 %v71
  %v358 = vpop.f32.mrb[0].mxu0
  %v359 = vadd.f32 0.0, %v358
  %v360 = vpop.f32.mrb[0].mxu0
  %361 = vmatprep.mubr.f32.mxu0 0.0
  %362 = vmatmul.mubr.f32.gmra.mrb[0].mxu0 %v74
  %v363 = vpop.f32.mrb[0].mxu0
  %v364 = vadd.f32 0.0, %v363
  %v365 = vpop.f32.mrb[0].mxu0
  %366 = vmatprep.mubr.f32.mxu0 0.0
  %367 = vmatmul.mubr.f32.gmra.mrb[0].mxu0 %v77
  %v368 = vpop.f32.mrb[0].mxu0
  %v369 = vadd.f32 0.0, %v368
  %v370 = vpop.f32.mrb[0].mxu0
  %371 = vmatprep.mubr.f32.mxu0 0.0
  %372 = vmatmul.mubr.f32.gmra.mrb[0].mxu0 %v80
  %v373 = vpop.f32.mrb[0].mxu0
  %v374 = vadd.f32 0.0, %v373
  %v375 = vpop.f32.mrb[0].mxu0
  %376 = vmatprep.mubr.f32.mxu0 0.0
  %377 = vmatmul.mubr.f32.gmra.mrb[0].mxu0 %v83
  %v378 = vpop.f32.mrb[0].mxu0
  %v379 = vadd.f32 0.0, %v378
  %v380 = vpop.f32.mrb[0].mxu0
  %381 = vmatprep.mubr.f32.mxu0 0.0
  %382 = vmatmul.mubr.f32.gmra.mrb[0].mxu0 %v86
  %v383 = vpop.f32.mrb[0].mxu0
  %v384 = vadd.f32 0.0, %v383
  %v385 = vpop.f32.mrb[0].mxu0
  %386 = vmatprep.mubr.f32.mxu0 0.0
  %387 = vmatmul.mubr.f32.gmra.mrb[0].mxu0 %v89
  %v388 = vpop.f32.mrb[0].mxu0
  %v389 = vadd.f32 0.0, %v388
  %v390 = vpop.f32.mrb[0].mxu0
  %391 = vdwg.mxu0
  %393 = vrot.lane.b32.xlu0 %v314, 8
  %v394 = vpop.permute.xlu0 %393
  %vm396 = vcmask 64512
  %v397 = vsel %vm396, %v162, %v394
  %399 = vrot.lane.b32.xlu0 %v167, 120
  %v400 = vpop.permute.xlu0 %399
  %v402 = vsel %vm396, %v400, %v319
  %404 = vrot.lane.b32.xlu0 %v172, 112
  %v405 = vpop.permute.xlu0 %404
  %408 = vrot.lane.b32.xlu0 %v324, 120
  %v409 = vpop.permute.xlu0 %408
  %v411 = vsel %vm396, %v405, %v409
  %413 = vrot.lane.b32.xlu0 %v177, 104
  %v414 = vpop.permute.xlu0 %413
  %417 = vrot.lane.b32.xlu0 %v329, 112
  %v418 = vpop.permute.xlu0 %417
  %v420 = vsel %vm396, %v414, %v418
  %422 = vrot.lane.b32.xlu0 %v182, 96
  %v423 = vpop.permute.xlu0 %422
  %426 = vrot.lane.b32.xlu0 %v334, 104
  %v427 = vpop.permute.xlu0 %426
  %v429 = vsel %vm396, %v423, %v427
  %431 = vrot.lane.b32.xlu0 %v187, 88
  %v432 = vpop.permute.xlu0 %431
  %435 = vrot.lane.b32.xlu0 %v339, 96
  %v436 = vpop.permute.xlu0 %435
  %v438 = vsel %vm396, %v432, %v436
  %440 = vrot.lane.b32.xlu0 %v192, 80
  %v441 = vpop.permute.xlu0 %440
  %444 = vrot.lane.b32.xlu0 %v344, 88
  %v445 = vpop.permute.xlu0 %444
  %v447 = vsel %vm396, %v441, %v445
  %449 = vrot.lane.b32.xlu0 %v197, 72
  %v450 = vpop.permute.xlu0 %449
  %453 = vrot.lane.b32.xlu0 %v349, 80
  %v454 = vpop.permute.xlu0 %453
  %v456 = vsel %vm396, %v450, %v454
  %458 = vrot.lane.b32.xlu0 %v202, 64
  %v459 = vpop.permute.xlu0 %458
  %462 = vrot.lane.b32.xlu0 %v354, 72
  %v463 = vpop.permute.xlu0 %462
  %v465 = vsel %vm396, %v459, %v463
  %467 = vrot.lane.b32.xlu0 %v207, 56
  %v468 = vpop.permute.xlu0 %467
  %471 = vrot.lane.b32.xlu0 %v359, 64
  %v472 = vpop.permute.xlu0 %471
  %v474 = vsel %vm396, %v468, %v472
  %476 = vrot.lane.b32.xlu0 %v212, 48
  %v477 = vpop.permute.xlu0 %476
  %480 = vrot.lane.b32.xlu0 %v364, 56
  %v481 = vpop.permute.xlu0 %480
  %v483 = vsel %vm396, %v477, %v481
  %485 = vrot.lane.b32.xlu0 %v217, 40
  %v486 = vpop.permute.xlu0 %485
  %489 = vrot.lane.b32.xlu0 %v369, 48
  %v490 = vpop.permute.xlu0 %489
  %v492 = vsel %vm396, %v486, %v490
  %494 = vrot.lane.b32.xlu0 %v222, 32
  %v495 = vpop.permute.xlu0 %494
  %498 = vrot.lane.b32.xlu0 %v374, 40
  %v499 = vpop.permute.xlu0 %498
  %v501 = vsel %vm396, %v495, %v499
  %503 = vrot.lane.b32.xlu0 %v227, 24
  %v504 = vpop.permute.xlu0 %503
  %507 = vrot.lane.b32.xlu0 %v379, 32
  %v508 = vpop.permute.xlu0 %507
  %v510 = vsel %vm396, %v504, %v508
  %512 = vrot.lane.b32.xlu0 %v232, 16
  %v513 = vpop.permute.xlu0 %512
  %516 = vrot.lane.b32.xlu0 %v384, 24
  %v517 = vpop.permute.xlu0 %516
  %v519 = vsel %vm396, %v513, %v517
  %521 = vrot.lane.b32.xlu0 %v237, 8
  %v522 = vpop.permute.xlu0 %521
  %525 = vrot.lane.b32.xlu0 %v389, 16
  %v526 = vpop.permute.xlu0 %525
  %v528 = vsel %vm396, %v522, %v526
  %v529 = vlaneseq
  %v530 = vshrl.u32 %v529, 7
  %532 = vset.pattern.permute.xlu0 0
  %533 = vperm.xlu0 %532, %v397
  %v534 = vpop.permute.xlu0 %533
  %537 = vset.pattern.permute.xlu0 0
  %538 = vperm.xlu0 %537, %v402
  %v539 = vpop.permute.xlu0 %538
  %542 = vset.pattern.permute.xlu0 0
  %543 = vperm.xlu0 %542, %v411
  %v544 = vpop.permute.xlu0 %543
  %547 = vset.pattern.permute.xlu0 0
  %548 = vperm.xlu0 %547, %v420
  %v549 = vpop.permute.xlu0 %548
  %552 = vset.pattern.permute.xlu0 0
  %553 = vperm.xlu0 %552, %v429
  %v554 = vpop.permute.xlu0 %553
  %557 = vset.pattern.permute.xlu0 0
  %558 = vperm.xlu0 %557, %v438
  %v559 = vpop.permute.xlu0 %558
  %562 = vset.pattern.permute.xlu0 0
  %563 = vperm.xlu0 %562, %v447
  %v564 = vpop.permute.xlu0 %563
  %567 = vset.pattern.permute.xlu0 0
  %568 = vperm.xlu0 %567, %v456
  %v569 = vpop.permute.xlu0 %568
  %572 = vset.pattern.permute.xlu0 0
  %573 = vperm.xlu0 %572, %v465
  %v574 = vpop.permute.xlu0 %573
  %577 = vset.pattern.permute.xlu0 0
  %578 = vperm.xlu0 %577, %v474
  %v579 = vpop.permute.xlu0 %578
  %582 = vset.pattern.permute.xlu0 0
  %583 = vperm.xlu0 %582, %v483
  %v584 = vpop.permute.xlu0 %583
  %587 = vset.pattern.permute.xlu0 0
  %588 = vperm.xlu0 %587, %v492
  %v589 = vpop.permute.xlu0 %588
  %592 = vset.pattern.permute.xlu0 0
  %593 = vperm.xlu0 %592, %v501
  %v594 = vpop.permute.xlu0 %593
  %597 = vset.pattern.permute.xlu0 0
  %598 = vperm.xlu0 %597, %v510
  %v599 = vpop.permute.xlu0 %598
  %602 = vset.pattern.permute.xlu0 0
  %603 = vperm.xlu0 %602, %v519
  %v604 = vpop.permute.xlu0 %603
  %607 = vset.pattern.permute.xlu0 0
  %608 = vperm.xlu0 %607, %v528
  %v609 = vpop.permute.xlu0 %608
  %v611 = vrcp.pop %v534
  %v612 = vmul.f32 %v397, %v611
  %v613 = vrcp.pop %v539
  %v614 = vmul.f32 %v402, %v613
  %v615 = vrcp.pop %v544
  %v616 = vmul.f32 %v411, %v615
  %v617 = vrcp.pop %v549
  %v618 = vmul.f32 %v420, %v617
  %v619 = vrcp.pop %v554
  %v620 = vmul.f32 %v429, %v619
  %v621 = vrcp.pop %v559
  %v622 = vmul.f32 %v438, %v621
  %v623 = vrcp.pop %v564
  %v624 = vmul.f32 %v447, %v623
  %v625 = vrcp.pop %v569
  %v626 = vmul.f32 %v456, %v625
  %v627 = vrcp.pop %v574
  %v628 = vmul.f32 %v465, %v627
  %v629 = vrcp.pop %v579
  %v630 = vmul.f32 %v474, %v629
  %v631 = vrcp.pop %v584
  %v632 = vmul.f32 %v483, %v631
  %v633 = vrcp.pop %v589
  %v634 = vmul.f32 %v492, %v633
  %v635 = vrcp.pop %v594
  %v636 = vmul.f32 %v501, %v635
  %v637 = vrcp.pop %v599
  %v638 = vmul.f32 %v510, %v637
  %v639 = vrcp.pop %v604
  %v640 = vmul.f32 %v519, %v639
  %v641 = vrcp.pop %v609
  %v642 = vmul.f32 %v528, %v641
  %vm643 = vcmp.eq.s32.totalorder %v530, 0
  %v644 = vlaneseq
  %v645 = vshrl.u32 %v644, 7
  %v646 = vsub.s32 0, %v645
  %v647 = vrot.slane %v612, %v646
  %v648 = vlaneseq
  %v649 = vshrl.u32 %v648, 7
  %v650 = vsub.s32 0, %v649
  %v651 = vrot.slane %v614, %v650
  %v652 = vlaneseq
  %v653 = vshrl.u32 %v652, 7
  %v654 = vsub.s32 0, %v653
  %v655 = vrot.slane %v616, %v654
  %v656 = vlaneseq
  %v657 = vshrl.u32 %v656, 7
  %v658 = vsub.s32 0, %v657
  %v659 = vrot.slane %v618, %v658
  %v660 = vlaneseq
  %v661 = vshrl.u32 %v660, 7
  %v662 = vsub.s32 0, %v661
  %v663 = vrot.slane %v620, %v662
  %v664 = vlaneseq
  %v665 = vshrl.u32 %v664, 7
  %v666 = vsub.s32 0, %v665
  %v667 = vrot.slane %v622, %v666
  %v668 = vlaneseq
  %v669 = vshrl.u32 %v668, 7
  %v670 = vsub.s32 0, %v669
  %v671 = vrot.slane %v624, %v670
  %v672 = vlaneseq
  %v673 = vshrl.u32 %v672, 7
  %v674 = vsub.s32 0, %v673
  %v675 = vrot.slane %v626, %v674
  %v676 = vlaneseq
  %v677 = vshrl.u32 %v676, 7
  %v678 = vsub.s32 0, %v677
  %v679 = vrot.slane %v628, %v678
  %v680 = vlaneseq
  %v681 = vshrl.u32 %v680, 7
  %v682 = vsub.s32 0, %v681
  %v683 = vrot.slane %v630, %v682
  %v684 = vlaneseq
  %v685 = vshrl.u32 %v684, 7
  %v686 = vsub.s32 0, %v685
  %v687 = vrot.slane %v632, %v686
  %v688 = vlaneseq
  %v689 = vshrl.u32 %v688, 7
  %v690 = vsub.s32 0, %v689
  %v691 = vrot.slane %v634, %v690
  %v692 = vlaneseq
  %v693 = vshrl.u32 %v692, 7
  %v694 = vsub.s32 0, %v693
  %v695 = vrot.slane %v636, %v694
  %v696 = vlaneseq
  %v697 = vshrl.u32 %v696, 7
  %v698 = vsub.s32 0, %v697
  %v699 = vrot.slane %v638, %v698
  %v700 = vlaneseq
  %v701 = vshrl.u32 %v700, 7
  %v702 = vsub.s32 0, %v701
  %v703 = vrot.slane %v640, %v702
  %v704 = vlaneseq
  %v705 = vshrl.u32 %v704, 7
  %v706 = vsub.s32 0, %v705
  %v707 = vrot.slane %v642, %v706
  %v708 = vmul.f32 %v534, %v647
  %v709 = vmul.f32 %v539, %v651
  %v710 = vmul.f32 %v544, %v655
  %v711 = vmul.f32 %v549, %v659
  %v712 = vmul.f32 %v554, %v663
  %v713 = vmul.f32 %v559, %v667
  %v714 = vmul.f32 %v564, %v671
  %v715 = vmul.f32 %v569, %v675
  %v716 = vmul.f32 %v574, %v679
  %v717 = vmul.f32 %v579, %v683
  %v718 = vmul.f32 %v584, %v687
  %v719 = vmul.f32 %v589, %v691
  %v720 = vmul.f32 %v594, %v695
  %v721 = vmul.f32 %v599, %v699
  %v722 = vmul.f32 %v604, %v703
  %v723 = vmul.f32 %v609, %v707
  %v724 = vsel %vm643, 0.0, %v708
  %v725 = vsel %vm643, 0.0, %v709
  %v726 = vsel %vm643, 0.0, %v710
  %v727 = vsel %vm643, 0.0, %v711
  %v728 = vsel %vm643, 0.0, %v712
  %v729 = vsel %vm643, 0.0, %v713
  %v730 = vsel %vm643, 0.0, %v714
  %v731 = vsel %vm643, 0.0, %v715
  %v732 = vsel %vm643, 0.0, %v716
  %v733 = vsel %vm643, 0.0, %v717
  %v734 = vsel %vm643, 0.0, %v718
  %v735 = vsel %vm643, 0.0, %v719
  %v736 = vsel %vm643, 0.0, %v720
  %v737 = vsel %vm643, 0.0, %v721
  %v738 = vsel %vm643, 0.0, %v722
  %v739 = vsel %vm643, 0.0, %v723
  %v740 = vsub.f32 %v397, %v724
  %v741 = vsub.f32 %v402, %v725
  %v742 = vsub.f32 %v411, %v726
  %v743 = vsub.f32 %v420, %v727
  %v744 = vsub.f32 %v429, %v728
  %v745 = vsub.f32 %v438, %v729
  %v746 = vsub.f32 %v447, %v730
  %v747 = vsub.f32 %v456, %v731
  %v748 = vsub.f32 %v465, %v732
  %v749 = vsub.f32 %v474, %v733
  %v750 = vsub.f32 %v483, %v734
  %v751 = vsub.f32 %v492, %v735
  %v752 = vsub.f32 %v501, %v736
  %v753 = vsub.f32 %v510, %v737
  %v754 = vsub.f32 %v519, %v738
  %v755 = vsub.f32 %v528, %v739
  %v756 = vsel %vm643, %v647, %v740
  %v757 = vsel %vm643, %v651, %v741
  %v758 = vsel %vm643, %v655, %v742
  %v759 = vsel %vm643, %v659, %v743
  %v760 = vsel %vm643, %v663, %v744
  %v761 = vsel %vm643, %v667, %v745
  %v762 = vsel %vm643, %v671, %v746
  %v763 = vsel %vm643, %v675, %v747
  %v764 = vsel %vm643, %v679, %v748
  %v765 = vsel %vm643, %v683, %v749
  %v766 = vsel %vm643, %v687, %v750
  %v767 = vsel %vm643, %v691, %v751
  %v768 = vsel %vm643, %v695, %v752
  %v769 = vsel %vm643, %v699, %v753
  %v770 = vsel %vm643, %v703, %v754
  %v771 = vsel %vm643, %v707, %v755
  %773 = vset.pattern.permute.xlu0 1
  %774 = vperm.xlu0 %773, %v756
  %v775 = vpop.permute.xlu0 %774
  %778 = vset.pattern.permute.xlu0 1
  %779 = vperm.xlu0 %778, %v757
  %v780 = vpop.permute.xlu0 %779
  %783 = vset.pattern.permute.xlu0 1
  %784 = vperm.xlu0 %783, %v758
  %v785 = vpop.permute.xlu0 %784
  %788 = vset.pattern.permute.xlu0 1
  %789 = vperm.xlu0 %788, %v759
  %v790 = vpop.permute.xlu0 %789
  %793 = vset.pattern.permute.xlu0 1
  %794 = vperm.xlu0 %793, %v760
  %v795 = vpop.permute.xlu0 %794
  %798 = vset.pattern.permute.xlu0 1
  %799 = vperm.xlu0 %798, %v761
  %v800 = vpop.permute.xlu0 %799
  %803 = vset.pattern.permute.xlu0 1
  %804 = vperm.xlu0 %803, %v762
  %v805 = vpop.permute.xlu0 %804
  %808 = vset.pattern.permute.xlu0 1
  %809 = vperm.xlu0 %808, %v763
  %v810 = vpop.permute.xlu0 %809
  %813 = vset.pattern.permute.xlu0 1
  %814 = vperm.xlu0 %813, %v764
  %v815 = vpop.permute.xlu0 %814
  %818 = vset.pattern.permute.xlu0 1
  %819 = vperm.xlu0 %818, %v765
  %v820 = vpop.permute.xlu0 %819
  %823 = vset.pattern.permute.xlu0 1
  %824 = vperm.xlu0 %823, %v766
  %v825 = vpop.permute.xlu0 %824
  %828 = vset.pattern.permute.xlu0 1
  %829 = vperm.xlu0 %828, %v767
  %v830 = vpop.permute.xlu0 %829
  %833 = vset.pattern.permute.xlu0 1
  %834 = vperm.xlu0 %833, %v768
  %v835 = vpop.permute.xlu0 %834
  %838 = vset.pattern.permute.xlu0 1
  %839 = vperm.xlu0 %838, %v769
  %v840 = vpop.permute.xlu0 %839
  %843 = vset.pattern.permute.xlu0 1
  %844 = vperm.xlu0 %843, %v770
  %v845 = vpop.permute.xlu0 %844
  %848 = vset.pattern.permute.xlu0 1
  %849 = vperm.xlu0 %848, %v771
  %v850 = vpop.permute.xlu0 %849
  %v852 = vrcp.pop %v775
  %v853 = vmul.f32 %v756, %v852
  %v854 = vrcp.pop %v780
  %v855 = vmul.f32 %v757, %v854
  %v856 = vrcp.pop %v785
  %v857 = vmul.f32 %v758, %v856
  %v858 = vrcp.pop %v790
  %v859 = vmul.f32 %v759, %v858
  %v860 = vrcp.pop %v795
  %v861 = vmul.f32 %v760, %v860
  %v862 = vrcp.pop %v800
  %v863 = vmul.f32 %v761, %v862
  %v864 = vrcp.pop %v805
  %v865 = vmul.f32 %v762, %v864
  %v866 = vrcp.pop %v810
  %v867 = vmul.f32 %v763, %v866
  %v868 = vrcp.pop %v815
  %v869 = vmul.f32 %v764, %v868
  %v870 = vrcp.pop %v820
  %v871 = vmul.f32 %v765, %v870
  %v872 = vrcp.pop %v825
  %v873 = vmul.f32 %v766, %v872
  %v874 = vrcp.pop %v830
  %v875 = vmul.f32 %v767, %v874
  %v876 = vrcp.pop %v835
  %v877 = vmul.f32 %v768, %v876
  %v878 = vrcp.pop %v840
  %v879 = vmul.f32 %v769, %v878
  %v880 = vrcp.pop %v845
  %v881 = vmul.f32 %v770, %v880
  %v882 = vrcp.pop %v850
  %v883 = vmul.f32 %v771, %v882
  %vm884 = vcmp.eq.s32.totalorder %v530, 1
  %v885 = vlaneseq
  %v886 = vshrl.u32 %v885, 7
  %v887 = vsub.s32 1, %v886
  %v888 = vrot.slane %v853, %v887
  %v889 = vlaneseq
  %v890 = vshrl.u32 %v889, 7
  %v891 = vsub.s32 1, %v890
  %v892 = vrot.slane %v855, %v891
  %v893 = vlaneseq
  %v894 = vshrl.u32 %v893, 7
  %v895 = vsub.s32 1, %v894
  %v896 = vrot.slane %v857, %v895
  %v897 = vlaneseq
  %v898 = vshrl.u32 %v897, 7
  %v899 = vsub.s32 1, %v898
  %v900 = vrot.slane %v859, %v899
  %v901 = vlaneseq
  %v902 = vshrl.u32 %v901, 7
  %v903 = vsub.s32 1, %v902
  %v904 = vrot.slane %v861, %v903
  %v905 = vlaneseq
  %v906 = vshrl.u32 %v905, 7
  %v907 = vsub.s32 1, %v906
  %v908 = vrot.slane %v863, %v907
  %v909 = vlaneseq
  %v910 = vshrl.u32 %v909, 7
  %v911 = vsub.s32 1, %v910
  %v912 = vrot.slane %v865, %v911
  %v913 = vlaneseq
  %v914 = vshrl.u32 %v913, 7
  %v915 = vsub.s32 1, %v914
  %v916 = vrot.slane %v867, %v915
  %v917 = vlaneseq
  %v918 = vshrl.u32 %v917, 7
  %v919 = vsub.s32 1, %v918
  %v920 = vrot.slane %v869, %v919
  %v921 = vlaneseq
  %v922 = vshrl.u32 %v921, 7
  %v923 = vsub.s32 1, %v922
  %v924 = vrot.slane %v871, %v923
  %v925 = vlaneseq
  %v926 = vshrl.u32 %v925, 7
  %v927 = vsub.s32 1, %v926
  %v928 = vrot.slane %v873, %v927
  %v929 = vlaneseq
  %v930 = vshrl.u32 %v929, 7
  %v931 = vsub.s32 1, %v930
  %v932 = vrot.slane %v875, %v931
  %v933 = vlaneseq
  %v934 = vshrl.u32 %v933, 7
  %v935 = vsub.s32 1, %v934
  %v936 = vrot.slane %v877, %v935
  %v937 = vlaneseq
  %v938 = vshrl.u32 %v937, 7
  %v939 = vsub.s32 1, %v938
  %v940 = vrot.slane %v879, %v939
  %v941 = vlaneseq
  %v942 = vshrl.u32 %v941, 7
  %v943 = vsub.s32 1, %v942
  %v944 = vrot.slane %v881, %v943
  %v945 = vlaneseq
  %v946 = vshrl.u32 %v945, 7
  %v947 = vsub.s32 1, %v946
  %v948 = vrot.slane %v883, %v947
  %v949 = vmul.f32 %v775, %v888
  %v950 = vmul.f32 %v780, %v892
  %v951 = vmul.f32 %v785, %v896
  %v952 = vmul.f32 %v790, %v900
  %v953 = vmul.f32 %v795, %v904
  %v954 = vmul.f32 %v800, %v908
  %v955 = vmul.f32 %v805, %v912
  %v956 = vmul.f32 %v810, %v916
  %v957 = vmul.f32 %v815, %v920
  %v958 = vmul.f32 %v820, %v924
  %v959 = vmul.f32 %v825, %v928
  %v960 = vmul.f32 %v830, %v932
  %v961 = vmul.f32 %v835, %v936
  %v962 = vmul.f32 %v840, %v940
  %v963 = vmul.f32 %v845, %v944
  %v964 = vmul.f32 %v850, %v948
  %v965 = vsel %vm884, 0.0, %v949
  %v966 = vsel %vm884, 0.0, %v950
  %v967 = vsel %vm884, 0.0, %v951
  %v968 = vsel %vm884, 0.0, %v952
  %v969 = vsel %vm884, 0.0, %v953
  %v970 = vsel %vm884, 0.0, %v954
  %v971 = vsel %vm884, 0.0, %v955
  %v972 = vsel %vm884, 0.0, %v956
  %v973 = vsel %vm884, 0.0, %v957
  %v974 = vsel %vm884, 0.0, %v958
  %v975 = vsel %vm884, 0.0, %v959
  %v976 = vsel %vm884, 0.0, %v960
  %v977 = vsel %vm884, 0.0, %v961
  %v978 = vsel %vm884, 0.0, %v962
  %v979 = vsel %vm884, 0.0, %v963
  %v980 = vsel %vm884, 0.0, %v964
  %v981 = vsub.f32 %v756, %v965
  %v982 = vsub.f32 %v757, %v966
  %v983 = vsub.f32 %v758, %v967
  %v984 = vsub.f32 %v759, %v968
  %v985 = vsub.f32 %v760, %v969
  %v986 = vsub.f32 %v761, %v970
  %v987 = vsub.f32 %v762, %v971
  %v988 = vsub.f32 %v763, %v972
  %v989 = vsub.f32 %v764, %v973
  %v990 = vsub.f32 %v765, %v974
  %v991 = vsub.f32 %v766, %v975
  %v992 = vsub.f32 %v767, %v976
  %v993 = vsub.f32 %v768, %v977
  %v994 = vsub.f32 %v769, %v978
  %v995 = vsub.f32 %v770, %v979
  %v996 = vsub.f32 %v771, %v980
  %v997 = vsel %vm884, %v888, %v981
  %v998 = vsel %vm884, %v892, %v982
  %v999 = vsel %vm884, %v896, %v983
  %v1000 = vsel %vm884, %v900, %v984
  %v1001 = vsel %vm884, %v904, %v985
  %v1002 = vsel %vm884, %v908, %v986
  %v1003 = vsel %vm884, %v912, %v987
  %v1004 = vsel %vm884, %v916, %v988
  %v1005 = vsel %vm884, %v920, %v989
  %v1006 = vsel %vm884, %v924, %v990
  %v1007 = vsel %vm884, %v928, %v991
  %v1008 = vsel %vm884, %v932, %v992
  %v1009 = vsel %vm884, %v936, %v993
  %v1010 = vsel %vm884, %v940, %v994
  %v1011 = vsel %vm884, %v944, %v995
  %v1012 = vsel %vm884, %v948, %v996
  %1014 = vset.pattern.permute.xlu0 2
  %1015 = vperm.xlu0 %1014, %v997
  %v1016 = vpop.permute.xlu0 %1015
  %1019 = vset.pattern.permute.xlu0 2
  %1020 = vperm.xlu0 %1019, %v998
  %v1021 = vpop.permute.xlu0 %1020
  %1024 = vset.pattern.permute.xlu0 2
  %1025 = vperm.xlu0 %1024, %v999
  %v1026 = vpop.permute.xlu0 %1025
  %1029 = vset.pattern.permute.xlu0 2
  %1030 = vperm.xlu0 %1029, %v1000
  %v1031 = vpop.permute.xlu0 %1030
  %1034 = vset.pattern.permute.xlu0 2
  %1035 = vperm.xlu0 %1034, %v1001
  %v1036 = vpop.permute.xlu0 %1035
  %1039 = vset.pattern.permute.xlu0 2
  %1040 = vperm.xlu0 %1039, %v1002
  %v1041 = vpop.permute.xlu0 %1040
  %1044 = vset.pattern.permute.xlu0 2
  %1045 = vperm.xlu0 %1044, %v1003
  %v1046 = vpop.permute.xlu0 %1045
  %1049 = vset.pattern.permute.xlu0 2
  %1050 = vperm.xlu0 %1049, %v1004
  %v1051 = vpop.permute.xlu0 %1050
  %1054 = vset.pattern.permute.xlu0 2
  %1055 = vperm.xlu0 %1054, %v1005
  %v1056 = vpop.permute.xlu0 %1055
  %1059 = vset.pattern.permute.xlu0 2
  %1060 = vperm.xlu0 %1059, %v1006
  %v1061 = vpop.permute.xlu0 %1060
  %1064 = vset.pattern.permute.xlu0 2
  %1065 = vperm.xlu0 %1064, %v1007
  %v1066 = vpop.permute.xlu0 %1065
  %1069 = vset.pattern.permute.xlu0 2
  %1070 = vperm.xlu0 %1069, %v1008
  %v1071 = vpop.permute.xlu0 %1070
  %1074 = vset.pattern.permute.xlu0 2
  %1075 = vperm.xlu0 %1074, %v1009
  %v1076 = vpop.permute.xlu0 %1075
  %1079 = vset.pattern.permute.xlu0 2
  %1080 = vperm.xlu0 %1079, %v1010
  %v1081 = vpop.permute.xlu0 %1080
  %1084 = vset.pattern.permute.xlu0 2
  %1085 = vperm.xlu0 %1084, %v1011
  %v1086 = vpop.permute.xlu0 %1085
  %1089 = vset.pattern.permute.xlu0 2
  %1090 = vperm.xlu0 %1089, %v1012
  %v1091 = vpop.permute.xlu0 %1090
  %v1093 = vrcp.pop %v1016
  %v1094 = vmul.f32 %v997, %v1093
  %v1095 = vrcp.pop %v1021
  %v1096 = vmul.f32 %v998, %v1095
  %v1097 = vrcp.pop %v1026
  %v1098 = vmul.f32 %v999, %v1097
  %v1099 = vrcp.pop %v1031
  %v1100 = vmul.f32 %v1000, %v1099
  %v1101 = vrcp.pop %v1036
  %v1102 = vmul.f32 %v1001, %v1101
  %v1103 = vrcp.pop %v1041
  %v1104 = vmul.f32 %v1002, %v1103
  %v1105 = vrcp.pop %v1046
  %v1106 = vmul.f32 %v1003, %v1105
  %v1107 = vrcp.pop %v1051
  %v1108 = vmul.f32 %v1004, %v1107
  %v1109 = vrcp.pop %v1056
  %v1110 = vmul.f32 %v1005, %v1109
  %v1111 = vrcp.pop %v1061
  %v1112 = vmul.f32 %v1006, %v1111
  %v1113 = vrcp.pop %v1066
  %v1114 = vmul.f32 %v1007, %v1113
  %v1115 = vrcp.pop %v1071
  %v1116 = vmul.f32 %v1008, %v1115
  %v1117 = vrcp.pop %v1076
  %v1118 = vmul.f32 %v1009, %v1117
  %v1119 = vrcp.pop %v1081
  %v1120 = vmul.f32 %v1010, %v1119
  %v1121 = vrcp.pop %v1086
  %v1122 = vmul.f32 %v1011, %v1121
  %v1123 = vrcp.pop %v1091
  %v1124 = vmul.f32 %v1012, %v1123
  %vm1125 = vcmp.eq.s32.totalorder %v530, 2
  %v1126 = vlaneseq
  %v1127 = vshrl.u32 %v1126, 7
  %v1128 = vsub.s32 2, %v1127
  %v1129 = vrot.slane %v1094, %v1128
  %v1130 = vlaneseq
  %v1131 = vshrl.u32 %v1130, 7
  %v1132 = vsub.s32 2, %v1131
  %v1133 = vrot.slane %v1096, %v1132
  %v1134 = vlaneseq
  %v1135 = vshrl.u32 %v1134, 7
  %v1136 = vsub.s32 2, %v1135
  %v1137 = vrot.slane %v1098, %v1136
  %v1138 = vlaneseq
  %v1139 = vshrl.u32 %v1138, 7
  %v1140 = vsub.s32 2, %v1139
  %v1141 = vrot.slane %v1100, %v1140
  %v1142 = vlaneseq
  %v1143 = vshrl.u32 %v1142, 7
  %v1144 = vsub.s32 2, %v1143
  %v1145 = vrot.slane %v1102, %v1144
  %v1146 = vlaneseq
  %v1147 = vshrl.u32 %v1146, 7
  %v1148 = vsub.s32 2, %v1147
  %v1149 = vrot.slane %v1104, %v1148
  %v1150 = vlaneseq
  %v1151 = vshrl.u32 %v1150, 7
  %v1152 = vsub.s32 2, %v1151
  %v1153 = vrot.slane %v1106, %v1152
  %v1154 = vlaneseq
  %v1155 = vshrl.u32 %v1154, 7
  %v1156 = vsub.s32 2, %v1155
  %v1157 = vrot.slane %v1108, %v1156
  %v1158 = vlaneseq
  %v1159 = vshrl.u32 %v1158, 7
  %v1160 = vsub.s32 2, %v1159
  %v1161 = vrot.slane %v1110, %v1160
  %v1162 = vlaneseq
  %v1163 = vshrl.u32 %v1162, 7
  %v1164 = vsub.s32 2, %v1163
  %v1165 = vrot.slane %v1112, %v1164
  %v1166 = vlaneseq
  %v1167 = vshrl.u32 %v1166, 7
  %v1168 = vsub.s32 2, %v1167
  %v1169 = vrot.slane %v1114, %v1168
  %v1170 = vlaneseq
  %v1171 = vshrl.u32 %v1170, 7
  %v1172 = vsub.s32 2, %v1171
  %v1173 = vrot.slane %v1116, %v1172
  %v1174 = vlaneseq
  %v1175 = vshrl.u32 %v1174, 7
  %v1176 = vsub.s32 2, %v1175
  %v1177 = vrot.slane %v1118, %v1176
  %v1178 = vlaneseq
  %v1179 = vshrl.u32 %v1178, 7
  %v1180 = vsub.s32 2, %v1179
  %v1181 = vrot.slane %v1120, %v1180
  %v1182 = vlaneseq
  %v1183 = vshrl.u32 %v1182, 7
  %v1184 = vsub.s32 2, %v1183
  %v1185 = vrot.slane %v1122, %v1184
  %v1186 = vlaneseq
  %v1187 = vshrl.u32 %v1186, 7
  %v1188 = vsub.s32 2, %v1187
  %v1189 = vrot.slane %v1124, %v1188
  %v1190 = vmul.f32 %v1016, %v1129
  %v1191 = vmul.f32 %v1021, %v1133
  %v1192 = vmul.f32 %v1026, %v1137
  %v1193 = vmul.f32 %v1031, %v1141
  %v1194 = vmul.f32 %v1036, %v1145
  %v1195 = vmul.f32 %v1041, %v1149
  %v1196 = vmul.f32 %v1046, %v1153
  %v1197 = vmul.f32 %v1051, %v1157
  %v1198 = vmul.f32 %v1056, %v1161
  %v1199 = vmul.f32 %v1061, %v1165
  %v1200 = vmul.f32 %v1066, %v1169
  %v1201 = vmul.f32 %v1071, %v1173
  %v1202 = vmul.f32 %v1076, %v1177
  %v1203 = vmul.f32 %v1081, %v1181
  %v1204 = vmul.f32 %v1086, %v1185
  %v1205 = vmul.f32 %v1091, %v1189
  %v1206 = vsel %vm1125, 0.0, %v1190
  %v1207 = vsel %vm1125, 0.0, %v1191
  %v1208 = vsel %vm1125, 0.0, %v1192
  %v1209 = vsel %vm1125, 0.0, %v1193
  %v1210 = vsel %vm1125, 0.0, %v1194
  %v1211 = vsel %vm1125, 0.0, %v1195
  %v1212 = vsel %vm1125, 0.0, %v1196
  %v1213 = vsel %vm1125, 0.0, %v1197
  %v1214 = vsel %vm1125, 0.0, %v1198
  %v1215 = vsel %vm1125, 0.0, %v1199
  %v1216 = vsel %vm1125, 0.0, %v1200
  %v1217 = vsel %vm1125, 0.0, %v1201
  %v1218 = vsel %vm1125, 0.0, %v1202
  %v1219 = vsel %vm1125, 0.0, %v1203
  %v1220 = vsel %vm1125, 0.0, %v1204
  %v1221 = vsel %vm1125, 0.0, %v1205
  %v1222 = vsub.f32 %v997, %v1206
  %v1223 = vsub.f32 %v998, %v1207
  %v1224 = vsub.f32 %v999, %v1208
  %v1225 = vsub.f32 %v1000, %v1209
  %v1226 = vsub.f32 %v1001, %v1210
  %v1227 = vsub.f32 %v1002, %v1211
  %v1228 = vsub.f32 %v1003, %v1212
  %v1229 = vsub.f32 %v1004, %v1213
  %v1230 = vsub.f32 %v1005, %v1214
  %v1231 = vsub.f32 %v1006, %v1215
  %v1232 = vsub.f32 %v1007, %v1216
  %v1233 = vsub.f32 %v1008, %v1217
  %v1234 = vsub.f32 %v1009, %v1218
  %v1235 = vsub.f32 %v1010, %v1219
  %v1236 = vsub.f32 %v1011, %v1220
  %v1237 = vsub.f32 %v1012, %v1221
  %v1238 = vsel %vm1125, %v1129, %v1222
  %v1239 = vsel %vm1125, %v1133, %v1223
  %v1240 = vsel %vm1125, %v1137, %v1224
  %v1241 = vsel %vm1125, %v1141, %v1225
  %v1242 = vsel %vm1125, %v1145, %v1226
  %v1243 = vsel %vm1125, %v1149, %v1227
  %v1244 = vsel %vm1125, %v1153, %v1228
  %v1245 = vsel %vm1125, %v1157, %v1229
  %v1246 = vsel %vm1125, %v1161, %v1230
  %v1247 = vsel %vm1125, %v1165, %v1231
  %v1248 = vsel %vm1125, %v1169, %v1232
  %v1249 = vsel %vm1125, %v1173, %v1233
  %v1250 = vsel %vm1125, %v1177, %v1234
  %v1251 = vsel %vm1125, %v1181, %v1235
  %v1252 = vsel %vm1125, %v1185, %v1236
  %v1253 = vsel %vm1125, %v1189, %v1237
  %1255 = vset.pattern.permute.xlu0 3
  %1256 = vperm.xlu0 %1255, %v1238
  %v1257 = vpop.permute.xlu0 %1256
  %1260 = vset.pattern.permute.xlu0 3
  %1261 = vperm.xlu0 %1260, %v1239
  %v1262 = vpop.permute.xlu0 %1261
  %1265 = vset.pattern.permute.xlu0 3
  %1266 = vperm.xlu0 %1265, %v1240
  %v1267 = vpop.permute.xlu0 %1266
  %1270 = vset.pattern.permute.xlu0 3
  %1271 = vperm.xlu0 %1270, %v1241
  %v1272 = vpop.permute.xlu0 %1271
  %1275 = vset.pattern.permute.xlu0 3
  %1276 = vperm.xlu0 %1275, %v1242
  %v1277 = vpop.permute.xlu0 %1276
  %1280 = vset.pattern.permute.xlu0 3
  %1281 = vperm.xlu0 %1280, %v1243
  %v1282 = vpop.permute.xlu0 %1281
  %1285 = vset.pattern.permute.xlu0 3
  %1286 = vperm.xlu0 %1285, %v1244
  %v1287 = vpop.permute.xlu0 %1286
  %1290 = vset.pattern.permute.xlu0 3
  %1291 = vperm.xlu0 %1290, %v1245
  %v1292 = vpop.permute.xlu0 %1291
  %1295 = vset.pattern.permute.xlu0 3
  %1296 = vperm.xlu0 %1295, %v1246
  %v1297 = vpop.permute.xlu0 %1296
  %1300 = vset.pattern.permute.xlu0 3
  %1301 = vperm.xlu0 %1300, %v1247
  %v1302 = vpop.permute.xlu0 %1301
  %1305 = vset.pattern.permute.xlu0 3
  %1306 = vperm.xlu0 %1305, %v1248
  %v1307 = vpop.permute.xlu0 %1306
  %1310 = vset.pattern.permute.xlu0 3
  %1311 = vperm.xlu0 %1310, %v1249
  %v1312 = vpop.permute.xlu0 %1311
  %1315 = vset.pattern.permute.xlu0 3
  %1316 = vperm.xlu0 %1315, %v1250
  %v1317 = vpop.permute.xlu0 %1316
  %1320 = vset.pattern.permute.xlu0 3
  %1321 = vperm.xlu0 %1320, %v1251
  %v1322 = vpop.permute.xlu0 %1321
  %1325 = vset.pattern.permute.xlu0 3
  %1326 = vperm.xlu0 %1325, %v1252
  %v1327 = vpop.permute.xlu0 %1326
  %1330 = vset.pattern.permute.xlu0 3
  %1331 = vperm.xlu0 %1330, %v1253
  %v1332 = vpop.permute.xlu0 %1331
  %v1334 = vrcp.pop %v1257
  %v1335 = vmul.f32 %v1238, %v1334
  %v1336 = vrcp.pop %v1262
  %v1337 = vmul.f32 %v1239, %v1336
  %v1338 = vrcp.pop %v1267
  %v1339 = vmul.f32 %v1240, %v1338
  %v1340 = vrcp.pop %v1272
  %v1341 = vmul.f32 %v1241, %v1340
  %v1342 = vrcp.pop %v1277
  %v1343 = vmul.f32 %v1242, %v1342
  %v1344 = vrcp.pop %v1282
  %v1345 = vmul.f32 %v1243, %v1344
  %v1346 = vrcp.pop %v1287
  %v1347 = vmul.f32 %v1244, %v1346
  %v1348 = vrcp.pop %v1292
  %v1349 = vmul.f32 %v1245, %v1348
  %v1350 = vrcp.pop %v1297
  %v1351 = vmul.f32 %v1246, %v1350
  %v1352 = vrcp.pop %v1302
  %v1353 = vmul.f32 %v1247, %v1352
  %v1354 = vrcp.pop %v1307
  %v1355 = vmul.f32 %v1248, %v1354
  %v1356 = vrcp.pop %v1312
  %v1357 = vmul.f32 %v1249, %v1356
  %v1358 = vrcp.pop %v1317
  %v1359 = vmul.f32 %v1250, %v1358
  %v1360 = vrcp.pop %v1322
  %v1361 = vmul.f32 %v1251, %v1360
  %v1362 = vrcp.pop %v1327
  %v1363 = vmul.f32 %v1252, %v1362
  %v1364 = vrcp.pop %v1332
  %v1365 = vmul.f32 %v1253, %v1364
  %vm1366 = vcmp.eq.s32.totalorder %v530, 3
  %v1367 = vlaneseq
  %v1368 = vshrl.u32 %v1367, 7
  %v1369 = vsub.s32 3, %v1368
  %v1370 = vrot.slane %v1335, %v1369
  %v1371 = vlaneseq
  %v1372 = vshrl.u32 %v1371, 7
  %v1373 = vsub.s32 3, %v1372
  %v1374 = vrot.slane %v1337, %v1373
  %v1375 = vlaneseq
  %v1376 = vshrl.u32 %v1375, 7
  %v1377 = vsub.s32 3, %v1376
  %v1378 = vrot.slane %v1339, %v1377
  %v1379 = vlaneseq
  %v1380 = vshrl.u32 %v1379, 7
  %v1381 = vsub.s32 3, %v1380
  %v1382 = vrot.slane %v1341, %v1381
  %v1383 = vlaneseq
  %v1384 = vshrl.u32 %v1383, 7
  %v1385 = vsub.s32 3, %v1384
  %v1386 = vrot.slane %v1343, %v1385
  %v1387 = vlaneseq
  %v1388 = vshrl.u32 %v1387, 7
  %v1389 = vsub.s32 3, %v1388
  %v1390 = vrot.slane %v1345, %v1389
  %v1391 = vlaneseq
  %v1392 = vshrl.u32 %v1391, 7
  %v1393 = vsub.s32 3, %v1392
  %v1394 = vrot.slane %v1347, %v1393
  %v1395 = vlaneseq
  %v1396 = vshrl.u32 %v1395, 7
  %v1397 = vsub.s32 3, %v1396
  %v1398 = vrot.slane %v1349, %v1397
  %v1399 = vlaneseq
  %v1400 = vshrl.u32 %v1399, 7
  %v1401 = vsub.s32 3, %v1400
  %v1402 = vrot.slane %v1351, %v1401
  %v1403 = vlaneseq
  %v1404 = vshrl.u32 %v1403, 7
  %v1405 = vsub.s32 3, %v1404
  %v1406 = vrot.slane %v1353, %v1405
  %v1407 = vlaneseq
  %v1408 = vshrl.u32 %v1407, 7
  %v1409 = vsub.s32 3, %v1408
  %v1410 = vrot.slane %v1355, %v1409
  %v1411 = vlaneseq
  %v1412 = vshrl.u32 %v1411, 7
  %v1413 = vsub.s32 3, %v1412
  %v1414 = vrot.slane %v1357, %v1413
  %v1415 = vlaneseq
  %v1416 = vshrl.u32 %v1415, 7
  %v1417 = vsub.s32 3, %v1416
  %v1418 = vrot.slane %v1359, %v1417
  %v1419 = vlaneseq
  %v1420 = vshrl.u32 %v1419, 7
  %v1421 = vsub.s32 3, %v1420
  %v1422 = vrot.slane %v1361, %v1421
  %v1423 = vlaneseq
  %v1424 = vshrl.u32 %v1423, 7
  %v1425 = vsub.s32 3, %v1424
  %v1426 = vrot.slane %v1363, %v1425
  %v1427 = vlaneseq
  %v1428 = vshrl.u32 %v1427, 7
  %v1429 = vsub.s32 3, %v1428
  %v1430 = vrot.slane %v1365, %v1429
  %v1431 = vmul.f32 %v1257, %v1370
  %v1432 = vmul.f32 %v1262, %v1374
  %v1433 = vmul.f32 %v1267, %v1378
  %v1434 = vmul.f32 %v1272, %v1382
  %v1435 = vmul.f32 %v1277, %v1386
  %v1436 = vmul.f32 %v1282, %v1390
  %v1437 = vmul.f32 %v1287, %v1394
  %v1438 = vmul.f32 %v1292, %v1398
  %v1439 = vmul.f32 %v1297, %v1402
  %v1440 = vmul.f32 %v1302, %v1406
  %v1441 = vmul.f32 %v1307, %v1410
  %v1442 = vmul.f32 %v1312, %v1414
  %v1443 = vmul.f32 %v1317, %v1418
  %v1444 = vmul.f32 %v1322, %v1422
  %v1445 = vmul.f32 %v1327, %v1426
  %v1446 = vmul.f32 %v1332, %v1430
  %v1447 = vsel %vm1366, 0.0, %v1431
  %v1448 = vsel %vm1366, 0.0, %v1432
  %v1449 = vsel %vm1366, 0.0, %v1433
  %v1450 = vsel %vm1366, 0.0, %v1434
  %v1451 = vsel %vm1366, 0.0, %v1435
  %v1452 = vsel %vm1366, 0.0, %v1436
  %v1453 = vsel %vm1366, 0.0, %v1437
  %v1454 = vsel %vm1366, 0.0, %v1438
  %v1455 = vsel %vm1366, 0.0, %v1439
  %v1456 = vsel %vm1366, 0.0, %v1440
  %v1457 = vsel %vm1366, 0.0, %v1441
  %v1458 = vsel %vm1366, 0.0, %v1442
  %v1459 = vsel %vm1366, 0.0, %v1443
  %v1460 = vsel %vm1366, 0.0, %v1444
  %v1461 = vsel %vm1366, 0.0, %v1445
  %v1462 = vsel %vm1366, 0.0, %v1446
  %v1463 = vsub.f32 %v1238, %v1447
  %v1464 = vsub.f32 %v1239, %v1448
  %v1465 = vsub.f32 %v1240, %v1449
  %v1466 = vsub.f32 %v1241, %v1450
  %v1467 = vsub.f32 %v1242, %v1451
  %v1468 = vsub.f32 %v1243, %v1452
  %v1469 = vsub.f32 %v1244, %v1453
  %v1470 = vsub.f32 %v1245, %v1454
  %v1471 = vsub.f32 %v1246, %v1455
  %v1472 = vsub.f32 %v1247, %v1456
  %v1473 = vsub.f32 %v1248, %v1457
  %v1474 = vsub.f32 %v1249, %v1458
  %v1475 = vsub.f32 %v1250, %v1459
  %v1476 = vsub.f32 %v1251, %v1460
  %v1477 = vsub.f32 %v1252, %v1461
  %v1478 = vsub.f32 %v1253, %v1462
  %v1479 = vsel %vm1366, %v1370, %v1463
  %v1480 = vsel %vm1366, %v1374, %v1464
  %v1481 = vsel %vm1366, %v1378, %v1465
  %v1482 = vsel %vm1366, %v1382, %v1466
  %v1483 = vsel %vm1366, %v1386, %v1467
  %v1484 = vsel %vm1366, %v1390, %v1468
  %v1485 = vsel %vm1366, %v1394, %v1469
  %v1486 = vsel %vm1366, %v1398, %v1470
  %v1487 = vsel %vm1366, %v1402, %v1471
  %v1488 = vsel %vm1366, %v1406, %v1472
  %v1489 = vsel %vm1366, %v1410, %v1473
  %v1490 = vsel %vm1366, %v1414, %v1474
  %v1491 = vsel %vm1366, %v1418, %v1475
  %v1492 = vsel %vm1366, %v1422, %v1476
  %v1493 = vsel %vm1366, %v1426, %v1477
  %v1494 = vsel %vm1366, %v1430, %v1478
  %1496 = vset.pattern.permute.xlu0 4
  %1497 = vperm.xlu0 %1496, %v1479
  %v1498 = vpop.permute.xlu0 %1497
  %1501 = vset.pattern.permute.xlu0 4
  %1502 = vperm.xlu0 %1501, %v1480
  %v1503 = vpop.permute.xlu0 %1502
  %1506 = vset.pattern.permute.xlu0 4
  %1507 = vperm.xlu0 %1506, %v1481
  %v1508 = vpop.permute.xlu0 %1507
  %1511 = vset.pattern.permute.xlu0 4
  %1512 = vperm.xlu0 %1511, %v1482
  %v1513 = vpop.permute.xlu0 %1512
  %1516 = vset.pattern.permute.xlu0 4
  %1517 = vperm.xlu0 %1516, %v1483
  %v1518 = vpop.permute.xlu0 %1517
  %1521 = vset.pattern.permute.xlu0 4
  %1522 = vperm.xlu0 %1521, %v1484
  %v1523 = vpop.permute.xlu0 %1522
  %1526 = vset.pattern.permute.xlu0 4
  %1527 = vperm.xlu0 %1526, %v1485
  %v1528 = vpop.permute.xlu0 %1527
  %1531 = vset.pattern.permute.xlu0 4
  %1532 = vperm.xlu0 %1531, %v1486
  %v1533 = vpop.permute.xlu0 %1532
  %1536 = vset.pattern.permute.xlu0 4
  %1537 = vperm.xlu0 %1536, %v1487
  %v1538 = vpop.permute.xlu0 %1537
  %1541 = vset.pattern.permute.xlu0 4
  %1542 = vperm.xlu0 %1541, %v1488
  %v1543 = vpop.permute.xlu0 %1542
  %1546 = vset.pattern.permute.xlu0 4
  %1547 = vperm.xlu0 %1546, %v1489
  %v1548 = vpop.permute.xlu0 %1547
  %1551 = vset.pattern.permute.xlu0 4
  %1552 = vperm.xlu0 %1551, %v1490
  %v1553 = vpop.permute.xlu0 %1552
  %1556 = vset.pattern.permute.xlu0 4
  %1557 = vperm.xlu0 %1556, %v1491
  %v1558 = vpop.permute.xlu0 %1557
  %1561 = vset.pattern.permute.xlu0 4
  %1562 = vperm.xlu0 %1561, %v1492
  %v1563 = vpop.permute.xlu0 %1562
  %1566 = vset.pattern.permute.xlu0 4
  %1567 = vperm.xlu0 %1566, %v1493
  %v1568 = vpop.permute.xlu0 %1567
  %1571 = vset.pattern.permute.xlu0 4
  %1572 = vperm.xlu0 %1571, %v1494
  %v1573 = vpop.permute.xlu0 %1572
  %v1575 = vrcp.pop %v1498
  %v1576 = vmul.f32 %v1479, %v1575
  %v1577 = vrcp.pop %v1503
  %v1578 = vmul.f32 %v1480, %v1577
  %v1579 = vrcp.pop %v1508
  %v1580 = vmul.f32 %v1481, %v1579
  %v1581 = vrcp.pop %v1513
  %v1582 = vmul.f32 %v1482, %v1581
  %v1583 = vrcp.pop %v1518
  %v1584 = vmul.f32 %v1483, %v1583
  %v1585 = vrcp.pop %v1523
  %v1586 = vmul.f32 %v1484, %v1585
  %v1587 = vrcp.pop %v1528
  %v1588 = vmul.f32 %v1485, %v1587
  %v1589 = vrcp.pop %v1533
  %v1590 = vmul.f32 %v1486, %v1589
  %v1591 = vrcp.pop %v1538
  %v1592 = vmul.f32 %v1487, %v1591
  %v1593 = vrcp.pop %v1543
  %v1594 = vmul.f32 %v1488, %v1593
  %v1595 = vrcp.pop %v1548
  %v1596 = vmul.f32 %v1489, %v1595
  %v1597 = vrcp.pop %v1553
  %v1598 = vmul.f32 %v1490, %v1597
  %v1599 = vrcp.pop %v1558
  %v1600 = vmul.f32 %v1491, %v1599
  %v1601 = vrcp.pop %v1563
  %v1602 = vmul.f32 %v1492, %v1601
  %v1603 = vrcp.pop %v1568
  %v1604 = vmul.f32 %v1493, %v1603
  %v1605 = vrcp.pop %v1573
  %v1606 = vmul.f32 %v1494, %v1605
  %vm1607 = vcmp.eq.s32.totalorder %v530, 4
  %v1608 = vlaneseq
  %v1609 = vshrl.u32 %v1608, 7
  %v1610 = vsub.s32 4, %v1609
  %v1611 = vrot.slane %v1576, %v1610
  %v1612 = vlaneseq
  %v1613 = vshrl.u32 %v1612, 7
  %v1614 = vsub.s32 4, %v1613
  %v1615 = vrot.slane %v1578, %v1614
  %v1616 = vlaneseq
  %v1617 = vshrl.u32 %v1616, 7
  %v1618 = vsub.s32 4, %v1617
  %v1619 = vrot.slane %v1580, %v1618
  %v1620 = vlaneseq
  %v1621 = vshrl.u32 %v1620, 7
  %v1622 = vsub.s32 4, %v1621
  %v1623 = vrot.slane %v1582, %v1622
  %v1624 = vlaneseq
  %v1625 = vshrl.u32 %v1624, 7
  %v1626 = vsub.s32 4, %v1625
  %v1627 = vrot.slane %v1584, %v1626
  %v1628 = vlaneseq
  %v1629 = vshrl.u32 %v1628, 7
  %v1630 = vsub.s32 4, %v1629
  %v1631 = vrot.slane %v1586, %v1630
  %v1632 = vlaneseq
  %v1633 = vshrl.u32 %v1632, 7
  %v1634 = vsub.s32 4, %v1633
  %v1635 = vrot.slane %v1588, %v1634
  %v1636 = vlaneseq
  %v1637 = vshrl.u32 %v1636, 7
  %v1638 = vsub.s32 4, %v1637
  %v1639 = vrot.slane %v1590, %v1638
  %v1640 = vlaneseq
  %v1641 = vshrl.u32 %v1640, 7
  %v1642 = vsub.s32 4, %v1641
  %v1643 = vrot.slane %v1592, %v1642
  %v1644 = vlaneseq
  %v1645 = vshrl.u32 %v1644, 7
  %v1646 = vsub.s32 4, %v1645
  %v1647 = vrot.slane %v1594, %v1646
  %v1648 = vlaneseq
  %v1649 = vshrl.u32 %v1648, 7
  %v1650 = vsub.s32 4, %v1649
  %v1651 = vrot.slane %v1596, %v1650
  %v1652 = vlaneseq
  %v1653 = vshrl.u32 %v1652, 7
  %v1654 = vsub.s32 4, %v1653
  %v1655 = vrot.slane %v1598, %v1654
  %v1656 = vlaneseq
  %v1657 = vshrl.u32 %v1656, 7
  %v1658 = vsub.s32 4, %v1657
  %v1659 = vrot.slane %v1600, %v1658
  %v1660 = vlaneseq
  %v1661 = vshrl.u32 %v1660, 7
  %v1662 = vsub.s32 4, %v1661
  %v1663 = vrot.slane %v1602, %v1662
  %v1664 = vlaneseq
  %v1665 = vshrl.u32 %v1664, 7
  %v1666 = vsub.s32 4, %v1665
  %v1667 = vrot.slane %v1604, %v1666
  %v1668 = vlaneseq
  %v1669 = vshrl.u32 %v1668, 7
  %v1670 = vsub.s32 4, %v1669
  %v1671 = vrot.slane %v1606, %v1670
  %v1672 = vmul.f32 %v1498, %v1611
  %v1673 = vmul.f32 %v1503, %v1615
  %v1674 = vmul.f32 %v1508, %v1619
  %v1675 = vmul.f32 %v1513, %v1623
  %v1676 = vmul.f32 %v1518, %v1627
  %v1677 = vmul.f32 %v1523, %v1631
  %v1678 = vmul.f32 %v1528, %v1635
  %v1679 = vmul.f32 %v1533, %v1639
  %v1680 = vmul.f32 %v1538, %v1643
  %v1681 = vmul.f32 %v1543, %v1647
  %v1682 = vmul.f32 %v1548, %v1651
  %v1683 = vmul.f32 %v1553, %v1655
  %v1684 = vmul.f32 %v1558, %v1659
  %v1685 = vmul.f32 %v1563, %v1663
  %v1686 = vmul.f32 %v1568, %v1667
  %v1687 = vmul.f32 %v1573, %v1671
  %v1688 = vsel %vm1607, 0.0, %v1672
  %v1689 = vsel %vm1607, 0.0, %v1673
  %v1690 = vsel %vm1607, 0.0, %v1674
  %v1691 = vsel %vm1607, 0.0, %v1675
  %v1692 = vsel %vm1607, 0.0, %v1676
  %v1693 = vsel %vm1607, 0.0, %v1677
  %v1694 = vsel %vm1607, 0.0, %v1678
  %v1695 = vsel %vm1607, 0.0, %v1679
  %v1696 = vsel %vm1607, 0.0, %v1680
  %v1697 = vsel %vm1607, 0.0, %v1681
  %v1698 = vsel %vm1607, 0.0, %v1682
  %v1699 = vsel %vm1607, 0.0, %v1683
  %v1700 = vsel %vm1607, 0.0, %v1684
  %v1701 = vsel %vm1607, 0.0, %v1685
  %v1702 = vsel %vm1607, 0.0, %v1686
  %v1703 = vsel %vm1607, 0.0, %v1687
  %v1704 = vsub.f32 %v1479, %v1688
  %v1705 = vsub.f32 %v1480, %v1689
  %v1706 = vsub.f32 %v1481, %v1690
  %v1707 = vsub.f32 %v1482, %v1691
  %v1708 = vsub.f32 %v1483, %v1692
  %v1709 = vsub.f32 %v1484, %v1693
  %v1710 = vsub.f32 %v1485, %v1694
  %v1711 = vsub.f32 %v1486, %v1695
  %v1712 = vsub.f32 %v1487, %v1696
  %v1713 = vsub.f32 %v1488, %v1697
  %v1714 = vsub.f32 %v1489, %v1698
  %v1715 = vsub.f32 %v1490, %v1699
  %v1716 = vsub.f32 %v1491, %v1700
  %v1717 = vsub.f32 %v1492, %v1701
  %v1718 = vsub.f32 %v1493, %v1702
  %v1719 = vsub.f32 %v1494, %v1703
  %v1720 = vsel %vm1607, %v1611, %v1704
  %v1721 = vsel %vm1607, %v1615, %v1705
  %v1722 = vsel %vm1607, %v1619, %v1706
  %v1723 = vsel %vm1607, %v1623, %v1707
  %v1724 = vsel %vm1607, %v1627, %v1708
  %v1725 = vsel %vm1607, %v1631, %v1709
  %v1726 = vsel %vm1607, %v1635, %v1710
  %v1727 = vsel %vm1607, %v1639, %v1711
  %v1728 = vsel %vm1607, %v1643, %v1712
  %v1729 = vsel %vm1607, %v1647, %v1713
  %v1730 = vsel %vm1607, %v1651, %v1714
  %v1731 = vsel %vm1607, %v1655, %v1715
  %v1732 = vsel %vm1607, %v1659, %v1716
  %v1733 = vsel %vm1607, %v1663, %v1717
  %v1734 = vsel %vm1607, %v1667, %v1718
  %v1735 = vsel %vm1607, %v1671, %v1719
  %1737 = vset.pattern.permute.xlu0 5
  %1738 = vperm.xlu0 %1737, %v1720
  %v1739 = vpop.permute.xlu0 %1738
  %1742 = vset.pattern.permute.xlu0 5
  %1743 = vperm.xlu0 %1742, %v1721
  %v1744 = vpop.permute.xlu0 %1743
  %1747 = vset.pattern.permute.xlu0 5
  %1748 = vperm.xlu0 %1747, %v1722
  %v1749 = vpop.permute.xlu0 %1748
  %1752 = vset.pattern.permute.xlu0 5
  %1753 = vperm.xlu0 %1752, %v1723
  %v1754 = vpop.permute.xlu0 %1753
  %1757 = vset.pattern.permute.xlu0 5
  %1758 = vperm.xlu0 %1757, %v1724
  %v1759 = vpop.permute.xlu0 %1758
  %1762 = vset.pattern.permute.xlu0 5
  %1763 = vperm.xlu0 %1762, %v1725
  %v1764 = vpop.permute.xlu0 %1763
  %1767 = vset.pattern.permute.xlu0 5
  %1768 = vperm.xlu0 %1767, %v1726
  %v1769 = vpop.permute.xlu0 %1768
  %1772 = vset.pattern.permute.xlu0 5
  %1773 = vperm.xlu0 %1772, %v1727
  %v1774 = vpop.permute.xlu0 %1773
  %1777 = vset.pattern.permute.xlu0 5
  %1778 = vperm.xlu0 %1777, %v1728
  %v1779 = vpop.permute.xlu0 %1778
  %1782 = vset.pattern.permute.xlu0 5
  %1783 = vperm.xlu0 %1782, %v1729
  %v1784 = vpop.permute.xlu0 %1783
  %1787 = vset.pattern.permute.xlu0 5
  %1788 = vperm.xlu0 %1787, %v1730
  %v1789 = vpop.permute.xlu0 %1788
  %1792 = vset.pattern.permute.xlu0 5
  %1793 = vperm.xlu0 %1792, %v1731
  %v1794 = vpop.permute.xlu0 %1793
  %1797 = vset.pattern.permute.xlu0 5
  %1798 = vperm.xlu0 %1797, %v1732
  %v1799 = vpop.permute.xlu0 %1798
  %1802 = vset.pattern.permute.xlu0 5
  %1803 = vperm.xlu0 %1802, %v1733
  %v1804 = vpop.permute.xlu0 %1803
  %1807 = vset.pattern.permute.xlu0 5
  %1808 = vperm.xlu0 %1807, %v1734
  %v1809 = vpop.permute.xlu0 %1808
  %1812 = vset.pattern.permute.xlu0 5
  %1813 = vperm.xlu0 %1812, %v1735
  %v1814 = vpop.permute.xlu0 %1813
  %v1816 = vrcp.pop %v1739
  %v1817 = vmul.f32 %v1720, %v1816
  %v1818 = vrcp.pop %v1744
  %v1819 = vmul.f32 %v1721, %v1818
  %v1820 = vrcp.pop %v1749
  %v1821 = vmul.f32 %v1722, %v1820
  %v1822 = vrcp.pop %v1754
  %v1823 = vmul.f32 %v1723, %v1822
  %v1824 = vrcp.pop %v1759
  %v1825 = vmul.f32 %v1724, %v1824
  %v1826 = vrcp.pop %v1764
  %v1827 = vmul.f32 %v1725, %v1826
  %v1828 = vrcp.pop %v1769
  %v1829 = vmul.f32 %v1726, %v1828
  %v1830 = vrcp.pop %v1774
  %v1831 = vmul.f32 %v1727, %v1830
  %v1832 = vrcp.pop %v1779
  %v1833 = vmul.f32 %v1728, %v1832
  %v1834 = vrcp.pop %v1784
  %v1835 = vmul.f32 %v1729, %v1834
  %v1836 = vrcp.pop %v1789
  %v1837 = vmul.f32 %v1730, %v1836
  %v1838 = vrcp.pop %v1794
  %v1839 = vmul.f32 %v1731, %v1838
  %v1840 = vrcp.pop %v1799
  %v1841 = vmul.f32 %v1732, %v1840
  %v1842 = vrcp.pop %v1804
  %v1843 = vmul.f32 %v1733, %v1842
  %v1844 = vrcp.pop %v1809
  %v1845 = vmul.f32 %v1734, %v1844
  %v1846 = vrcp.pop %v1814
  %v1847 = vmul.f32 %v1735, %v1846
  %vm1848 = vcmp.eq.s32.totalorder %v530, 5
  %v1849 = vlaneseq
  %v1850 = vshrl.u32 %v1849, 7
  %v1851 = vsub.s32 5, %v1850
  %v1852 = vrot.slane %v1817, %v1851
  %v1853 = vlaneseq
  %v1854 = vshrl.u32 %v1853, 7
  %v1855 = vsub.s32 5, %v1854
  %v1856 = vrot.slane %v1819, %v1855
  %v1857 = vlaneseq
  %v1858 = vshrl.u32 %v1857, 7
  %v1859 = vsub.s32 5, %v1858
  %v1860 = vrot.slane %v1821, %v1859
  %v1861 = vlaneseq
  %v1862 = vshrl.u32 %v1861, 7
  %v1863 = vsub.s32 5, %v1862
  %v1864 = vrot.slane %v1823, %v1863
  %v1865 = vlaneseq
  %v1866 = vshrl.u32 %v1865, 7
  %v1867 = vsub.s32 5, %v1866
  %v1868 = vrot.slane %v1825, %v1867
  %v1869 = vlaneseq
  %v1870 = vshrl.u32 %v1869, 7
  %v1871 = vsub.s32 5, %v1870
  %v1872 = vrot.slane %v1827, %v1871
  %v1873 = vlaneseq
  %v1874 = vshrl.u32 %v1873, 7
  %v1875 = vsub.s32 5, %v1874
  %v1876 = vrot.slane %v1829, %v1875
  %v1877 = vlaneseq
  %v1878 = vshrl.u32 %v1877, 7
  %v1879 = vsub.s32 5, %v1878
  %v1880 = vrot.slane %v1831, %v1879
  %v1881 = vlaneseq
  %v1882 = vshrl.u32 %v1881, 7
  %v1883 = vsub.s32 5, %v1882
  %v1884 = vrot.slane %v1833, %v1883
  %v1885 = vlaneseq
  %v1886 = vshrl.u32 %v1885, 7
  %v1887 = vsub.s32 5, %v1886
  %v1888 = vrot.slane %v1835, %v1887
  %v1889 = vlaneseq
  %v1890 = vshrl.u32 %v1889, 7
  %v1891 = vsub.s32 5, %v1890
  %v1892 = vrot.slane %v1837, %v1891
  %v1893 = vlaneseq
  %v1894 = vshrl.u32 %v1893, 7
  %v1895 = vsub.s32 5, %v1894
  %v1896 = vrot.slane %v1839, %v1895
  %v1897 = vlaneseq
  %v1898 = vshrl.u32 %v1897, 7
  %v1899 = vsub.s32 5, %v1898
  %v1900 = vrot.slane %v1841, %v1899
  %v1901 = vlaneseq
  %v1902 = vshrl.u32 %v1901, 7
  %v1903 = vsub.s32 5, %v1902
  %v1904 = vrot.slane %v1843, %v1903
  %v1905 = vlaneseq
  %v1906 = vshrl.u32 %v1905, 7
  %v1907 = vsub.s32 5, %v1906
  %v1908 = vrot.slane %v1845, %v1907
  %v1909 = vlaneseq
  %v1910 = vshrl.u32 %v1909, 7
  %v1911 = vsub.s32 5, %v1910
  %v1912 = vrot.slane %v1847, %v1911
  %v1913 = vmul.f32 %v1739, %v1852
  %v1914 = vmul.f32 %v1744, %v1856
  %v1915 = vmul.f32 %v1749, %v1860
  %v1916 = vmul.f32 %v1754, %v1864
  %v1917 = vmul.f32 %v1759, %v1868
  %v1918 = vmul.f32 %v1764, %v1872
  %v1919 = vmul.f32 %v1769, %v1876
  %v1920 = vmul.f32 %v1774, %v1880
  %v1921 = vmul.f32 %v1779, %v1884
  %v1922 = vmul.f32 %v1784, %v1888
  %v1923 = vmul.f32 %v1789, %v1892
  %v1924 = vmul.f32 %v1794, %v1896
  %v1925 = vmul.f32 %v1799, %v1900
  %v1926 = vmul.f32 %v1804, %v1904
  %v1927 = vmul.f32 %v1809, %v1908
  %v1928 = vmul.f32 %v1814, %v1912
  %v1929 = vsel %vm1848, 0.0, %v1913
  %v1930 = vsel %vm1848, 0.0, %v1914
  %v1931 = vsel %vm1848, 0.0, %v1915
  %v1932 = vsel %vm1848, 0.0, %v1916
  %v1933 = vsel %vm1848, 0.0, %v1917
  %v1934 = vsel %vm1848, 0.0, %v1918
  %v1935 = vsel %vm1848, 0.0, %v1919
  %v1936 = vsel %vm1848, 0.0, %v1920
  %v1937 = vsel %vm1848, 0.0, %v1921
  %v1938 = vsel %vm1848, 0.0, %v1922
  %v1939 = vsel %vm1848, 0.0, %v1923
  %v1940 = vsel %vm1848, 0.0, %v1924
  %v1941 = vsel %vm1848, 0.0, %v1925
  %v1942 = vsel %vm1848, 0.0, %v1926
  %v1943 = vsel %vm1848, 0.0, %v1927
  %v1944 = vsel %vm1848, 0.0, %v1928
  %v1945 = vsub.f32 %v1720, %v1929
  %v1946 = vsub.f32 %v1721, %v1930
  %v1947 = vsub.f32 %v1722, %v1931
  %v1948 = vsub.f32 %v1723, %v1932
  %v1949 = vsub.f32 %v1724, %v1933
  %v1950 = vsub.f32 %v1725, %v1934
  %v1951 = vsub.f32 %v1726, %v1935
  %v1952 = vsub.f32 %v1727, %v1936
  %v1953 = vsub.f32 %v1728, %v1937
  %v1954 = vsub.f32 %v1729, %v1938
  %v1955 = vsub.f32 %v1730, %v1939
  %v1956 = vsub.f32 %v1731, %v1940
  %v1957 = vsub.f32 %v1732, %v1941
  %v1958 = vsub.f32 %v1733, %v1942
  %v1959 = vsub.f32 %v1734, %v1943
  %v1960 = vsub.f32 %v1735, %v1944
  %v1961 = vsel %vm1848, %v1852, %v1945
  %v1962 = vsel %vm1848, %v1856, %v1946
  %v1963 = vsel %vm1848, %v1860, %v1947
  %v1964 = vsel %vm1848, %v1864, %v1948
  %v1965 = vsel %vm1848, %v1868, %v1949
  %v1966 = vsel %vm1848, %v1872, %v1950
  %v1967 = vsel %vm1848, %v1876, %v1951
  %v1968 = vsel %vm1848, %v1880, %v1952
  %v1969 = vsel %vm1848, %v1884, %v1953
  %v1970 = vsel %vm1848, %v1888, %v1954
  %v1971 = vsel %vm1848, %v1892, %v1955
  %v1972 = vsel %vm1848, %v1896, %v1956
  %v1973 = vsel %vm1848, %v1900, %v1957
  %v1974 = vsel %vm1848, %v1904, %v1958
  %v1975 = vsel %vm1848, %v1908, %v1959
  %v1976 = vsel %vm1848, %v1912, %v1960
  %1978 = vset.pattern.permute.xlu0 6
  %1979 = vperm.xlu0 %1978, %v1961
  %v1980 = vpop.permute.xlu0 %1979
  %1983 = vset.pattern.permute.xlu0 6
  %1984 = vperm.xlu0 %1983, %v1962
  %v1985 = vpop.permute.xlu0 %1984
  %1988 = vset.pattern.permute.xlu0 6
  %1989 = vperm.xlu0 %1988, %v1963
  %v1990 = vpop.permute.xlu0 %1989
  %1993 = vset.pattern.permute.xlu0 6
  %1994 = vperm.xlu0 %1993, %v1964
  %v1995 = vpop.permute.xlu0 %1994
  %1998 = vset.pattern.permute.xlu0 6
  %1999 = vperm.xlu0 %1998, %v1965
  %v2000 = vpop.permute.xlu0 %1999
  %2003 = vset.pattern.permute.xlu0 6
  %2004 = vperm.xlu0 %2003, %v1966
  %v2005 = vpop.permute.xlu0 %2004
  %2008 = vset.pattern.permute.xlu0 6
  %2009 = vperm.xlu0 %2008, %v1967
  %v2010 = vpop.permute.xlu0 %2009
  %2013 = vset.pattern.permute.xlu0 6
  %2014 = vperm.xlu0 %2013, %v1968
  %v2015 = vpop.permute.xlu0 %2014
  %2018 = vset.pattern.permute.xlu0 6
  %2019 = vperm.xlu0 %2018, %v1969
  %v2020 = vpop.permute.xlu0 %2019
  %2023 = vset.pattern.permute.xlu0 6
  %2024 = vperm.xlu0 %2023, %v1970
  %v2025 = vpop.permute.xlu0 %2024
  %2028 = vset.pattern.permute.xlu0 6
  %2029 = vperm.xlu0 %2028, %v1971
  %v2030 = vpop.permute.xlu0 %2029
  %2033 = vset.pattern.permute.xlu0 6
  %2034 = vperm.xlu0 %2033, %v1972
  %v2035 = vpop.permute.xlu0 %2034
  %2038 = vset.pattern.permute.xlu0 6
  %2039 = vperm.xlu0 %2038, %v1973
  %v2040 = vpop.permute.xlu0 %2039
  %2043 = vset.pattern.permute.xlu0 6
  %2044 = vperm.xlu0 %2043, %v1974
  %v2045 = vpop.permute.xlu0 %2044
  %2048 = vset.pattern.permute.xlu0 6
  %2049 = vperm.xlu0 %2048, %v1975
  %v2050 = vpop.permute.xlu0 %2049
  %2053 = vset.pattern.permute.xlu0 6
  %2054 = vperm.xlu0 %2053, %v1976
  %v2055 = vpop.permute.xlu0 %2054
  %v2057 = vrcp.pop %v1980
  %v2058 = vmul.f32 %v1961, %v2057
  %v2059 = vrcp.pop %v1985
  %v2060 = vmul.f32 %v1962, %v2059
  %v2061 = vrcp.pop %v1990
  %v2062 = vmul.f32 %v1963, %v2061
  %v2063 = vrcp.pop %v1995
  %v2064 = vmul.f32 %v1964, %v2063
  %v2065 = vrcp.pop %v2000
  %v2066 = vmul.f32 %v1965, %v2065
  %v2067 = vrcp.pop %v2005
  %v2068 = vmul.f32 %v1966, %v2067
  %v2069 = vrcp.pop %v2010
  %v2070 = vmul.f32 %v1967, %v2069
  %v2071 = vrcp.pop %v2015
  %v2072 = vmul.f32 %v1968, %v2071
  %v2073 = vrcp.pop %v2020
  %v2074 = vmul.f32 %v1969, %v2073
  %v2075 = vrcp.pop %v2025
  %v2076 = vmul.f32 %v1970, %v2075
  %v2077 = vrcp.pop %v2030
  %v2078 = vmul.f32 %v1971, %v2077
  %v2079 = vrcp.pop %v2035
  %v2080 = vmul.f32 %v1972, %v2079
  %v2081 = vrcp.pop %v2040
  %v2082 = vmul.f32 %v1973, %v2081
  %v2083 = vrcp.pop %v2045
  %v2084 = vmul.f32 %v1974, %v2083
  %v2085 = vrcp.pop %v2050
  %v2086 = vmul.f32 %v1975, %v2085
  %v2087 = vrcp.pop %v2055
  %v2088 = vmul.f32 %v1976, %v2087
  %vm2089 = vcmp.eq.s32.totalorder %v530, 6
  %v2090 = vlaneseq
  %v2091 = vshrl.u32 %v2090, 7
  %v2092 = vsub.s32 6, %v2091
  %v2093 = vrot.slane %v2058, %v2092
  %v2094 = vlaneseq
  %v2095 = vshrl.u32 %v2094, 7
  %v2096 = vsub.s32 6, %v2095
  %v2097 = vrot.slane %v2060, %v2096
  %v2098 = vlaneseq
  %v2099 = vshrl.u32 %v2098, 7
  %v2100 = vsub.s32 6, %v2099
  %v2101 = vrot.slane %v2062, %v2100
  %v2102 = vlaneseq
  %v2103 = vshrl.u32 %v2102, 7
  %v2104 = vsub.s32 6, %v2103
  %v2105 = vrot.slane %v2064, %v2104
  %v2106 = vlaneseq
  %v2107 = vshrl.u32 %v2106, 7
  %v2108 = vsub.s32 6, %v2107
  %v2109 = vrot.slane %v2066, %v2108
  %v2110 = vlaneseq
  %v2111 = vshrl.u32 %v2110, 7
  %v2112 = vsub.s32 6, %v2111
  %v2113 = vrot.slane %v2068, %v2112
  %v2114 = vlaneseq
  %v2115 = vshrl.u32 %v2114, 7
  %v2116 = vsub.s32 6, %v2115
  %v2117 = vrot.slane %v2070, %v2116
  %v2118 = vlaneseq
  %v2119 = vshrl.u32 %v2118, 7
  %v2120 = vsub.s32 6, %v2119
  %v2121 = vrot.slane %v2072, %v2120
  %v2122 = vlaneseq
  %v2123 = vshrl.u32 %v2122, 7
  %v2124 = vsub.s32 6, %v2123
  %v2125 = vrot.slane %v2074, %v2124
  %v2126 = vlaneseq
  %v2127 = vshrl.u32 %v2126, 7
  %v2128 = vsub.s32 6, %v2127
  %v2129 = vrot.slane %v2076, %v2128
  %v2130 = vlaneseq
  %v2131 = vshrl.u32 %v2130, 7
  %v2132 = vsub.s32 6, %v2131
  %v2133 = vrot.slane %v2078, %v2132
  %v2134 = vlaneseq
  %v2135 = vshrl.u32 %v2134, 7
  %v2136 = vsub.s32 6, %v2135
  %v2137 = vrot.slane %v2080, %v2136
  %v2138 = vlaneseq
  %v2139 = vshrl.u32 %v2138, 7
  %v2140 = vsub.s32 6, %v2139
  %v2141 = vrot.slane %v2082, %v2140
  %v2142 = vlaneseq
  %v2143 = vshrl.u32 %v2142, 7
  %v2144 = vsub.s32 6, %v2143
  %v2145 = vrot.slane %v2084, %v2144
  %v2146 = vlaneseq
  %v2147 = vshrl.u32 %v2146, 7
  %v2148 = vsub.s32 6, %v2147
  %v2149 = vrot.slane %v2086, %v2148
  %v2150 = vlaneseq
  %v2151 = vshrl.u32 %v2150, 7
  %v2152 = vsub.s32 6, %v2151
  %v2153 = vrot.slane %v2088, %v2152
  %v2154 = vmul.f32 %v1980, %v2093
  %v2155 = vmul.f32 %v1985, %v2097
  %v2156 = vmul.f32 %v1990, %v2101
  %v2157 = vmul.f32 %v1995, %v2105
  %v2158 = vmul.f32 %v2000, %v2109
  %v2159 = vmul.f32 %v2005, %v2113
  %v2160 = vmul.f32 %v2010, %v2117
  %v2161 = vmul.f32 %v2015, %v2121
  %v2162 = vmul.f32 %v2020, %v2125
  %v2163 = vmul.f32 %v2025, %v2129
  %v2164 = vmul.f32 %v2030, %v2133
  %v2165 = vmul.f32 %v2035, %v2137
  %v2166 = vmul.f32 %v2040, %v2141
  %v2167 = vmul.f32 %v2045, %v2145
  %v2168 = vmul.f32 %v2050, %v2149
  %v2169 = vmul.f32 %v2055, %v2153
  %v2170 = vsel %vm2089, 0.0, %v2154
  %v2171 = vsel %vm2089, 0.0, %v2155
  %v2172 = vsel %vm2089, 0.0, %v2156
  %v2173 = vsel %vm2089, 0.0, %v2157
  %v2174 = vsel %vm2089, 0.0, %v2158
  %v2175 = vsel %vm2089, 0.0, %v2159
  %v2176 = vsel %vm2089, 0.0, %v2160
  %v2177 = vsel %vm2089, 0.0, %v2161
  %v2178 = vsel %vm2089, 0.0, %v2162
  %v2179 = vsel %vm2089, 0.0, %v2163
  %v2180 = vsel %vm2089, 0.0, %v2164
  %v2181 = vsel %vm2089, 0.0, %v2165
  %v2182 = vsel %vm2089, 0.0, %v2166
  %v2183 = vsel %vm2089, 0.0, %v2167
  %v2184 = vsel %vm2089, 0.0, %v2168
  %v2185 = vsel %vm2089, 0.0, %v2169
  %v2186 = vsub.f32 %v1961, %v2170
  %v2187 = vsub.f32 %v1962, %v2171
  %v2188 = vsub.f32 %v1963, %v2172
  %v2189 = vsub.f32 %v1964, %v2173
  %v2190 = vsub.f32 %v1965, %v2174
  %v2191 = vsub.f32 %v1966, %v2175
  %v2192 = vsub.f32 %v1967, %v2176
  %v2193 = vsub.f32 %v1968, %v2177
  %v2194 = vsub.f32 %v1969, %v2178
  %v2195 = vsub.f32 %v1970, %v2179
  %v2196 = vsub.f32 %v1971, %v2180
  %v2197 = vsub.f32 %v1972, %v2181
  %v2198 = vsub.f32 %v1973, %v2182
  %v2199 = vsub.f32 %v1974, %v2183
  %v2200 = vsub.f32 %v1975, %v2184
  %v2201 = vsub.f32 %v1976, %v2185
  %v2202 = vsel %vm2089, %v2093, %v2186
  %v2203 = vsel %vm2089, %v2097, %v2187
  %v2204 = vsel %vm2089, %v2101, %v2188
  %v2205 = vsel %vm2089, %v2105, %v2189
  %v2206 = vsel %vm2089, %v2109, %v2190
  %v2207 = vsel %vm2089, %v2113, %v2191
  %v2208 = vsel %vm2089, %v2117, %v2192
  %v2209 = vsel %vm2089, %v2121, %v2193
  %v2210 = vsel %vm2089, %v2125, %v2194
  %v2211 = vsel %vm2089, %v2129, %v2195
  %v2212 = vsel %vm2089, %v2133, %v2196
  %v2213 = vsel %vm2089, %v2137, %v2197
  %v2214 = vsel %vm2089, %v2141, %v2198
  %v2215 = vsel %vm2089, %v2145, %v2199
  %v2216 = vsel %vm2089, %v2149, %v2200
  %v2217 = vsel %vm2089, %v2153, %v2201
  %2219 = vset.pattern.permute.xlu0 7
  %2220 = vperm.xlu0 %2219, %v2202
  %v2221 = vpop.permute.xlu0 %2220
  %2224 = vset.pattern.permute.xlu0 7
  %2225 = vperm.xlu0 %2224, %v2203
  %v2226 = vpop.permute.xlu0 %2225
  %2229 = vset.pattern.permute.xlu0 7
  %2230 = vperm.xlu0 %2229, %v2204
  %v2231 = vpop.permute.xlu0 %2230
  %2234 = vset.pattern.permute.xlu0 7
  %2235 = vperm.xlu0 %2234, %v2205
  %v2236 = vpop.permute.xlu0 %2235
  %2239 = vset.pattern.permute.xlu0 7
  %2240 = vperm.xlu0 %2239, %v2206
  %v2241 = vpop.permute.xlu0 %2240
  %2244 = vset.pattern.permute.xlu0 7
  %2245 = vperm.xlu0 %2244, %v2207
  %v2246 = vpop.permute.xlu0 %2245
  %2249 = vset.pattern.permute.xlu0 7
  %2250 = vperm.xlu0 %2249, %v2208
  %v2251 = vpop.permute.xlu0 %2250
  %2254 = vset.pattern.permute.xlu0 7
  %2255 = vperm.xlu0 %2254, %v2209
  %v2256 = vpop.permute.xlu0 %2255
  %2259 = vset.pattern.permute.xlu0 7
  %2260 = vperm.xlu0 %2259, %v2210
  %v2261 = vpop.permute.xlu0 %2260
  %2264 = vset.pattern.permute.xlu0 7
  %2265 = vperm.xlu0 %2264, %v2211
  %v2266 = vpop.permute.xlu0 %2265
  %2269 = vset.pattern.permute.xlu0 7
  %2270 = vperm.xlu0 %2269, %v2212
  %v2271 = vpop.permute.xlu0 %2270
  %2274 = vset.pattern.permute.xlu0 7
  %2275 = vperm.xlu0 %2274, %v2213
  %v2276 = vpop.permute.xlu0 %2275
  %2279 = vset.pattern.permute.xlu0 7
  %2280 = vperm.xlu0 %2279, %v2214
  %v2281 = vpop.permute.xlu0 %2280
  %2284 = vset.pattern.permute.xlu0 7
  %2285 = vperm.xlu0 %2284, %v2215
  %v2286 = vpop.permute.xlu0 %2285
  %2289 = vset.pattern.permute.xlu0 7
  %2290 = vperm.xlu0 %2289, %v2216
  %v2291 = vpop.permute.xlu0 %2290
  %2294 = vset.pattern.permute.xlu0 7
  %2295 = vperm.xlu0 %2294, %v2217
  %v2296 = vpop.permute.xlu0 %2295
  %v2298 = vrcp.pop %v2221
  %v2299 = vmul.f32 %v2202, %v2298
  %v2300 = vrcp.pop %v2226
  %v2301 = vmul.f32 %v2203, %v2300
  %v2302 = vrcp.pop %v2231
  %v2303 = vmul.f32 %v2204, %v2302
  %v2304 = vrcp.pop %v2236
  %v2305 = vmul.f32 %v2205, %v2304
  %v2306 = vrcp.pop %v2241
  %v2307 = vmul.f32 %v2206, %v2306
  %v2308 = vrcp.pop %v2246
  %v2309 = vmul.f32 %v2207, %v2308
  %v2310 = vrcp.pop %v2251
  %v2311 = vmul.f32 %v2208, %v2310
  %v2312 = vrcp.pop %v2256
  %v2313 = vmul.f32 %v2209, %v2312
  %v2314 = vrcp.pop %v2261
  %v2315 = vmul.f32 %v2210, %v2314
  %v2316 = vrcp.pop %v2266
  %v2317 = vmul.f32 %v2211, %v2316
  %v2318 = vrcp.pop %v2271
  %v2319 = vmul.f32 %v2212, %v2318
  %v2320 = vrcp.pop %v2276
  %v2321 = vmul.f32 %v2213, %v2320
  %v2322 = vrcp.pop %v2281
  %v2323 = vmul.f32 %v2214, %v2322
  %v2324 = vrcp.pop %v2286
  %v2325 = vmul.f32 %v2215, %v2324
  %v2326 = vrcp.pop %v2291
  %v2327 = vmul.f32 %v2216, %v2326
  %v2328 = vrcp.pop %v2296
  %v2329 = vmul.f32 %v2217, %v2328
  %vm2330 = vcmp.eq.s32.totalorder %v530, 7
  %v2331 = vlaneseq
  %v2332 = vshrl.u32 %v2331, 7
  %v2333 = vsub.s32 7, %v2332
  %v2334 = vrot.slane %v2299, %v2333
  %v2335 = vlaneseq
  %v2336 = vshrl.u32 %v2335, 7
  %v2337 = vsub.s32 7, %v2336
  %v2338 = vrot.slane %v2301, %v2337
  %v2339 = vlaneseq
  %v2340 = vshrl.u32 %v2339, 7
  %v2341 = vsub.s32 7, %v2340
  %v2342 = vrot.slane %v2303, %v2341
  %v2343 = vlaneseq
  %v2344 = vshrl.u32 %v2343, 7
  %v2345 = vsub.s32 7, %v2344
  %v2346 = vrot.slane %v2305, %v2345
  %v2347 = vlaneseq
  %v2348 = vshrl.u32 %v2347, 7
  %v2349 = vsub.s32 7, %v2348
  %v2350 = vrot.slane %v2307, %v2349
  %v2351 = vlaneseq
  %v2352 = vshrl.u32 %v2351, 7
  %v2353 = vsub.s32 7, %v2352
  %v2354 = vrot.slane %v2309, %v2353
  %v2355 = vlaneseq
  %v2356 = vshrl.u32 %v2355, 7
  %v2357 = vsub.s32 7, %v2356
  %v2358 = vrot.slane %v2311, %v2357
  %v2359 = vlaneseq
  %v2360 = vshrl.u32 %v2359, 7
  %v2361 = vsub.s32 7, %v2360
  %v2362 = vrot.slane %v2313, %v2361
  %v2363 = vlaneseq
  %v2364 = vshrl.u32 %v2363, 7
  %v2365 = vsub.s32 7, %v2364
  %v2366 = vrot.slane %v2315, %v2365
  %v2367 = vlaneseq
  %v2368 = vshrl.u32 %v2367, 7
  %v2369 = vsub.s32 7, %v2368
  %v2370 = vrot.slane %v2317, %v2369
  %v2371 = vlaneseq
  %v2372 = vshrl.u32 %v2371, 7
  %v2373 = vsub.s32 7, %v2372
  %v2374 = vrot.slane %v2319, %v2373
  %v2375 = vlaneseq
  %v2376 = vshrl.u32 %v2375, 7
  %v2377 = vsub.s32 7, %v2376
  %v2378 = vrot.slane %v2321, %v2377
  %v2379 = vlaneseq
  %v2380 = vshrl.u32 %v2379, 7
  %v2381 = vsub.s32 7, %v2380
  %v2382 = vrot.slane %v2323, %v2381
  %v2383 = vlaneseq
  %v2384 = vshrl.u32 %v2383, 7
  %v2385 = vsub.s32 7, %v2384
  %v2386 = vrot.slane %v2325, %v2385
  %v2387 = vlaneseq
  %v2388 = vshrl.u32 %v2387, 7
  %v2389 = vsub.s32 7, %v2388
  %v2390 = vrot.slane %v2327, %v2389
  %v2391 = vlaneseq
  %v2392 = vshrl.u32 %v2391, 7
  %v2393 = vsub.s32 7, %v2392
  %v2394 = vrot.slane %v2329, %v2393
  %v2395 = vmul.f32 %v2221, %v2334
  %v2396 = vmul.f32 %v2226, %v2338
  %v2397 = vmul.f32 %v2231, %v2342
  %v2398 = vmul.f32 %v2236, %v2346
  %v2399 = vmul.f32 %v2241, %v2350
  %v2400 = vmul.f32 %v2246, %v2354
  %v2401 = vmul.f32 %v2251, %v2358
  %v2402 = vmul.f32 %v2256, %v2362
  %v2403 = vmul.f32 %v2261, %v2366
  %v2404 = vmul.f32 %v2266, %v2370
  %v2405 = vmul.f32 %v2271, %v2374
  %v2406 = vmul.f32 %v2276, %v2378
  %v2407 = vmul.f32 %v2281, %v2382
  %v2408 = vmul.f32 %v2286, %v2386
  %v2409 = vmul.f32 %v2291, %v2390
  %v2410 = vmul.f32 %v2296, %v2394
  %v2411 = vsel %vm2330, 0.0, %v2395
  %v2412 = vsel %vm2330, 0.0, %v2396
  %v2413 = vsel %vm2330, 0.0, %v2397
  %v2414 = vsel %vm2330, 0.0, %v2398
  %v2415 = vsel %vm2330, 0.0, %v2399
  %v2416 = vsel %vm2330, 0.0, %v2400
  %v2417 = vsel %vm2330, 0.0, %v2401
  %v2418 = vsel %vm2330, 0.0, %v2402
  %v2419 = vsel %vm2330, 0.0, %v2403
  %v2420 = vsel %vm2330, 0.0, %v2404
  %v2421 = vsel %vm2330, 0.0, %v2405
  %v2422 = vsel %vm2330, 0.0, %v2406
  %v2423 = vsel %vm2330, 0.0, %v2407
  %v2424 = vsel %vm2330, 0.0, %v2408
  %v2425 = vsel %vm2330, 0.0, %v2409
  %v2426 = vsel %vm2330, 0.0, %v2410
  %v2427 = vsub.f32 %v2202, %v2411
  %v2428 = vsub.f32 %v2203, %v2412
  %v2429 = vsub.f32 %v2204, %v2413
  %v2430 = vsub.f32 %v2205, %v2414
  %v2431 = vsub.f32 %v2206, %v2415
  %v2432 = vsub.f32 %v2207, %v2416
  %v2433 = vsub.f32 %v2208, %v2417
  %v2434 = vsub.f32 %v2209, %v2418
  %v2435 = vsub.f32 %v2210, %v2419
  %v2436 = vsub.f32 %v2211, %v2420
  %v2437 = vsub.f32 %v2212, %v2421
  %v2438 = vsub.f32 %v2213, %v2422
  %v2439 = vsub.f32 %v2214, %v2423
  %v2440 = vsub.f32 %v2215, %v2424
  %v2441 = vsub.f32 %v2216, %v2425
  %v2442 = vsub.f32 %v2217, %v2426
  %v2443 = vsel %vm2330, %v2334, %v2427
  %v2444 = vsel %vm2330, %v2338, %v2428
  %v2445 = vsel %vm2330, %v2342, %v2429
  %v2446 = vsel %vm2330, %v2346, %v2430
  %v2447 = vsel %vm2330, %v2350, %v2431
  %v2448 = vsel %vm2330, %v2354, %v2432
  %v2449 = vsel %vm2330, %v2358, %v2433
  %v2450 = vsel %vm2330, %v2362, %v2434
  %v2451 = vsel %vm2330, %v2366, %v2435
  %v2452 = vsel %vm2330, %v2370, %v2436
  %v2453 = vsel %vm2330, %v2374, %v2437
  %v2454 = vsel %vm2330, %v2378, %v2438
  %v2455 = vsel %vm2330, %v2382, %v2439
  %v2456 = vsel %vm2330, %v2386, %v2440
  %v2457 = vsel %vm2330, %v2390, %v2441
  %v2458 = vsel %vm2330, %v2394, %v2442
  %2475 = vrot.lane.b32.xlu0 %v2443, 120
  %v2476 = vpop.permute.xlu0 %2475
  %2477 = vrot.lane.b32.xlu0 %v2444, 120
  %v2478 = vpop.permute.xlu0 %2477
  %2479 = vrot.lane.b32.xlu0 %v2445, 120
  %v2480 = vpop.permute.xlu0 %2479
  %2481 = vrot.lane.b32.xlu0 %v2446, 120
  %v2482 = vpop.permute.xlu0 %2481
  %2483 = vrot.lane.b32.xlu0 %v2447, 120
  %v2484 = vpop.permute.xlu0 %2483
  %2485 = vrot.lane.b32.xlu0 %v2448, 120
  %v2486 = vpop.permute.xlu0 %2485
  %2487 = vrot.lane.b32.xlu0 %v2449, 120
  %v2488 = vpop.permute.xlu0 %2487
  %2489 = vrot.lane.b32.xlu0 %v2450, 120
  %v2490 = vpop.permute.xlu0 %2489
  %2491 = vrot.lane.b32.xlu0 %v2451, 120
  %v2492 = vpop.permute.xlu0 %2491
  %2493 = vrot.lane.b32.xlu0 %v2452, 120
  %v2494 = vpop.permute.xlu0 %2493
  %2495 = vrot.lane.b32.xlu0 %v2453, 120
  %v2496 = vpop.permute.xlu0 %2495
  %2497 = vrot.lane.b32.xlu0 %v2454, 120
  %v2498 = vpop.permute.xlu0 %2497
  %2499 = vrot.lane.b32.xlu0 %v2455, 120
  %v2500 = vpop.permute.xlu0 %2499
  %2501 = vrot.lane.b32.xlu0 %v2456, 120
  %v2502 = vpop.permute.xlu0 %2501
  %2503 = vrot.lane.b32.xlu0 %v2457, 120
  %v2504 = vpop.permute.xlu0 %2503
  %2505 = vrot.lane.b32.xlu0 %v2458, 120
  %v2506 = vpop.permute.xlu0 %2505
  %2523 = vst.msk [vmem:[%s1] sm:$0xff] %vm396, %v2476
  %2524 = vst.msk [vmem:[%s1 + $0x8] sm:$0xff] %vm396, %v2478
  %2525 = vst.msk [vmem:[%s1 + $0x10] sm:$0xff] %vm396, %v2480
  %2526 = vst.msk [vmem:[%s1 + $0x18] sm:$0xff] %vm396, %v2482
  %2527 = vst.msk [vmem:[%s1 + $0x20] sm:$0xff] %vm396, %v2484
  %2528 = vst.msk [vmem:[%s1 + $0x28] sm:$0xff] %vm396, %v2486
  %2529 = vst.msk [vmem:[%s1 + $0x30] sm:$0xff] %vm396, %v2488
  %2530 = vst.msk [vmem:[%s1 + $0x38] sm:$0xff] %vm396, %v2490
  %2531 = vst.msk [vmem:[%s1 + $0x40] sm:$0xff] %vm396, %v2492
  %2532 = vst.msk [vmem:[%s1 + $0x48] sm:$0xff] %vm396, %v2494
  %2533 = vst.msk [vmem:[%s1 + $0x50] sm:$0xff] %vm396, %v2496
  %2534 = vst.msk [vmem:[%s1 + $0x58] sm:$0xff] %vm396, %v2498
  %2535 = vst.msk [vmem:[%s1 + $0x60] sm:$0xff] %vm396, %v2500
  %2536 = vst.msk [vmem:[%s1 + $0x68] sm:$0xff] %vm396, %v2502
  %2537 = vst.msk [vmem:[%s1 + $0x70] sm:$0xff] %vm396, %v2504
  %2538 = vst.msk [vmem:[%s1 + $0x78] sm:$0xff] %vm396, %v2506
  // Predicated region
  $region6: #{kp_layer_approx_forward.2} parent=0 // pred_check
    _
  $region7: #{kp_layer_approx_forward.2} parent=0 // pred_check_branch
    %2540 = sbr.rel (0) target = $region9
  $region8: #{kp_layer_approx_forward.2} parent=0 // pred_region
    _
  $region9: #{kp_layer_approx_forward.2} parent=0 // pred_fallthru
    _
  // Predicated region
  $region10: #{kp_layer_approx_forward.2} parent=0 // pred_check
    _
  $region11: #{kp_layer_approx_forward.2} parent=0 // pred_check_branch
    %2542 = sbr.rel (0) target = $region13
  $region12: #{kp_layer_approx_forward.2} parent=0 // pred_region
    _
  $region13: #{kp_layer_approx_forward.2} parent=0 // pred_fallthru
    _

</llo_original>
